<compile_context>
chip_gen: v5e
topology: v5e:2x2
jax: 0.10.0
libtpu: 0.0.40
codegen_flags: <defaults>
</compile_context>

<pallas_src>
import functools

import jax
import jax.numpy as jnp
from jax.experimental import pallas as pl
from jax.experimental.pallas import tpu as pltpu

LANES = 128


def _round_up(x, m):
    return (x + m - 1) // m * m


def _ins_resblock_kernel(x_ref, w1_ref, b1_ref, w2_ref, b2_ref, o_ref, hpad_ref,
                         *, H, W, eps):
    Cp = o_ref.shape[-1]
    HW = H * W

    def conv3x3(read_window, w_ref, b_ref):
        # Direct 3x3 conv: 9 shifted windows, each a lane-dense (HW, Cp) @ (Cp, Cp) matmul.
        acc = jnp.zeros((HW, Cp), dtype=jnp.float32)
        for kh in range(3):
            for kw in range(3):
                win = read_window(kh, kw).reshape(HW, Cp)
                acc = acc + jnp.dot(win.astype(w_ref.dtype), w_ref[kh * 3 + kw],
                                    preferred_element_type=jnp.float32)
        return acc + b_ref[...].astype(jnp.float32)

    def instance_norm(h):
        # InstanceNorm2d defaults: affine=False, biased variance, eps=1e-5.
        mean = jnp.mean(h, axis=0, keepdims=True)
        var = jnp.mean(jnp.square(h - mean), axis=0, keepdims=True)
        return (h - mean) * jax.lax.rsqrt(var + eps)

    # ---- conv1 (input already reflect-padded in HBM) + InstanceNorm + ReLU ----
    h = conv3x3(lambda kh, kw: x_ref[0, kh:kh + H, kw:kw + W, :], w1_ref, b1_ref)
    h3 = jnp.maximum(instance_norm(h), 0.0).reshape(H, W, Cp)

    # ---- reflection-pad (pad=1) the intermediate entirely in VMEM scratch ----
    hpad_ref[1:1 + H, 1:1 + W, :] = h3
    hpad_ref[0, 1:1 + W, :] = h3[1, :, :]
    hpad_ref[H + 1, 1:1 + W, :] = h3[H - 2, :, :]
    hpad_ref[:, 0, :] = hpad_ref[:, 2, :]
    hpad_ref[:, W + 1, :] = hpad_ref[:, W - 1, :]

    # ---- conv2 + InstanceNorm ----
    out = instance_norm(
        conv3x3(lambda kh, kw: hpad_ref[kh:kh + H, kw:kw + W, :], w2_ref, b2_ref))
    # TODO(synk): nn.Dropout is only present when dropout>0; module default (0.0) is identity.

    # ---- residual add (center of the padded input block is the original x) ----
    residual = x_ref[0, 1:1 + H, 1:1 + W, :].reshape(HW, Cp).astype(jnp.float32)
    o_ref[0, :, :] = (out + residual).astype(o_ref.dtype)


def ins_res_block(x, w1, b1, w2, b2, *, eps=1e-5, compute_dtype=jnp.float32):
    """INSResBlock forward.  x: (N, C, H, W) NCHW; w*: (C, C, 3, 3); b*: (C,)."""
    N, C, H, W = x.shape
    Cp = _round_up(max(C, 1), LANES)          # lane-dense channel padding
    Hp, Wp = H + 2, W + 2
    HW = H * W

    # NCHW -> NHWC, reflection-pad spatially, zero-pad channels to the lane width (glue).
    xh = jnp.transpose(x, (0, 2, 3, 1)).astype(jnp.float32)
    xh = jnp.pad(xh, ((0, 0), (1, 1), (1, 1), (0, 0)), mode="reflect")
    xh = jnp.pad(xh, ((0, 0), (0, 0), (0, 0), (0, Cp - C)))

    def prep_w(w):
        # (Cout, Cin, 3, 3) -> (9, Cin_p, Cout_p): per-tap matmul weights, zero padded.
        wt = jnp.transpose(w, (2, 3, 1, 0)).reshape(9, C, C)
        wt = jnp.pad(wt, ((0, 0), (0, Cp - C), (0, Cp - C)))
        # compute_dtype=jnp.bfloat16 enables the fast MXU path on v6e/v7x (f32 accumulation).
        return wt.astype(compute_dtype)

    def prep_b(b):
        return jnp.pad(b, (0, Cp - C)).reshape(1, Cp).astype(jnp.float32)

    kernel = functools.partial(_ins_resblock_kernel, H=H, W=W, eps=eps)

    out = pl.pallas_call(
        kernel,
        out_shape=jax.ShapeDtypeStruct((N, HW, Cp), jnp.float32),
        grid=(N,),
        in_specs=[
            pl.BlockSpec((1, Hp, Wp, Cp), lambda n: (n, 0, 0, 0)),   # one padded sample
            pl.BlockSpec((9, Cp, Cp), lambda n: (0, 0, 0)),          # w1 (resident)
            pl.BlockSpec((1, Cp), lambda n: (0, 0)),                 # b1
            pl.BlockSpec((9, Cp, Cp), lambda n: (0, 0, 0)),          # w2 (resident)
            pl.BlockSpec((1, Cp), lambda n: (0, 0)),                 # b2
        ],
        out_specs=pl.BlockSpec((1, HW, Cp), lambda n: (n, 0, 0)),    # lane-dense output
        scratch_shapes=[pltpu.VMEM((Hp, Wp, Cp), jnp.float32)],      # reflect-padded interm.
        compiler_params=pltpu.CompilerParams(
            dimension_semantics=("parallel",),
            vmem_limit_bytes=32 * 1024 * 1024,
        ),
    )(xh, prep_w(w1), prep_b(b1), prep_w(w2), prep_b(b2))

    # (N, HW, Cp) -> NCHW, drop channel padding (glue).
    out = out.reshape(N, H, W, Cp)[:, :, :, :C]
    return jnp.transpose(out, (0, 3, 1, 2))


def reference(x, w1, b1, w2, b2, eps=1e-5):
    """Pure-JAX INSResBlock reference (NCHW)."""
    def conv(h, w, b):
        hp = jnp.pad(h, ((0, 0), (0, 0), (1, 1), (1, 1)), mode="reflect")
        y = jax.lax.conv_general_dilated(
            hp, w, window_strides=(1, 1), padding="VALID",
            dimension_numbers=("NCHW", "OIHW", "NCHW"),
            precision=jax.lax.Precision.HIGHEST)
        return y + b.reshape(1, -1, 1, 1)

    def inorm(h):
        mean = jnp.mean(h, axis=(2, 3), keepdims=True)
        var = jnp.mean(jnp.square(h - mean), axis=(2, 3), keepdims=True)
        return (h - mean) * jax.lax.rsqrt(var + eps)

    h = jnp.maximum(inorm(conv(x, w1, b1)), 0.0)
    out = inorm(conv(h, w2, b2))
    return out + x


if __name__ == "__main__":
    # INSResBlock(inplanes=4, planes=4, stride=1, dropout=0.0)
    planes = 4
    N, H, W = 2, 16, 16

    key = jax.random.PRNGKey(0)
    kx, kw1, kb1, kw2, kb2 = jax.random.split(key, 5)
    x = jax.random.normal(kx, (N, planes, H, W), dtype=jnp.float32)
    # gaussian_weights_init: conv weights ~ N(0, 0.02)
    w1 = 0.02 * jax.random.normal(kw1, (planes, planes, 3, 3), dtype=jnp.float32)
    w2 = 0.02 * jax.random.normal(kw2, (planes, planes, 3, 3), dtype=jnp.float32)
    # conv biases: deterministic synthetic init (PyTorch default is uniform(+-1/sqrt(fan_in)))
    bound = 1.0 / float(jnp.sqrt(planes * 9.0))
    b1 = jax.random.uniform(kb1, (planes,), minval=-bound, maxval=bound, dtype=jnp.float32)
    b2 = jax.random.uniform(kb2, (planes,), minval=-bound, maxval=bound, dtype=jnp.float32)

    out = ins_res_block(x, w1, b1, w2, b2)
    out = jax.block_until_ready(out)

    ref = reference(x, w1, b1, w2, b2)
    assert out.shape == x.shape
    err = float(jnp.max(jnp.abs(out - ref)))
    assert jnp.allclose(out, ref, atol=1e-4, rtol=1e-4), f"mismatch vs reference, max abs err={err}"

    print("KERNEL_OK")
</pallas_src>

<mosaic_0001>
module attributes {stable_mosaic.version = 11 : i64} {
  func.func @_ins_resblock_kernel(%arg0: i32, %arg1: memref<1x18x18x128xf32, #tpu.memory_space<vmem>>, %arg2: memref<9x128x128xf32, #tpu.memory_space<vmem>>, %arg3: memref<1x128xf32, #tpu.memory_space<vmem>>, %arg4: memref<9x128x128xf32, #tpu.memory_space<vmem>>, %arg5: memref<1x128xf32, #tpu.memory_space<vmem>>, %arg6: memref<1x256x128xf32, #tpu.memory_space<vmem>>, %arg7: memref<18x18x128xf32, #tpu.memory_space<vmem>>) attributes {dimension_semantics = [#tpu.dimension_semantics<parallel>], iteration_bounds = array<i64: 2>, scalar_prefetch = 0 : i64, scratch_operands = 1 : i64, tpu.core_type = #tpu.core_type<tc>, window_params = [{transform_indices = @transform_0, window_bounds = array<i64: 1, 18, 18, 128>}, {pipeline_mode = #tpu.pipeline_mode<synchronous>, transform_indices = @transform_1, window_bounds = array<i64: 9, 128, 128>}, {pipeline_mode = #tpu.pipeline_mode<synchronous>, transform_indices = @transform_2, window_bounds = array<i64: 1, 128>}, {pipeline_mode = #tpu.pipeline_mode<synchronous>, transform_indices = @transform_3, window_bounds = array<i64: 9, 128, 128>}, {pipeline_mode = #tpu.pipeline_mode<synchronous>, transform_indices = @transform_4, window_bounds = array<i64: 1, 128>}, {transform_indices = @transform_5, window_bounds = array<i64: 1, 256, 128>}]} {
    %cst = arith.constant 0.000000e+00 : f32
    %0 = vector.broadcast %cst : f32 to vector<256x128xf32>
    %c0 = arith.constant 0 : index
    %c0_0 = arith.constant 0 : index
    %c0_1 = arith.constant 0 : index
    %c0_2 = arith.constant 0 : index
    %1 = vector.load %arg1[%c0, %c0_0, %c0_1, %c0_2] : memref<1x18x18x128xf32, #tpu.memory_space<vmem>>, vector<1x16x16x128xf32>
    %2 = vector.shape_cast %1 : vector<1x16x16x128xf32> to vector<16x16x128xf32>
    %3 = vector.shape_cast %2 : vector<16x16x128xf32> to vector<256x128xf32>
    %c0_3 = arith.constant 0 : index
    %c0_4 = arith.constant 0 : index
    %c0_5 = arith.constant 0 : index
    %4 = vector.load %arg2[%c0_3, %c0_4, %c0_5] : memref<9x128x128xf32, #tpu.memory_space<vmem>>, vector<1x128x128xf32>
    %5 = vector.shape_cast %4 : vector<1x128x128xf32> to vector<128x128xf32>
    %cst_6 = arith.constant dense<0.000000e+00> : vector<256x128xf32>
    %6 = tpu.matmul %3, %5, %cst_6 {dimension_numbers = #tpu.dot_dimension_numbers<[1], [0], [0], [1], [0, 0, 1, 1], [], []>} : vector<256x128xf32>, vector<128x128xf32>, vector<256x128xf32> -> vector<256x128xf32>
    %7 = arith.addf %0, %6 : vector<256x128xf32>
    %c0_7 = arith.constant 0 : index
    %c0_8 = arith.constant 0 : index
    %c1 = arith.constant 1 : index
    %c0_9 = arith.constant 0 : index
    %8 = vector.load %arg1[%c0_7, %c0_8, %c1, %c0_9] : memref<1x18x18x128xf32, #tpu.memory_space<vmem>>, vector<1x16x16x128xf32>
    %9 = vector.shape_cast %8 : vector<1x16x16x128xf32> to vector<16x16x128xf32>
    %10 = vector.shape_cast %9 : vector<16x16x128xf32> to vector<256x128xf32>
    %c1_10 = arith.constant 1 : index
    %c0_11 = arith.constant 0 : index
    %c0_12 = arith.constant 0 : index
    %11 = vector.load %arg2[%c1_10, %c0_11, %c0_12] : memref<9x128x128xf32, #tpu.memory_space<vmem>>, vector<1x128x128xf32>
    %12 = vector.shape_cast %11 : vector<1x128x128xf32> to vector<128x128xf32>
    %cst_13 = arith.constant dense<0.000000e+00> : vector<256x128xf32>
    %13 = tpu.matmul %10, %12, %cst_13 {dimension_numbers = #tpu.dot_dimension_numbers<[1], [0], [0], [1], [0, 0, 1, 1], [], []>} : vector<256x128xf32>, vector<128x128xf32>, vector<256x128xf32> -> vector<256x128xf32>
    %14 = arith.addf %7, %13 : vector<256x128xf32>
    %c0_14 = arith.constant 0 : index
    %c0_15 = arith.constant 0 : index
    %c2 = arith.constant 2 : index
    %c0_16 = arith.constant 0 : index
    %15 = vector.load %arg1[%c0_14, %c0_15, %c2, %c0_16] : memref<1x18x18x128xf32, #tpu.memory_space<vmem>>, vector<1x16x16x128xf32>
    %16 = vector.shape_cast %15 : vector<1x16x16x128xf32> to vector<16x16x128xf32>
    %17 = vector.shape_cast %16 : vector<16x16x128xf32> to vector<256x128xf32>
    %c2_17 = arith.constant 2 : index
    %c0_18 = arith.constant 0 : index
    %c0_19 = arith.constant 0 : index
    %18 = vector.load %arg2[%c2_17, %c0_18, %c0_19] : memref<9x128x128xf32, #tpu.memory_space<vmem>>, vector<1x128x128xf32>
    %19 = vector.shape_cast %18 : vector<1x128x128xf32> to vector<128x128xf32>
    %cst_20 = arith.constant dense<0.000000e+00> : vector<256x128xf32>
    %20 = tpu.matmul %17, %19, %cst_20 {dimension_numbers = #tpu.dot_dimension_numbers<[1], [0], [0], [1], [0, 0, 1, 1], [], []>} : vector<256x128xf32>, vector<128x128xf32>, vector<256x128xf32> -> vector<256x128xf32>
    %21 = arith.addf %14, %20 : vector<256x128xf32>
    %c0_21 = arith.constant 0 : index
    %c1_22 = arith.constant 1 : index
    %c0_23 = arith.constant 0 : index
    %c0_24 = arith.constant 0 : index
    %22 = vector.load %arg1[%c0_21, %c1_22, %c0_23, %c0_24] : memref<1x18x18x128xf32, #tpu.memory_space<vmem>>, vector<1x16x16x128xf32>
    %23 = vector.shape_cast %22 : vector<1x16x16x128xf32> to vector<16x16x128xf32>
    %24 = vector.shape_cast %23 : vector<16x16x128xf32> to vector<256x128xf32>
    %c3 = arith.constant 3 : index
    %c0_25 = arith.constant 0 : index
    %c0_26 = arith.constant 0 : index
    %25 = vector.load %arg2[%c3, %c0_25, %c0_26] : memref<9x128x128xf32, #tpu.memory_space<vmem>>, vector<1x128x128xf32>
    %26 = vector.shape_cast %25 : vector<1x128x128xf32> to vector<128x128xf32>
    %cst_27 = arith.constant dense<0.000000e+00> : vector<256x128xf32>
    %27 = tpu.matmul %24, %26, %cst_27 {dimension_numbers = #tpu.dot_dimension_numbers<[1], [0], [0], [1], [0, 0, 1, 1], [], []>} : vector<256x128xf32>, vector<128x128xf32>, vector<256x128xf32> -> vector<256x128xf32>
    %28 = arith.addf %21, %27 : vector<256x128xf32>
    %c0_28 = arith.constant 0 : index
    %c1_29 = arith.constant 1 : index
    %c1_30 = arith.constant 1 : index
    %c0_31 = arith.constant 0 : index
    %29 = vector.load %arg1[%c0_28, %c1_29, %c1_30, %c0_31] : memref<1x18x18x128xf32, #tpu.memory_space<vmem>>, vector<1x16x16x128xf32>
    %30 = vector.shape_cast %29 : vector<1x16x16x128xf32> to vector<16x16x128xf32>
    %31 = vector.shape_cast %30 : vector<16x16x128xf32> to vector<256x128xf32>
    %c4 = arith.constant 4 : index
    %c0_32 = arith.constant 0 : index
    %c0_33 = arith.constant 0 : index
    %32 = vector.load %arg2[%c4, %c0_32, %c0_33] : memref<9x128x128xf32, #tpu.memory_space<vmem>>, vector<1x128x128xf32>
    %33 = vector.shape_cast %32 : vector<1x128x128xf32> to vector<128x128xf32>
    %cst_34 = arith.constant dense<0.000000e+00> : vector<256x128xf32>
    %34 = tpu.matmul %31, %33, %cst_34 {dimension_numbers = #tpu.dot_dimension_numbers<[1], [0], [0], [1], [0, 0, 1, 1], [], []>} : vector<256x128xf32>, vector<128x128xf32>, vector<256x128xf32> -> vector<256x128xf32>
    %35 = arith.addf %28, %34 : vector<256x128xf32>
    %c0_35 = arith.constant 0 : index
    %c1_36 = arith.constant 1 : index
    %c2_37 = arith.constant 2 : index
    %c0_38 = arith.constant 0 : index
    %36 = vector.load %arg1[%c0_35, %c1_36, %c2_37, %c0_38] : memref<1x18x18x128xf32, #tpu.memory_space<vmem>>, vector<1x16x16x128xf32>
    %37 = vector.shape_cast %36 : vector<1x16x16x128xf32> to vector<16x16x128xf32>
    %38 = vector.shape_cast %37 : vector<16x16x128xf32> to vector<256x128xf32>
    %c5 = arith.constant 5 : index
    %c0_39 = arith.constant 0 : index
    %c0_40 = arith.constant 0 : index
    %39 = vector.load %arg2[%c5, %c0_39, %c0_40] : memref<9x128x128xf32, #tpu.memory_space<vmem>>, vector<1x128x128xf32>
    %40 = vector.shape_cast %39 : vector<1x128x128xf32> to vector<128x128xf32>
    %cst_41 = arith.constant dense<0.000000e+00> : vector<256x128xf32>
    %41 = tpu.matmul %38, %40, %cst_41 {dimension_numbers = #tpu.dot_dimension_numbers<[1], [0], [0], [1], [0, 0, 1, 1], [], []>} : vector<256x128xf32>, vector<128x128xf32>, vector<256x128xf32> -> vector<256x128xf32>
    %42 = arith.addf %35, %41 : vector<256x128xf32>
    %c0_42 = arith.constant 0 : index
    %c2_43 = arith.constant 2 : index
    %c0_44 = arith.constant 0 : index
    %c0_45 = arith.constant 0 : index
    %43 = vector.load %arg1[%c0_42, %c2_43, %c0_44, %c0_45] : memref<1x18x18x128xf32, #tpu.memory_space<vmem>>, vector<1x16x16x128xf32>
    %44 = vector.shape_cast %43 : vector<1x16x16x128xf32> to vector<16x16x128xf32>
    %45 = vector.shape_cast %44 : vector<16x16x128xf32> to vector<256x128xf32>
    %c6 = arith.constant 6 : index
    %c0_46 = arith.constant 0 : index
    %c0_47 = arith.constant 0 : index
    %46 = vector.load %arg2[%c6, %c0_46, %c0_47] : memref<9x128x128xf32, #tpu.memory_space<vmem>>, vector<1x128x128xf32>
    %47 = vector.shape_cast %46 : vector<1x128x128xf32> to vector<128x128xf32>
    %cst_48 = arith.constant dense<0.000000e+00> : vector<256x128xf32>
    %48 = tpu.matmul %45, %47, %cst_48 {dimension_numbers = #tpu.dot_dimension_numbers<[1], [0], [0], [1], [0, 0, 1, 1], [], []>} : vector<256x128xf32>, vector<128x128xf32>, vector<256x128xf32> -> vector<256x128xf32>
    %49 = arith.addf %42, %48 : vector<256x128xf32>
    %c0_49 = arith.constant 0 : index
    %c2_50 = arith.constant 2 : index
    %c1_51 = arith.constant 1 : index
    %c0_52 = arith.constant 0 : index
    %50 = vector.load %arg1[%c0_49, %c2_50, %c1_51, %c0_52] : memref<1x18x18x128xf32, #tpu.memory_space<vmem>>, vector<1x16x16x128xf32>
    %51 = vector.shape_cast %50 : vector<1x16x16x128xf32> to vector<16x16x128xf32>
    %52 = vector.shape_cast %51 : vector<16x16x128xf32> to vector<256x128xf32>
    %c7 = arith.constant 7 : index
    %c0_53 = arith.constant 0 : index
    %c0_54 = arith.constant 0 : index
    %53 = vector.load %arg2[%c7, %c0_53, %c0_54] : memref<9x128x128xf32, #tpu.memory_space<vmem>>, vector<1x128x128xf32>
    %54 = vector.shape_cast %53 : vector<1x128x128xf32> to vector<128x128xf32>
    %cst_55 = arith.constant dense<0.000000e+00> : vector<256x128xf32>
    %55 = tpu.matmul %52, %54, %cst_55 {dimension_numbers = #tpu.dot_dimension_numbers<[1], [0], [0], [1], [0, 0, 1, 1], [], []>} : vector<256x128xf32>, vector<128x128xf32>, vector<256x128xf32> -> vector<256x128xf32>
    %56 = arith.addf %49, %55 : vector<256x128xf32>
    %c0_56 = arith.constant 0 : index
    %c2_57 = arith.constant 2 : index
    %c2_58 = arith.constant 2 : index
    %c0_59 = arith.constant 0 : index
    %57 = vector.load %arg1[%c0_56, %c2_57, %c2_58, %c0_59] : memref<1x18x18x128xf32, #tpu.memory_space<vmem>>, vector<1x16x16x128xf32>
    %58 = vector.shape_cast %57 : vector<1x16x16x128xf32> to vector<16x16x128xf32>
    %59 = vector.shape_cast %58 : vector<16x16x128xf32> to vector<256x128xf32>
    %c8 = arith.constant 8 : index
    %c0_60 = arith.constant 0 : index
    %c0_61 = arith.constant 0 : index
    %60 = vector.load %arg2[%c8, %c0_60, %c0_61] : memref<9x128x128xf32, #tpu.memory_space<vmem>>, vector<1x128x128xf32>
    %61 = vector.shape_cast %60 : vector<1x128x128xf32> to vector<128x128xf32>
    %cst_62 = arith.constant dense<0.000000e+00> : vector<256x128xf32>
    %62 = tpu.matmul %59, %61, %cst_62 {dimension_numbers = #tpu.dot_dimension_numbers<[1], [0], [0], [1], [0, 0, 1, 1], [], []>} : vector<256x128xf32>, vector<128x128xf32>, vector<256x128xf32> -> vector<256x128xf32>
    %63 = arith.addf %56, %62 : vector<256x128xf32>
    %c0_63 = arith.constant 0 : index
    %c0_64 = arith.constant 0 : index
    %64 = vector.load %arg3[%c0_63, %c0_64] : memref<1x128xf32, #tpu.memory_space<vmem>>, vector<1x128xf32>
    %65 = vector.broadcast %64 : vector<1x128xf32> to vector<256x128xf32>
    %66 = arith.addf %63, %65 : vector<256x128xf32>
    %cst_65 = arith.constant dense<0.000000e+00> : vector<128xf32>
    %67 = vector.multi_reduction <add>, %66, %cst_65 [0] : vector<256x128xf32> to vector<128xf32>
    %68 = vector.shape_cast %67 : vector<128xf32> to vector<1x128xf32>
    %cst_66 = arith.constant 2.560000e+02 : f32
    %69 = vector.broadcast %cst_66 : f32 to vector<1x128xf32>
    %70 = arith.divf %68, %69 : vector<1x128xf32>
    %71 = vector.broadcast %70 : vector<1x128xf32> to vector<256x128xf32>
    %72 = arith.subf %66, %71 : vector<256x128xf32>
    %73 = arith.mulf %72, %72 : vector<256x128xf32>
    %cst_67 = arith.constant dense<0.000000e+00> : vector<128xf32>
    %74 = vector.multi_reduction <add>, %73, %cst_67 [0] : vector<256x128xf32> to vector<128xf32>
    %75 = vector.shape_cast %74 : vector<128xf32> to vector<1x128xf32>
    %cst_68 = arith.constant 2.560000e+02 : f32
    %76 = vector.broadcast %cst_68 : f32 to vector<1x128xf32>
    %77 = arith.divf %75, %76 : vector<1x128xf32>
    %78 = vector.broadcast %70 : vector<1x128xf32> to vector<256x128xf32>
    %79 = arith.subf %66, %78 : vector<256x128xf32>
    %cst_69 = arith.constant 9.99999974E-6 : f32
    %80 = vector.broadcast %cst_69 : f32 to vector<1x128xf32>
    %81 = arith.addf %77, %80 : vector<1x128xf32>
    %82 = math.rsqrt %81 : vector<1x128xf32>
    %83 = vector.broadcast %82 : vector<1x128xf32> to vector<256x128xf32>
    %84 = arith.mulf %79, %83 : vector<256x128xf32>
    %cst_70 = arith.constant 0.000000e+00 : f32
    %85 = vector.broadcast %cst_70 : f32 to vector<256x128xf32>
    %86 = arith.maximumf %84, %85 : vector<256x128xf32>
    %87 = vector.shape_cast %86 : vector<256x128xf32> to vector<16x16x128xf32>
    %c1_71 = arith.constant 1 : index
    %c1_72 = arith.constant 1 : index
    %c0_73 = arith.constant 0 : index
    %88 = vector.load %arg7[%c1_71, %c1_72, %c0_73] : memref<18x18x128xf32, #tpu.memory_space<vmem>>, vector<16x16x128xf32>
    tpu.vector_store %arg7[%c1_71, %c1_72, %c0_73], %87 {strides = array<i32>} : memref<18x18x128xf32, #tpu.memory_space<vmem>>, vector<16x16x128xf32>,
    %89 = vector.extract_strided_slice %87 {offsets = [1, 0, 0], sizes = [1, 16, 128], strides = [1, 1, 1]} : vector<16x16x128xf32> to vector<1x16x128xf32>
    %90 = vector.shape_cast %89 : vector<1x16x128xf32> to vector<16x128xf32>
    %c0_74 = arith.constant 0 : index
    %c1_75 = arith.constant 1 : index
    %c0_76 = arith.constant 0 : index
    %91 = vector.load %arg7[%c0_74, %c1_75, %c0_76] : memref<18x18x128xf32, #tpu.memory_space<vmem>>, vector<1x16x128xf32>
    %92 = vector.shape_cast %91 : vector<1x16x128xf32> to vector<16x128xf32>
    %93 = vector.shape_cast %90 : vector<16x128xf32> to vector<1x16x128xf32>
    tpu.vector_store %arg7[%c0_74, %c1_75, %c0_76], %93 {strides = array<i32>} : memref<18x18x128xf32, #tpu.memory_space<vmem>>, vector<1x16x128xf32>,
    %94 = vector.extract_strided_slice %87 {offsets = [14, 0, 0], sizes = [1, 16, 128], strides = [1, 1, 1]} : vector<16x16x128xf32> to vector<1x16x128xf32>
    %95 = vector.shape_cast %94 : vector<1x16x128xf32> to vector<16x128xf32>
    %c17 = arith.constant 17 : index
    %c1_77 = arith.constant 1 : index
    %c0_78 = arith.constant 0 : index
    %96 = vector.load %arg7[%c17, %c1_77, %c0_78] : memref<18x18x128xf32, #tpu.memory_space<vmem>>, vector<1x16x128xf32>
    %97 = vector.shape_cast %96 : vector<1x16x128xf32> to vector<16x128xf32>
    %98 = vector.shape_cast %95 : vector<16x128xf32> to vector<1x16x128xf32>
    tpu.vector_store %arg7[%c17, %c1_77, %c0_78], %98 {strides = array<i32>} : memref<18x18x128xf32, #tpu.memory_space<vmem>>, vector<1x16x128xf32>,
    %c0_79 = arith.constant 0 : index
    %c2_80 = arith.constant 2 : index
    %c0_81 = arith.constant 0 : index
    %99 = vector.load %arg7[%c0_79, %c2_80, %c0_81] : memref<18x18x128xf32, #tpu.memory_space<vmem>>, vector<18x1x128xf32>
    %100 = vector.shape_cast %99 : vector<18x1x128xf32> to vector<18x128xf32>
    %c0_82 = arith.constant 0 : index
    %c0_83 = arith.constant 0 : index
    %c0_84 = arith.constant 0 : index
    %101 = vector.load %arg7[%c0_82, %c0_83, %c0_84] : memref<18x18x128xf32, #tpu.memory_space<vmem>>, vector<18x1x128xf32>
    %102 = vector.shape_cast %101 : vector<18x1x128xf32> to vector<18x128xf32>
    %103 = vector.shape_cast %100 : vector<18x128xf32> to vector<18x1x128xf32>
    tpu.vector_store %arg7[%c0_82, %c0_83, %c0_84], %103 {strides = array<i32>} : memref<18x18x128xf32, #tpu.memory_space<vmem>>, vector<18x1x128xf32>,
    %c0_85 = arith.constant 0 : index
    %c15 = arith.constant 15 : index
    %c0_86 = arith.constant 0 : index
    %104 = vector.load %arg7[%c0_85, %c15, %c0_86] : memref<18x18x128xf32, #tpu.memory_space<vmem>>, vector<18x1x128xf32>
    %105 = vector.shape_cast %104 : vector<18x1x128xf32> to vector<18x128xf32>
    %c0_87 = arith.constant 0 : index
    %c17_88 = arith.constant 17 : index
    %c0_89 = arith.constant 0 : index
    %106 = vector.load %arg7[%c0_87, %c17_88, %c0_89] : memref<18x18x128xf32, #tpu.memory_space<vmem>>, vector<18x1x128xf32>
    %107 = vector.shape_cast %106 : vector<18x1x128xf32> to vector<18x128xf32>
    %108 = vector.shape_cast %105 : vector<18x128xf32> to vector<18x1x128xf32>
    tpu.vector_store %arg7[%c0_87, %c17_88, %c0_89], %108 {strides = array<i32>} : memref<18x18x128xf32, #tpu.memory_space<vmem>>, vector<18x1x128xf32>,
    %cst_90 = arith.constant 0.000000e+00 : f32
    %109 = vector.broadcast %cst_90 : f32 to vector<256x128xf32>
    %c0_91 = arith.constant 0 : index
    %c0_92 = arith.constant 0 : index
    %c0_93 = arith.constant 0 : index
    %110 = vector.load %arg7[%c0_91, %c0_92, %c0_93] : memref<18x18x128xf32, #tpu.memory_space<vmem>>, vector<16x16x128xf32>
    %111 = vector.shape_cast %110 : vector<16x16x128xf32> to vector<256x128xf32>
    %c0_94 = arith.constant 0 : index
    %c0_95 = arith.constant 0 : index
    %c0_96 = arith.constant 0 : index
    %112 = vector.load %arg4[%c0_94, %c0_95, %c0_96] : memref<9x128x128xf32, #tpu.memory_space<vmem>>, vector<1x128x128xf32>
    %113 = vector.shape_cast %112 : vector<1x128x128xf32> to vector<128x128xf32>
    %cst_97 = arith.constant dense<0.000000e+00> : vector<256x128xf32>
    %114 = tpu.matmul %111, %113, %cst_97 {dimension_numbers = #tpu.dot_dimension_numbers<[1], [0], [0], [1], [0, 0, 1, 1], [], []>} : vector<256x128xf32>, vector<128x128xf32>, vector<256x128xf32> -> vector<256x128xf32>
    %115 = arith.addf %109, %114 : vector<256x128xf32>
    %c0_98 = arith.constant 0 : index
    %c1_99 = arith.constant 1 : index
    %c0_100 = arith.constant 0 : index
    %116 = vector.load %arg7[%c0_98, %c1_99, %c0_100] : memref<18x18x128xf32, #tpu.memory_space<vmem>>, vector<16x16x128xf32>
    %117 = vector.shape_cast %116 : vector<16x16x128xf32> to vector<256x128xf32>
    %c1_101 = arith.constant 1 : index
    %c0_102 = arith.constant 0 : index
    %c0_103 = arith.constant 0 : index
    %118 = vector.load %arg4[%c1_101, %c0_102, %c0_103] : memref<9x128x128xf32, #tpu.memory_space<vmem>>, vector<1x128x128xf32>
    %119 = vector.shape_cast %118 : vector<1x128x128xf32> to vector<128x128xf32>
    %cst_104 = arith.constant dense<0.000000e+00> : vector<256x128xf32>
    %120 = tpu.matmul %117, %119, %cst_104 {dimension_numbers = #tpu.dot_dimension_numbers<[1], [0], [0], [1], [0, 0, 1, 1], [], []>} : vector<256x128xf32>, vector<128x128xf32>, vector<256x128xf32> -> vector<256x128xf32>
    %121 = arith.addf %115, %120 : vector<256x128xf32>
    %c0_105 = arith.constant 0 : index
    %c2_106 = arith.constant 2 : index
    %c0_107 = arith.constant 0 : index
    %122 = vector.load %arg7[%c0_105, %c2_106, %c0_107] : memref<18x18x128xf32, #tpu.memory_space<vmem>>, vector<16x16x128xf32>
    %123 = vector.shape_cast %122 : vector<16x16x128xf32> to vector<256x128xf32>
    %c2_108 = arith.constant 2 : index
    %c0_109 = arith.constant 0 : index
    %c0_110 = arith.constant 0 : index
    %124 = vector.load %arg4[%c2_108, %c0_109, %c0_110] : memref<9x128x128xf32, #tpu.memory_space<vmem>>, vector<1x128x128xf32>
    %125 = vector.shape_cast %124 : vector<1x128x128xf32> to vector<128x128xf32>
    %cst_111 = arith.constant dense<0.000000e+00> : vector<256x128xf32>
    %126 = tpu.matmul %123, %125, %cst_111 {dimension_numbers = #tpu.dot_dimension_numbers<[1], [0], [0], [1], [0, 0, 1, 1], [], []>} : vector<256x128xf32>, vector<128x128xf32>, vector<256x128xf32> -> vector<256x128xf32>
    %127 = arith.addf %121, %126 : vector<256x128xf32>
    %c1_112 = arith.constant 1 : index
    %c0_113 = arith.constant 0 : index
    %c0_114 = arith.constant 0 : index
    %128 = vector.load %arg7[%c1_112, %c0_113, %c0_114] : memref<18x18x128xf32, #tpu.memory_space<vmem>>, vector<16x16x128xf32>
    %129 = vector.shape_cast %128 : vector<16x16x128xf32> to vector<256x128xf32>
    %c3_115 = arith.constant 3 : index
    %c0_116 = arith.constant 0 : index
    %c0_117 = arith.constant 0 : index
    %130 = vector.load %arg4[%c3_115, %c0_116, %c0_117] : memref<9x128x128xf32, #tpu.memory_space<vmem>>, vector<1x128x128xf32>
    %131 = vector.shape_cast %130 : vector<1x128x128xf32> to vector<128x128xf32>
    %cst_118 = arith.constant dense<0.000000e+00> : vector<256x128xf32>
    %132 = tpu.matmul %129, %131, %cst_118 {dimension_numbers = #tpu.dot_dimension_numbers<[1], [0], [0], [1], [0, 0, 1, 1], [], []>} : vector<256x128xf32>, vector<128x128xf32>, vector<256x128xf32> -> vector<256x128xf32>
    %133 = arith.addf %127, %132 : vector<256x128xf32>
    %c1_119 = arith.constant 1 : index
    %c1_120 = arith.constant 1 : index
    %c0_121 = arith.constant 0 : index
    %134 = vector.load %arg7[%c1_119, %c1_120, %c0_121] : memref<18x18x128xf32, #tpu.memory_space<vmem>>, vector<16x16x128xf32>
    %135 = vector.shape_cast %134 : vector<16x16x128xf32> to vector<256x128xf32>
    %c4_122 = arith.constant 4 : index
    %c0_123 = arith.constant 0 : index
    %c0_124 = arith.constant 0 : index
    %136 = vector.load %arg4[%c4_122, %c0_123, %c0_124] : memref<9x128x128xf32, #tpu.memory_space<vmem>>, vector<1x128x128xf32>
    %137 = vector.shape_cast %136 : vector<1x128x128xf32> to vector<128x128xf32>
    %cst_125 = arith.constant dense<0.000000e+00> : vector<256x128xf32>
    %138 = tpu.matmul %135, %137, %cst_125 {dimension_numbers = #tpu.dot_dimension_numbers<[1], [0], [0], [1], [0, 0, 1, 1], [], []>} : vector<256x128xf32>, vector<128x128xf32>, vector<256x128xf32> -> vector<256x128xf32>
    %139 = arith.addf %133, %138 : vector<256x128xf32>
    %c1_126 = arith.constant 1 : index
    %c2_127 = arith.constant 2 : index
    %c0_128 = arith.constant 0 : index
    %140 = vector.load %arg7[%c1_126, %c2_127, %c0_128] : memref<18x18x128xf32, #tpu.memory_space<vmem>>, vector<16x16x128xf32>
    %141 = vector.shape_cast %140 : vector<16x16x128xf32> to vector<256x128xf32>
    %c5_129 = arith.constant 5 : index
    %c0_130 = arith.constant 0 : index
    %c0_131 = arith.constant 0 : index
    %142 = vector.load %arg4[%c5_129, %c0_130, %c0_131] : memref<9x128x128xf32, #tpu.memory_space<vmem>>, vector<1x128x128xf32>
    %143 = vector.shape_cast %142 : vector<1x128x128xf32> to vector<128x128xf32>
    %cst_132 = arith.constant dense<0.000000e+00> : vector<256x128xf32>
    %144 = tpu.matmul %141, %143, %cst_132 {dimension_numbers = #tpu.dot_dimension_numbers<[1], [0], [0], [1], [0, 0, 1, 1], [], []>} : vector<256x128xf32>, vector<128x128xf32>, vector<256x128xf32> -> vector<256x128xf32>
    %145 = arith.addf %139, %144 : vector<256x128xf32>
    %c2_133 = arith.constant 2 : index
    %c0_134 = arith.constant 0 : index
    %c0_135 = arith.constant 0 : index
    %146 = vector.load %arg7[%c2_133, %c0_134, %c0_135] : memref<18x18x128xf32, #tpu.memory_space<vmem>>, vector<16x16x128xf32>
    %147 = vector.shape_cast %146 : vector<16x16x128xf32> to vector<256x128xf32>
    %c6_136 = arith.constant 6 : index
    %c0_137 = arith.constant 0 : index
    %c0_138 = arith.constant 0 : index
    %148 = vector.load %arg4[%c6_136, %c0_137, %c0_138] : memref<9x128x128xf32, #tpu.memory_space<vmem>>, vector<1x128x128xf32>
    %149 = vector.shape_cast %148 : vector<1x128x128xf32> to vector<128x128xf32>
    %cst_139 = arith.constant dense<0.000000e+00> : vector<256x128xf32>
    %150 = tpu.matmul %147, %149, %cst_139 {dimension_numbers = #tpu.dot_dimension_numbers<[1], [0], [0], [1], [0, 0, 1, 1], [], []>} : vector<256x128xf32>, vector<128x128xf32>, vector<256x128xf32> -> vector<256x128xf32>
    %151 = arith.addf %145, %150 : vector<256x128xf32>
    %c2_140 = arith.constant 2 : index
    %c1_141 = arith.constant 1 : index
    %c0_142 = arith.constant 0 : index
    %152 = vector.load %arg7[%c2_140, %c1_141, %c0_142] : memref<18x18x128xf32, #tpu.memory_space<vmem>>, vector<16x16x128xf32>
    %153 = vector.shape_cast %152 : vector<16x16x128xf32> to vector<256x128xf32>
    %c7_143 = arith.constant 7 : index
    %c0_144 = arith.constant 0 : index
    %c0_145 = arith.constant 0 : index
    %154 = vector.load %arg4[%c7_143, %c0_144, %c0_145] : memref<9x128x128xf32, #tpu.memory_space<vmem>>, vector<1x128x128xf32>
    %155 = vector.shape_cast %154 : vector<1x128x128xf32> to vector<128x128xf32>
    %cst_146 = arith.constant dense<0.000000e+00> : vector<256x128xf32>
    %156 = tpu.matmul %153, %155, %cst_146 {dimension_numbers = #tpu.dot_dimension_numbers<[1], [0], [0], [1], [0, 0, 1, 1], [], []>} : vector<256x128xf32>, vector<128x128xf32>, vector<256x128xf32> -> vector<256x128xf32>
    %157 = arith.addf %151, %156 : vector<256x128xf32>
    %c2_147 = arith.constant 2 : index
    %c2_148 = arith.constant 2 : index
    %c0_149 = arith.constant 0 : index
    %158 = vector.load %arg7[%c2_147, %c2_148, %c0_149] : memref<18x18x128xf32, #tpu.memory_space<vmem>>, vector<16x16x128xf32>
    %159 = vector.shape_cast %158 : vector<16x16x128xf32> to vector<256x128xf32>
    %c8_150 = arith.constant 8 : index
    %c0_151 = arith.constant 0 : index
    %c0_152 = arith.constant 0 : index
    %160 = vector.load %arg4[%c8_150, %c0_151, %c0_152] : memref<9x128x128xf32, #tpu.memory_space<vmem>>, vector<1x128x128xf32>
    %161 = vector.shape_cast %160 : vector<1x128x128xf32> to vector<128x128xf32>
    %cst_153 = arith.constant dense<0.000000e+00> : vector<256x128xf32>
    %162 = tpu.matmul %159, %161, %cst_153 {dimension_numbers = #tpu.dot_dimension_numbers<[1], [0], [0], [1], [0, 0, 1, 1], [], []>} : vector<256x128xf32>, vector<128x128xf32>, vector<256x128xf32> -> vector<256x128xf32>
    %163 = arith.addf %157, %162 : vector<256x128xf32>
    %c0_154 = arith.constant 0 : index
    %c0_155 = arith.constant 0 : index
    %164 = vector.load %arg5[%c0_154, %c0_155] : memref<1x128xf32, #tpu.memory_space<vmem>>, vector<1x128xf32>
    %165 = vector.broadcast %164 : vector<1x128xf32> to vector<256x128xf32>
    %166 = arith.addf %163, %165 : vector<256x128xf32>
    %cst_156 = arith.constant dense<0.000000e+00> : vector<128xf32>
    %167 = vector.multi_reduction <add>, %166, %cst_156 [0] : vector<256x128xf32> to vector<128xf32>
    %168 = vector.shape_cast %167 : vector<128xf32> to vector<1x128xf32>
    %cst_157 = arith.constant 2.560000e+02 : f32
    %169 = vector.broadcast %cst_157 : f32 to vector<1x128xf32>
    %170 = arith.divf %168, %169 : vector<1x128xf32>
    %171 = vector.broadcast %170 : vector<1x128xf32> to vector<256x128xf32>
    %172 = arith.subf %166, %171 : vector<256x128xf32>
    %173 = arith.mulf %172, %172 : vector<256x128xf32>
    %cst_158 = arith.constant dense<0.000000e+00> : vector<128xf32>
    %174 = vector.multi_reduction <add>, %173, %cst_158 [0] : vector<256x128xf32> to vector<128xf32>
    %175 = vector.shape_cast %174 : vector<128xf32> to vector<1x128xf32>
    %cst_159 = arith.constant 2.560000e+02 : f32
    %176 = vector.broadcast %cst_159 : f32 to vector<1x128xf32>
    %177 = arith.divf %175, %176 : vector<1x128xf32>
    %178 = vector.broadcast %170 : vector<1x128xf32> to vector<256x128xf32>
    %179 = arith.subf %166, %178 : vector<256x128xf32>
    %cst_160 = arith.constant 9.99999974E-6 : f32
    %180 = vector.broadcast %cst_160 : f32 to vector<1x128xf32>
    %181 = arith.addf %177, %180 : vector<1x128xf32>
    %182 = math.rsqrt %181 : vector<1x128xf32>
    %183 = vector.broadcast %182 : vector<1x128xf32> to vector<256x128xf32>
    %184 = arith.mulf %179, %183 : vector<256x128xf32>
    %c0_161 = arith.constant 0 : index
    %c1_162 = arith.constant 1 : index
    %c1_163 = arith.constant 1 : index
    %c0_164 = arith.constant 0 : index
    %185 = vector.load %arg1[%c0_161, %c1_162, %c1_163, %c0_164] : memref<1x18x18x128xf32, #tpu.memory_space<vmem>>, vector<1x16x16x128xf32>
    %186 = vector.shape_cast %185 : vector<1x16x16x128xf32> to vector<16x16x128xf32>
    %187 = vector.shape_cast %186 : vector<16x16x128xf32> to vector<256x128xf32>
    %188 = arith.addf %184, %187 : vector<256x128xf32>
    %c0_165 = arith.constant 0 : index
    %c0_166 = arith.constant 0 : index
    %c0_167 = arith.constant 0 : index
    %189 = vector.load %arg6[%c0_165, %c0_166, %c0_167] : memref<1x256x128xf32, #tpu.memory_space<vmem>>, vector<1x256x128xf32>
    %190 = vector.shape_cast %189 : vector<1x256x128xf32> to vector<256x128xf32>
    %191 = vector.shape_cast %188 : vector<256x128xf32> to vector<1x256x128xf32>
    tpu.vector_store %arg6[%c0_165, %c0_166, %c0_167], %191 {strides = array<i32>} : memref<1x256x128xf32, #tpu.memory_space<vmem>>, vector<1x256x128xf32>,
    return
  }
  func.func @transform_0(%arg0: i32) -> (i32, i32, i32, i32) {
    %c0_i32 = arith.constant 0 : i32
    %c0_i32_0 = arith.constant 0 : i32
    %c0_i32_1 = arith.constant 0 : i32
    %c0_i32_2 = arith.constant 0 : i32
    return %arg0, %c0_i32, %c0_i32_0, %c0_i32_1 : i32, i32, i32, i32
  }
  func.func @transform_1(%arg0: i32) -> (i32, i32, i32) {
    %c0_i32 = arith.constant 0 : i32
    %c0_i32_0 = arith.constant 0 : i32
    %c0_i32_1 = arith.constant 0 : i32
    %c0_i32_2 = arith.constant 0 : i32
    return %c0_i32, %c0_i32_0, %c0_i32_1 : i32, i32, i32
  }
  func.func @transform_2(%arg0: i32) -> (i32, i32) {
    %c0_i32 = arith.constant 0 : i32
    %c0_i32_0 = arith.constant 0 : i32
    %c0_i32_1 = arith.constant 0 : i32
    return %c0_i32, %c0_i32_0 : i32, i32
  }
  func.func @transform_3(%arg0: i32) -> (i32, i32, i32) {
    %c0_i32 = arith.constant 0 : i32
    %c0_i32_0 = arith.constant 0 : i32
    %c0_i32_1 = arith.constant 0 : i32
    %c0_i32_2 = arith.constant 0 : i32
    return %c0_i32, %c0_i32_0, %c0_i32_1 : i32, i32, i32
  }
  func.func @transform_4(%arg0: i32) -> (i32, i32) {
    %c0_i32 = arith.constant 0 : i32
    %c0_i32_0 = arith.constant 0 : i32
    %c0_i32_1 = arith.constant 0 : i32
    return %c0_i32, %c0_i32_0 : i32, i32
  }
  func.func @transform_5(%arg0: i32) -> (i32, i32, i32) {
    %c0_i32 = arith.constant 0 : i32
    %c0_i32_0 = arith.constant 0 : i32
    %c0_i32_1 = arith.constant 0 : i32
    return %arg0, %c0_i32, %c0_i32_0 : i32, i32, i32
  }
}

</mosaic_0001>

<llo_original>
// kernel: tpu_custom_call.1
$region0: #{tpu_custom_call.1}
  #allocation0 [shape = 'u32[]', space=smem, size = 0x4, offset = 0x4, fixed_abs, tag = 'smem constant byte address 0x4 - core index']
  #allocation1 [shape = 'u32[72,128]{1,0:T(1,128)}', space=vmem, size = 0x9000, scoped, tag = 'internal scratch']
  #allocation2 [shape = 'f32[18,18,128]{2,1,0:T(8,128)}', space=vmem, size = 0x36000, scoped, tag = 'scratch operand']
  %s0 = inlined_call_operand.vmem [shape: f32[2,18,18,128], index: 0, kind: input, shape index: {}]
  %s1 = inlined_call_operand.vmem [shape: f32[9,128,128], index: 1, kind: input, shape index: {}]
  %s2 = inlined_call_operand.vmem [shape: f32[1,128], index: 2, kind: input, shape index: {}]
  %s3 = inlined_call_operand.hbm [shape: f32[9,128,128], index: 3, kind: input, shape index: {}]
  %s4 = inlined_call_operand.vmem [shape: f32[1,128], index: 4, kind: input, shape index: {}]
  %s5 = inlined_call_operand.hbm [shape: f32[2,256,128], index: 5, kind: output, shape index: {}]
  %s6 = sld [smem:[#allocation0]]
  $region57: #{tpu_custom_call.1} parent=0
    _
  %s8 = ssub.s32 1, %s6
  %s9 = scalar_select 0, %s8, %s6
  $region1: #{tpu_custom_call.1} parent=0
    #allocation3 [shape = 'u8[589824]{0}', space=vmem, size = 0x90000, scoped, tag = 'input window, operand 3, single buffered']
    #allocation4 [shape = 's32[2]{0}', space=sflag, size = 0x8, scoped, tag = 'scoped memory for tpu_custom_call.1']
    #allocation5 [shape = 's32[2]{0}', space=sflag, size = 0x8, scoped, tag = 'scoped memory for tpu_custom_call.1']
    #allocation6 [shape = 'u8[262144]{0}', space=vmem, size = 0x40000, scoped, tag = 'output window, operand 0']
    %10 = vsyncpa [#allocation4], 0
    %11 = vsyncpa [#allocation5], 0
    %s12 = scalar_lea.sflag [#allocation5], 1
    %13 = vsyncpa %s12, 0
    loop: start=0, step=1, limit=4
    $region2: #{tpu_custom_call.1} parent=1 // loop_pre_header
      _
    $region3: #{tpu_custom_call.1} parent=1 // loop_header
      %s15 = sphi 0, %s19
      %p16 = scmp.ge.s32.totalorder %s15, 4
      %s25 = sphi 0, %s27
      %s28 = sphi 0, %s25
      %s29 = sphi 0, %s28
      %s45 = sphi 0, %s29
      %s49 = sphi 0, %s49
      %s51 = sphi 0, %s49
      %s52 = sphi 0, %s51
      %s66 = sphi 0, %s52
      %s70 = sphi 0, %s70
      %s72 = sphi 0, %s70
      %s73 = sphi 0, %s72
      %s87 = sphi 0, %s73
      %s91 = sphi 0, %s91
      %s93 = sphi 0, %s91
      %s94 = sphi 0, %s93
      %s108 = sphi 0, %s94
      %s112 = sphi 0, %s112
      %s114 = sphi 0, %s112
      %s115 = sphi 0, %s114
      %s129 = sphi 0, %s115
      %s135 = sphi 0, %s137
      %s138 = sphi 0, %s135
      %s139 = sphi 0, %s138
      %s155 = sphi 0, %s139
    $region4: #{tpu_custom_call.1} parent=1 // loop_header_branch
      %18 = sbr.rel (%p16) target = $region8
    $region5: #{tpu_custom_call.1} parent=1 // loop_body
      %s20 = ssub.s32 %s15, 1
      %s21 = ssub.s32 %s15, 2
      %s22 = sadd.s32 %s15, 1
      %s23 = ssub.s32 %s15, %s22
      %p24 = scmp.eq.s32.totalorder %s23, 0
      %s26 = sadd.s32 %s25, 1
      %s27 = scalar_select %p24, %s25, %s26
      %p30 = pneg %p24
      %p31 = scmp.eq.s32.totalorder %s15, 1
      %p32 = por %p30, %p31
      %p33 = scmp.ne.s32.totalorder %s25, %s28
      %p34 = scmp.eq.s32.totalorder %s15, 0
      %p35 = por %p33, %p34
      %p36 = scmp.ne.s32.totalorder %s25, %s28
      %p37 = scmp.eq.s32.totalorder %s20, 1
      %p38 = por %p36, %p37
      %p39 = scmp.ne.s32.totalorder %s28, %s29
      %p40 = scmp.eq.s32.totalorder %s20, 0
      %p41 = por %p39, %p40
      %p42 = scmp.ne.s32.totalorder %s28, %s29
      %p43 = scmp.eq.s32.totalorder %s21, 1
      %p44 = por %p42, %p43
      %p46 = scmp.ne.s32.totalorder %s29, %s45
      %p47 = scmp.eq.s32.totalorder %s21, 0
      %p48 = por %p46, %p47
      %s50 = sadd.s32 %s49, 1
      %p53 = scmp.eq.s32.totalorder %s15, 1
      %p54 = scmp.ne.s32.totalorder %s49, %s51
      %p55 = scmp.eq.s32.totalorder %s15, 0
      %p56 = por %p54, %p55
      %p57 = scmp.ne.s32.totalorder %s49, %s51
      %p58 = scmp.eq.s32.totalorder %s20, 1
      %p59 = por %p57, %p58
      %p60 = scmp.ne.s32.totalorder %s51, %s52
      %p61 = scmp.eq.s32.totalorder %s20, 0
      %p62 = por %p60, %p61
      %p63 = scmp.ne.s32.totalorder %s51, %s52
      %p64 = scmp.eq.s32.totalorder %s21, 1
      %p65 = por %p63, %p64
      %p67 = scmp.ne.s32.totalorder %s52, %s66
      %p68 = scmp.eq.s32.totalorder %s21, 0
      %p69 = por %p67, %p68
      %s71 = sadd.s32 %s70, 1
      %p74 = scmp.eq.s32.totalorder %s15, 1
      %p75 = scmp.ne.s32.totalorder %s70, %s72
      %p76 = scmp.eq.s32.totalorder %s15, 0
      %p77 = por %p75, %p76
      %p78 = scmp.ne.s32.totalorder %s70, %s72
      %p79 = scmp.eq.s32.totalorder %s20, 1
      %p80 = por %p78, %p79
      %p81 = scmp.ne.s32.totalorder %s72, %s73
      %p82 = scmp.eq.s32.totalorder %s20, 0
      %p83 = por %p81, %p82
      %p84 = scmp.ne.s32.totalorder %s72, %s73
      %p85 = scmp.eq.s32.totalorder %s21, 1
      %p86 = por %p84, %p85
      %p88 = scmp.ne.s32.totalorder %s73, %s87
      %p89 = scmp.eq.s32.totalorder %s21, 0
      %p90 = por %p88, %p89
      %s92 = sadd.s32 %s91, 1
      %p95 = scmp.eq.s32.totalorder %s15, 1
      %p96 = scmp.ne.s32.totalorder %s91, %s93
      %p97 = scmp.eq.s32.totalorder %s15, 0
      %p98 = por %p96, %p97
      %p99 = scmp.ne.s32.totalorder %s91, %s93
      %p100 = scmp.eq.s32.totalorder %s20, 1
      %p101 = por %p99, %p100
      %p102 = scmp.ne.s32.totalorder %s93, %s94
      %p103 = scmp.eq.s32.totalorder %s20, 0
      %p104 = por %p102, %p103
      %p105 = scmp.ne.s32.totalorder %s93, %s94
      %p106 = scmp.eq.s32.totalorder %s21, 1
      %p107 = por %p105, %p106
      %p109 = scmp.ne.s32.totalorder %s94, %s108
      %p110 = scmp.eq.s32.totalorder %s21, 0
      %p111 = por %p109, %p110
      %s113 = sadd.s32 %s112, 1
      %p116 = scmp.eq.s32.totalorder %s15, 1
      %p117 = scmp.ne.s32.totalorder %s112, %s114
      %p118 = scmp.eq.s32.totalorder %s15, 0
      %p119 = por %p117, %p118
      %p120 = scmp.ne.s32.totalorder %s112, %s114
      %p121 = scmp.eq.s32.totalorder %s20, 1
      %p122 = por %p120, %p121
      %p123 = scmp.ne.s32.totalorder %s114, %s115
      %p124 = scmp.eq.s32.totalorder %s20, 0
      %p125 = por %p123, %p124
      %p126 = scmp.ne.s32.totalorder %s114, %s115
      %p127 = scmp.eq.s32.totalorder %s21, 1
      %p128 = por %p126, %p127
      %p130 = scmp.ne.s32.totalorder %s115, %s129
      %p131 = scmp.eq.s32.totalorder %s21, 0
      %p132 = por %p130, %p131
      %s133 = ssub.s32 %s15, %s22
      %p134 = scmp.eq.s32.totalorder %s133, 0
      %s136 = sadd.s32 %s135, 1
      %s137 = scalar_select %p134, %s135, %s136
      %p140 = pneg %p134
      %p141 = scmp.eq.s32.totalorder %s15, 1
      %p142 = por %p140, %p141
      %p143 = scmp.ne.s32.totalorder %s135, %s138
      %p144 = scmp.eq.s32.totalorder %s15, 0
      %p145 = por %p143, %p144
      %p146 = scmp.ne.s32.totalorder %s135, %s138
      %p147 = scmp.eq.s32.totalorder %s20, 1
      %p148 = por %p146, %p147
      %p149 = scmp.ne.s32.totalorder %s138, %s139
      %p150 = scmp.eq.s32.totalorder %s20, 0
      %p151 = por %p149, %p150
      %p152 = scmp.ne.s32.totalorder %s138, %s139
      %p153 = scmp.eq.s32.totalorder %s21, 1
      %p154 = por %p152, %p153
      %p156 = scmp.ne.s32.totalorder %s139, %s155
      %p157 = scmp.eq.s32.totalorder %s21, 0
      %p158 = por %p156, %p157
      %p159 = scmp.le.s32.totalorder 1, %s15
      %p160 = scmp.lt.s32.totalorder %s15, 3
      %p161 = pnand %p159, %p160
      %p162 = pneg %p161
      // Predicated region
      $region9: #{tpu_custom_call.1} parent=5 // pred_check
        _
      $region10: #{tpu_custom_call.1} parent=5 // pred_check_branch
        %164 = sbr.rel (%p161) target = $region12
      $region11: #{tpu_custom_call.1} parent=5 // pred_region
        %s165 = ssub.s32 %s15, 1
        // Predicated region
        $region13: #{tpu_custom_call.1} parent=11 // pred_check
          %p166 = pneg %p62
        $region14: #{tpu_custom_call.1} parent=11 // pred_check_branch
          %168 = sbr.rel (%p166) target = $region16
        $region15: #{tpu_custom_call.1} parent=11 // pred_region
          _
        $region16: #{tpu_custom_call.1} parent=11 // pred_fallthru
          _
        // Predicated region
        $region17: #{tpu_custom_call.1} parent=11 // pred_check
          %p169 = pneg %p83
        $region18: #{tpu_custom_call.1} parent=11 // pred_check_branch
          %171 = sbr.rel (%p169) target = $region20
        $region19: #{tpu_custom_call.1} parent=11 // pred_region
          _
        $region20: #{tpu_custom_call.1} parent=11 // pred_fallthru
          _
        // Predicated region
        $region21: #{tpu_custom_call.1} parent=11 // pred_check
          %p172 = pneg %p104
        $region22: #{tpu_custom_call.1} parent=11 // pred_check_branch
          %174 = sbr.rel (%p172) target = $region24
        $region23: #{tpu_custom_call.1} parent=11 // pred_region
          %176 = vsyncadd [#allocation4], 0
          %s177 = sshll.u32 %s3, 4
          %s178 = int_to_ptr.hbm [resolvable:$true] %s177
          %s179 = sshll.u32 [#allocation3], 4
          %s180 = int_to_ptr.vmem [resolvable:$true] %s179
          %185 = dma.hbm_to_vmem [thread:$0]  %s178, 18432, %s180, [#allocation4], 128, 128, 8
        $region24: #{tpu_custom_call.1} parent=11 // pred_fallthru
          _
        // Predicated region
        $region25: #{tpu_custom_call.1} parent=11 // pred_check
          %p186 = pneg %p125
        $region26: #{tpu_custom_call.1} parent=11 // pred_check_branch
          %188 = sbr.rel (%p186) target = $region28
        $region27: #{tpu_custom_call.1} parent=11 // pred_region
          _
        $region28: #{tpu_custom_call.1} parent=11 // pred_fallthru
          _
      $region12: #{tpu_custom_call.1} parent=5 // pred_fallthru
        _
      %p189 = scmp.lt.s32.totalorder %s15, 2
      // Predicated region
      $region29: #{tpu_custom_call.1} parent=5 // pred_check
        %p190 = pneg %p189
      $region30: #{tpu_custom_call.1} parent=5 // pred_check_branch
        %192 = sbr.rel (%p190) target = $region32
      $region31: #{tpu_custom_call.1} parent=5 // pred_region
        // Predicated region
        $region33: #{tpu_custom_call.1} parent=31 // pred_check
          %p193 = pneg %p35
        $region34: #{tpu_custom_call.1} parent=31 // pred_check_branch
          %195 = sbr.rel (%p193) target = $region36
        $region35: #{tpu_custom_call.1} parent=31 // pred_region
          %p196 = scmp.lt.s32.totalorder %s15, 1
          %s197 = scalar_select %p196, %s15, 1
          %s198 = smul.addr %s197, 54
          %s199 = smul.addr %s198, 8
          %s200 = scalar_lea.vmem %s0, %s199
        $region36: #{tpu_custom_call.1} parent=31 // pred_fallthru
          _
      $region32: #{tpu_custom_call.1} parent=5 // pred_fallthru
        _
      %p201 = scmp.le.s32.totalorder 1, %s15
      %p202 = scmp.lt.s32.totalorder %s15, 3
      %p203 = pnand %p201, %p202
      %p204 = pneg %p203
      // Predicated region
      $region37: #{tpu_custom_call.1} parent=5 // pred_check
        _
      $region38: #{tpu_custom_call.1} parent=5 // pred_check_branch
        %206 = sbr.rel (%p203) target = $region40
      $region39: #{tpu_custom_call.1} parent=5 // pred_region
        %s207 = ssub.s32 %s15, 1
        // Predicated region
        $region41: #{tpu_custom_call.1} parent=39 // pred_check
          %p208 = pneg %p104
        $region42: #{tpu_custom_call.1} parent=39 // pred_check_branch
          %210 = sbr.rel (%p208) target = $region44
        $region43: #{tpu_custom_call.1} parent=39 // pred_region
          %212 = dma.done [#allocation4], 18432
        $region44: #{tpu_custom_call.1} parent=39 // pred_fallthru
          _
        %p213 = scmp.lt.s32.totalorder %s20, 1
        %s214 = scalar_select %p213, %s20, 1
        %s215 = smul.addr %s214, 54
        %s216 = smul.addr %s215, 8
        %s217 = scalar_lea.vmem %s0, %s216
        %p218 = pneg %p41
        %p219 = pneg %p38
        %p220 = pneg %p62
        %p221 = pneg %p59
        %p222 = pneg %p83
        %p223 = pneg %p80
        %p224 = pneg %p104
        %p225 = pneg %p101
        %p226 = pneg %p125
        %p227 = pneg %p122
        %p228 = pneg %p151
        %p229 = pneg %p148
        %s230 = sand.u32 %s138, 1
        %s231 = scalar_lea.sflag [#allocation5], %s230
        %s232 = sand.u32 %s138, 1
        %s233 = smul.addr %s232, 256
        %s234 = scalar_lea.vmem [#allocation6], %s233
        %p235 = scmp.lt.s32.totalorder %s20, 1
        %s236 = scalar_select %p235, %s20, 1
        %s237 = smul.addr %s236, 54
        %s238 = smul.addr %s237, 8
        %s239 = scalar_lea.vmem %s0, %s238
        %v240 = vld [vmem:[%s239] sm:$0xff]
        %v241 = vld [vmem:[%s239 + $0x8] sm:$0xff]
        %v242 = vld [vmem:[%s239 + $0x18] sm:$0xff]
        %v243 = vld [vmem:[%s239 + $0x20] sm:$0xff]
        %v244 = vld [vmem:[%s239 + $0x30] sm:$0xff]
        %v245 = vld [vmem:[%s239 + $0x38] sm:$0xff]
        %v246 = vld [vmem:[%s239 + $0x48] sm:$0xff]
        %v247 = vld [vmem:[%s239 + $0x50] sm:$0xff]
        %v248 = vld [vmem:[%s239 + $0x60] sm:$0xff]
        %v249 = vld [vmem:[%s239 + $0x68] sm:$0xff]
        %v250 = vld [vmem:[%s239 + $0x78] sm:$0xff]
        %v251 = vld [vmem:[%s239 + $0x80] sm:$0xff]
        %v252 = vld [vmem:[%s239 + $0x90] sm:$0xff]
        %v253 = vld [vmem:[%s239 + $0x98] sm:$0xff]
        %v254 = vld [vmem:[%s239 + $0xa8] sm:$0xff]
        %v255 = vld [vmem:[%s239 + $0xb0] sm:$0xff]
        %v256 = vld [vmem:[%s239 + $0xc0] sm:$0xff]
        %v257 = vld [vmem:[%s239 + $0xc8] sm:$0xff]
        %v258 = vld [vmem:[%s239 + $0xd8] sm:$0xff]
        %v259 = vld [vmem:[%s239 + $0xe0] sm:$0xff]
        %v260 = vld [vmem:[%s239 + $0xf0] sm:$0xff]
        %v261 = vld [vmem:[%s239 + $0xf8] sm:$0xff]
        %v262 = vld [vmem:[%s239 + $0x108] sm:$0xff]
        %v263 = vld [vmem:[%s239 + $0x110] sm:$0xff]
        %v264 = vld [vmem:[%s239 + $0x120] sm:$0xff]
        %v265 = vld [vmem:[%s239 + $0x128] sm:$0xff]
        %v266 = vld [vmem:[%s239 + $0x138] sm:$0xff]
        %v267 = vld [vmem:[%s239 + $0x140] sm:$0xff]
        %v268 = vld [vmem:[%s239 + $0x150] sm:$0xff]
        %v269 = vld [vmem:[%s239 + $0x158] sm:$0xff]
        %v270 = vld [vmem:[%s239 + $0x168] sm:$0xff]
        %v271 = vld [vmem:[%s239 + $0x170] sm:$0xff]
        %v272 = vld [vmem:[%s1] sm:$0xff]
        %v273 = vld [vmem:[%s1 + $0x8] sm:$0xff]
        %v274 = vld [vmem:[%s1 + $0x10] sm:$0xff]
        %v275 = vld [vmem:[%s1 + $0x18] sm:$0xff]
        %v276 = vld [vmem:[%s1 + $0x20] sm:$0xff]
        %v277 = vld [vmem:[%s1 + $0x28] sm:$0xff]
        %v278 = vld [vmem:[%s1 + $0x30] sm:$0xff]
        %v279 = vld [vmem:[%s1 + $0x38] sm:$0xff]
        %v280 = vld [vmem:[%s1 + $0x40] sm:$0xff]
        %v281 = vld [vmem:[%s1 + $0x48] sm:$0xff]
        %v282 = vld [vmem:[%s1 + $0x50] sm:$0xff]
        %v283 = vld [vmem:[%s1 + $0x58] sm:$0xff]
        %v284 = vld [vmem:[%s1 + $0x60] sm:$0xff]
        %v285 = vld [vmem:[%s1 + $0x68] sm:$0xff]
        %v286 = vld [vmem:[%s1 + $0x70] sm:$0xff]
        %v287 = vld [vmem:[%s1 + $0x78] sm:$0xff]
        %v288 = vld [vmem:[%s239 + $0x1] sm:$0xff]
        %v289 = vld [vmem:[%s239 + $0x9] sm:$0xff]
        %v290 = vld [vmem:[%s239 + $0x19] sm:$0xff]
        %v291 = vld [vmem:[%s239 + $0x21] sm:$0xff]
        %v292 = vld [vmem:[%s239 + $0x31] sm:$0xff]
        %v293 = vld [vmem:[%s239 + $0x39] sm:$0xff]
        %v294 = vld [vmem:[%s239 + $0x49] sm:$0xff]
        %v295 = vld [vmem:[%s239 + $0x51] sm:$0xff]
        %v296 = vld [vmem:[%s239 + $0x61] sm:$0xff]
        %v297 = vld [vmem:[%s239 + $0x69] sm:$0xff]
        %v298 = vld [vmem:[%s239 + $0x79] sm:$0xff]
        %v299 = vld [vmem:[%s239 + $0x81] sm:$0xff]
        %v300 = vld [vmem:[%s239 + $0x91] sm:$0xff]
        %v301 = vld [vmem:[%s239 + $0x99] sm:$0xff]
        %v302 = vld [vmem:[%s239 + $0xa9] sm:$0xff]
        %v303 = vld [vmem:[%s239 + $0xb1] sm:$0xff]
        %v304 = vld [vmem:[%s239 + $0xc1] sm:$0xff]
        %v305 = vld [vmem:[%s239 + $0xc9] sm:$0xff]
        %v306 = vld [vmem:[%s239 + $0xd9] sm:$0xff]
        %v307 = vld [vmem:[%s239 + $0xe1] sm:$0xff]
        %v308 = vld [vmem:[%s239 + $0xf1] sm:$0xff]
        %v309 = vld [vmem:[%s239 + $0xf9] sm:$0xff]
        %v310 = vld [vmem:[%s239 + $0x109] sm:$0xff]
        %v311 = vld [vmem:[%s239 + $0x111] sm:$0xff]
        %v312 = vld [vmem:[%s239 + $0x121] sm:$0xff]
        %v313 = vld [vmem:[%s239 + $0x129] sm:$0xff]
        %v314 = vld [vmem:[%s239 + $0x139] sm:$0xff]
        %v315 = vld [vmem:[%s239 + $0x141] sm:$0xff]
        %v316 = vld [vmem:[%s239 + $0x151] sm:$0xff]
        %v317 = vld [vmem:[%s239 + $0x159] sm:$0xff]
        %v318 = vld [vmem:[%s239 + $0x169] sm:$0xff]
        %v319 = vld [vmem:[%s239 + $0x171] sm:$0xff]
        %s320 = scalar_lea.vmem %s1, 128
        %v321 = vld [vmem:[%s320] sm:$0xff]
        %v322 = vld [vmem:[%s320 + $0x8] sm:$0xff]
        %v323 = vld [vmem:[%s320 + $0x10] sm:$0xff]
        %v324 = vld [vmem:[%s320 + $0x18] sm:$0xff]
        %v325 = vld [vmem:[%s320 + $0x20] sm:$0xff]
        %v326 = vld [vmem:[%s320 + $0x28] sm:$0xff]
        %v327 = vld [vmem:[%s320 + $0x30] sm:$0xff]
        %v328 = vld [vmem:[%s320 + $0x38] sm:$0xff]
        %v329 = vld [vmem:[%s320 + $0x40] sm:$0xff]
        %v330 = vld [vmem:[%s320 + $0x48] sm:$0xff]
        %v331 = vld [vmem:[%s320 + $0x50] sm:$0xff]
        %v332 = vld [vmem:[%s320 + $0x58] sm:$0xff]
        %v333 = vld [vmem:[%s320 + $0x60] sm:$0xff]
        %v334 = vld [vmem:[%s320 + $0x68] sm:$0xff]
        %v335 = vld [vmem:[%s320 + $0x70] sm:$0xff]
        %v336 = vld [vmem:[%s320 + $0x78] sm:$0xff]
        %337 = vmatpush.msra.mxu0 %v336
        %338 = vmatpush.msra.mxu0 %v335
        %339 = vmatpush.msra.mxu0 %v334
        %340 = vmatpush.msra.mxu0 %v333
        %341 = vmatpush.msra.mxu0 %v332
        %342 = vmatpush.msra.mxu0 %v331
        %343 = vmatpush.msra.mxu0 %v330
        %344 = vmatpush.msra.mxu0 %v329
        %345 = vmatpush.msra.mxu0 %v328
        %346 = vmatpush.msra.mxu0 %v327
        %347 = vmatpush.msra.mxu0 %v326
        %348 = vmatpush.msra.mxu0 %v325
        %349 = vmatpush.msra.mxu0 %v324
        %350 = vmatpush.msra.mxu0 %v323
        %351 = vmatpush.msra.mxu0 %v322
        %352 = vmatpush.msra.mxu0 %v321
        %353 = vmatmul.f32.gmra.mxu0 %v288
        %v354 = vpop.f32.mrf.mxu0
        %v355 = vadd.f32 0.0, %v354
        %356 = vmatmul.f32.gmra.mxu0 %v289
        %v357 = vpop.f32.mrf.mxu0
        %v358 = vadd.f32 0.0, %v357
        %359 = vmatmul.f32.gmra.mxu0 %v290
        %v360 = vpop.f32.mrf.mxu0
        %v361 = vadd.f32 0.0, %v360
        %362 = vmatmul.f32.gmra.mxu0 %v291
        %v363 = vpop.f32.mrf.mxu0
        %v364 = vadd.f32 0.0, %v363
        %365 = vmatmul.f32.gmra.mxu0 %v292
        %v366 = vpop.f32.mrf.mxu0
        %v367 = vadd.f32 0.0, %v366
        %368 = vmatmul.f32.gmra.mxu0 %v293
        %v369 = vpop.f32.mrf.mxu0
        %v370 = vadd.f32 0.0, %v369
        %371 = vmatmul.f32.gmra.mxu0 %v294
        %v372 = vpop.f32.mrf.mxu0
        %v373 = vadd.f32 0.0, %v372
        %374 = vmatmul.f32.gmra.mxu0 %v295
        %v375 = vpop.f32.mrf.mxu0
        %v376 = vadd.f32 0.0, %v375
        %377 = vmatmul.f32.gmra.mxu0 %v296
        %v378 = vpop.f32.mrf.mxu0
        %v379 = vadd.f32 0.0, %v378
        %380 = vmatmul.f32.gmra.mxu0 %v297
        %v381 = vpop.f32.mrf.mxu0
        %v382 = vadd.f32 0.0, %v381
        %383 = vmatmul.f32.gmra.mxu0 %v298
        %v384 = vpop.f32.mrf.mxu0
        %v385 = vadd.f32 0.0, %v384
        %386 = vmatmul.f32.gmra.mxu0 %v299
        %v387 = vpop.f32.mrf.mxu0
        %v388 = vadd.f32 0.0, %v387
        %389 = vmatmul.f32.gmra.mxu0 %v300
        %v390 = vpop.f32.mrf.mxu0
        %v391 = vadd.f32 0.0, %v390
        %392 = vmatmul.f32.gmra.mxu0 %v301
        %v393 = vpop.f32.mrf.mxu0
        %v394 = vadd.f32 0.0, %v393
        %395 = vmatmul.f32.gmra.mxu0 %v302
        %v396 = vpop.f32.mrf.mxu0
        %v397 = vadd.f32 0.0, %v396
        %398 = vmatmul.f32.gmra.mxu0 %v303
        %v399 = vpop.f32.mrf.mxu0
        %v400 = vadd.f32 0.0, %v399
        %401 = vmatmul.f32.gmra.mxu0 %v304
        %v402 = vpop.f32.mrf.mxu0
        %v403 = vadd.f32 0.0, %v402
        %404 = vmatmul.f32.gmra.mxu0 %v305
        %v405 = vpop.f32.mrf.mxu0
        %v406 = vadd.f32 0.0, %v405
        %407 = vmatmul.f32.gmra.mxu0 %v306
        %v408 = vpop.f32.mrf.mxu0
        %v409 = vadd.f32 0.0, %v408
        %410 = vmatmul.f32.gmra.mxu0 %v307
        %v411 = vpop.f32.mrf.mxu0
        %v412 = vadd.f32 0.0, %v411
        %413 = vmatmul.f32.gmra.mxu0 %v308
        %v414 = vpop.f32.mrf.mxu0
        %v415 = vadd.f32 0.0, %v414
        %416 = vmatmul.f32.gmra.mxu0 %v309
        %v417 = vpop.f32.mrf.mxu0
        %v418 = vadd.f32 0.0, %v417
        %419 = vmatmul.f32.gmra.mxu0 %v310
        %v420 = vpop.f32.mrf.mxu0
        %v421 = vadd.f32 0.0, %v420
        %422 = vmatmul.f32.gmra.mxu0 %v311
        %v423 = vpop.f32.mrf.mxu0
        %v424 = vadd.f32 0.0, %v423
        %425 = vmatmul.f32.gmra.mxu0 %v312
        %v426 = vpop.f32.mrf.mxu0
        %v427 = vadd.f32 0.0, %v426
        %428 = vmatmul.f32.gmra.mxu0 %v313
        %v429 = vpop.f32.mrf.mxu0
        %v430 = vadd.f32 0.0, %v429
        %431 = vmatmul.f32.gmra.mxu0 %v314
        %v432 = vpop.f32.mrf.mxu0
        %v433 = vadd.f32 0.0, %v432
        %434 = vmatmul.f32.gmra.mxu0 %v315
        %v435 = vpop.f32.mrf.mxu0
        %v436 = vadd.f32 0.0, %v435
        %437 = vmatmul.f32.gmra.mxu0 %v316
        %v438 = vpop.f32.mrf.mxu0
        %v439 = vadd.f32 0.0, %v438
        %440 = vmatmul.f32.gmra.mxu0 %v317
        %v441 = vpop.f32.mrf.mxu0
        %v442 = vadd.f32 0.0, %v441
        %443 = vmatmul.f32.gmra.mxu0 %v318
        %v444 = vpop.f32.mrf.mxu0
        %v445 = vadd.f32 0.0, %v444
        %446 = vmatmul.f32.gmra.mxu0 %v319
        %v447 = vpop.f32.mrf.mxu0
        %v448 = vadd.f32 0.0, %v447
        %449 = vdwg.mxu0
        %450 = vmatpush.msra.mxu0 %v287
        %451 = vmatpush.msra.mxu0 %v286
        %452 = vmatpush.msra.mxu0 %v285
        %453 = vmatpush.msra.mxu0 %v284
        %454 = vmatpush.msra.mxu0 %v283
        %455 = vmatpush.msra.mxu0 %v282
        %456 = vmatpush.msra.mxu0 %v281
        %457 = vmatpush.msra.mxu0 %v280
        %458 = vmatpush.msra.mxu0 %v279
        %459 = vmatpush.msra.mxu0 %v278
        %460 = vmatpush.msra.mxu0 %v277
        %461 = vmatpush.msra.mxu0 %v276
        %462 = vmatpush.msra.mxu0 %v275
        %463 = vmatpush.msra.mxu0 %v274
        %464 = vmatpush.msra.mxu0 %v273
        %465 = vmatpush.msra.mxu0 %v272
        %466 = vmatmul.f32.gmra.mxu0 %v240
        %v467 = vpop.f32.mrf.mxu0
        %v468 = vadd.f32 %v355, %v467
        %469 = vmatmul.f32.gmra.mxu0 %v241
        %v470 = vpop.f32.mrf.mxu0
        %v471 = vadd.f32 %v358, %v470
        %472 = vmatmul.f32.gmra.mxu0 %v242
        %v473 = vpop.f32.mrf.mxu0
        %v474 = vadd.f32 %v361, %v473
        %475 = vmatmul.f32.gmra.mxu0 %v243
        %v476 = vpop.f32.mrf.mxu0
        %v477 = vadd.f32 %v364, %v476
        %478 = vmatmul.f32.gmra.mxu0 %v244
        %v479 = vpop.f32.mrf.mxu0
        %v480 = vadd.f32 %v367, %v479
        %481 = vmatmul.f32.gmra.mxu0 %v245
        %v482 = vpop.f32.mrf.mxu0
        %v483 = vadd.f32 %v370, %v482
        %484 = vmatmul.f32.gmra.mxu0 %v246
        %v485 = vpop.f32.mrf.mxu0
        %v486 = vadd.f32 %v373, %v485
        %487 = vmatmul.f32.gmra.mxu0 %v247
        %v488 = vpop.f32.mrf.mxu0
        %v489 = vadd.f32 %v376, %v488
        %490 = vmatmul.f32.gmra.mxu0 %v248
        %v491 = vpop.f32.mrf.mxu0
        %v492 = vadd.f32 %v379, %v491
        %493 = vmatmul.f32.gmra.mxu0 %v249
        %v494 = vpop.f32.mrf.mxu0
        %v495 = vadd.f32 %v382, %v494
        %496 = vmatmul.f32.gmra.mxu0 %v250
        %v497 = vpop.f32.mrf.mxu0
        %v498 = vadd.f32 %v385, %v497
        %499 = vmatmul.f32.gmra.mxu0 %v251
        %v500 = vpop.f32.mrf.mxu0
        %v501 = vadd.f32 %v388, %v500
        %502 = vmatmul.f32.gmra.mxu0 %v252
        %v503 = vpop.f32.mrf.mxu0
        %v504 = vadd.f32 %v391, %v503
        %505 = vmatmul.f32.gmra.mxu0 %v253
        %v506 = vpop.f32.mrf.mxu0
        %v507 = vadd.f32 %v394, %v506
        %508 = vmatmul.f32.gmra.mxu0 %v254
        %v509 = vpop.f32.mrf.mxu0
        %v510 = vadd.f32 %v397, %v509
        %511 = vmatmul.f32.gmra.mxu0 %v255
        %v512 = vpop.f32.mrf.mxu0
        %v513 = vadd.f32 %v400, %v512
        %514 = vmatmul.f32.gmra.mxu0 %v256
        %v515 = vpop.f32.mrf.mxu0
        %v516 = vadd.f32 %v403, %v515
        %517 = vmatmul.f32.gmra.mxu0 %v257
        %v518 = vpop.f32.mrf.mxu0
        %v519 = vadd.f32 %v406, %v518
        %520 = vmatmul.f32.gmra.mxu0 %v258
        %v521 = vpop.f32.mrf.mxu0
        %v522 = vadd.f32 %v409, %v521
        %523 = vmatmul.f32.gmra.mxu0 %v259
        %v524 = vpop.f32.mrf.mxu0
        %v525 = vadd.f32 %v412, %v524
        %526 = vmatmul.f32.gmra.mxu0 %v260
        %v527 = vpop.f32.mrf.mxu0
        %v528 = vadd.f32 %v415, %v527
        %529 = vmatmul.f32.gmra.mxu0 %v261
        %v530 = vpop.f32.mrf.mxu0
        %v531 = vadd.f32 %v418, %v530
        %532 = vmatmul.f32.gmra.mxu0 %v262
        %v533 = vpop.f32.mrf.mxu0
        %v534 = vadd.f32 %v421, %v533
        %535 = vmatmul.f32.gmra.mxu0 %v263
        %v536 = vpop.f32.mrf.mxu0
        %v537 = vadd.f32 %v424, %v536
        %538 = vmatmul.f32.gmra.mxu0 %v264
        %v539 = vpop.f32.mrf.mxu0
        %v540 = vadd.f32 %v427, %v539
        %541 = vmatmul.f32.gmra.mxu0 %v265
        %v542 = vpop.f32.mrf.mxu0
        %v543 = vadd.f32 %v430, %v542
        %544 = vmatmul.f32.gmra.mxu0 %v266
        %v545 = vpop.f32.mrf.mxu0
        %v546 = vadd.f32 %v433, %v545
        %547 = vmatmul.f32.gmra.mxu0 %v267
        %v548 = vpop.f32.mrf.mxu0
        %v549 = vadd.f32 %v436, %v548
        %550 = vmatmul.f32.gmra.mxu0 %v268
        %v551 = vpop.f32.mrf.mxu0
        %v552 = vadd.f32 %v439, %v551
        %553 = vmatmul.f32.gmra.mxu0 %v269
        %v554 = vpop.f32.mrf.mxu0
        %v555 = vadd.f32 %v442, %v554
        %556 = vmatmul.f32.gmra.mxu0 %v270
        %v557 = vpop.f32.mrf.mxu0
        %v558 = vadd.f32 %v445, %v557
        %559 = vmatmul.f32.gmra.mxu0 %v271
        %v560 = vpop.f32.mrf.mxu0
        %v561 = vadd.f32 %v448, %v560
        %562 = vdwg.mxu0
        %v563 = vld [vmem:[%s239 + $0x2] sm:$0xff]
        %v564 = vld [vmem:[%s239 + $0xa] sm:$0xff]
        %v565 = vld [vmem:[%s239 + $0x1a] sm:$0xff]
        %v566 = vld [vmem:[%s239 + $0x22] sm:$0xff]
        %v567 = vld [vmem:[%s239 + $0x32] sm:$0xff]
        %v568 = vld [vmem:[%s239 + $0x3a] sm:$0xff]
        %v569 = vld [vmem:[%s239 + $0x4a] sm:$0xff]
        %v570 = vld [vmem:[%s239 + $0x52] sm:$0xff]
        %v571 = vld [vmem:[%s239 + $0x62] sm:$0xff]
        %v572 = vld [vmem:[%s239 + $0x6a] sm:$0xff]
        %v573 = vld [vmem:[%s239 + $0x7a] sm:$0xff]
        %v574 = vld [vmem:[%s239 + $0x82] sm:$0xff]
        %v575 = vld [vmem:[%s239 + $0x92] sm:$0xff]
        %v576 = vld [vmem:[%s239 + $0x9a] sm:$0xff]
        %v577 = vld [vmem:[%s239 + $0xaa] sm:$0xff]
        %v578 = vld [vmem:[%s239 + $0xb2] sm:$0xff]
        %v579 = vld [vmem:[%s239 + $0xc2] sm:$0xff]
        %v580 = vld [vmem:[%s239 + $0xca] sm:$0xff]
        %v581 = vld [vmem:[%s239 + $0xda] sm:$0xff]
        %v582 = vld [vmem:[%s239 + $0xe2] sm:$0xff]
        %v583 = vld [vmem:[%s239 + $0xf2] sm:$0xff]
        %v584 = vld [vmem:[%s239 + $0xfa] sm:$0xff]
        %v585 = vld [vmem:[%s239 + $0x10a] sm:$0xff]
        %v586 = vld [vmem:[%s239 + $0x112] sm:$0xff]
        %v587 = vld [vmem:[%s239 + $0x122] sm:$0xff]
        %v588 = vld [vmem:[%s239 + $0x12a] sm:$0xff]
        %v589 = vld [vmem:[%s239 + $0x13a] sm:$0xff]
        %v590 = vld [vmem:[%s239 + $0x142] sm:$0xff]
        %v591 = vld [vmem:[%s239 + $0x152] sm:$0xff]
        %v592 = vld [vmem:[%s239 + $0x15a] sm:$0xff]
        %v593 = vld [vmem:[%s239 + $0x16a] sm:$0xff]
        %v594 = vld [vmem:[%s239 + $0x172] sm:$0xff]
        %s595 = scalar_lea.vmem %s1, 256
        %v596 = vld [vmem:[%s595] sm:$0xff]
        %v597 = vld [vmem:[%s595 + $0x8] sm:$0xff]
        %v598 = vld [vmem:[%s595 + $0x10] sm:$0xff]
        %v599 = vld [vmem:[%s595 + $0x18] sm:$0xff]
        %v600 = vld [vmem:[%s595 + $0x20] sm:$0xff]
        %v601 = vld [vmem:[%s595 + $0x28] sm:$0xff]
        %v602 = vld [vmem:[%s595 + $0x30] sm:$0xff]
        %v603 = vld [vmem:[%s595 + $0x38] sm:$0xff]
        %v604 = vld [vmem:[%s595 + $0x40] sm:$0xff]
        %v605 = vld [vmem:[%s595 + $0x48] sm:$0xff]
        %v606 = vld [vmem:[%s595 + $0x50] sm:$0xff]
        %v607 = vld [vmem:[%s595 + $0x58] sm:$0xff]
        %v608 = vld [vmem:[%s595 + $0x60] sm:$0xff]
        %v609 = vld [vmem:[%s595 + $0x68] sm:$0xff]
        %v610 = vld [vmem:[%s595 + $0x70] sm:$0xff]
        %v611 = vld [vmem:[%s595 + $0x78] sm:$0xff]
        %612 = vmatpush.msra.mxu0 %v611
        %613 = vmatpush.msra.mxu0 %v610
        %614 = vmatpush.msra.mxu0 %v609
        %615 = vmatpush.msra.mxu0 %v608
        %616 = vmatpush.msra.mxu0 %v607
        %617 = vmatpush.msra.mxu0 %v606
        %618 = vmatpush.msra.mxu0 %v605
        %619 = vmatpush.msra.mxu0 %v604
        %620 = vmatpush.msra.mxu0 %v603
        %621 = vmatpush.msra.mxu0 %v602
        %622 = vmatpush.msra.mxu0 %v601
        %623 = vmatpush.msra.mxu0 %v600
        %624 = vmatpush.msra.mxu0 %v599
        %625 = vmatpush.msra.mxu0 %v598
        %626 = vmatpush.msra.mxu0 %v597
        %627 = vmatpush.msra.mxu0 %v596
        %628 = vmatmul.f32.gmra.mxu0 %v563
        %v629 = vpop.f32.mrf.mxu0
        %v630 = vadd.f32 0.0, %v629
        %631 = vmatmul.f32.gmra.mxu0 %v564
        %v632 = vpop.f32.mrf.mxu0
        %v633 = vadd.f32 0.0, %v632
        %634 = vmatmul.f32.gmra.mxu0 %v565
        %v635 = vpop.f32.mrf.mxu0
        %v636 = vadd.f32 0.0, %v635
        %637 = vmatmul.f32.gmra.mxu0 %v566
        %v638 = vpop.f32.mrf.mxu0
        %v639 = vadd.f32 0.0, %v638
        %640 = vmatmul.f32.gmra.mxu0 %v567
        %v641 = vpop.f32.mrf.mxu0
        %v642 = vadd.f32 0.0, %v641
        %643 = vmatmul.f32.gmra.mxu0 %v568
        %v644 = vpop.f32.mrf.mxu0
        %v645 = vadd.f32 0.0, %v644
        %646 = vmatmul.f32.gmra.mxu0 %v569
        %v647 = vpop.f32.mrf.mxu0
        %v648 = vadd.f32 0.0, %v647
        %649 = vmatmul.f32.gmra.mxu0 %v570
        %v650 = vpop.f32.mrf.mxu0
        %v651 = vadd.f32 0.0, %v650
        %652 = vmatmul.f32.gmra.mxu0 %v571
        %v653 = vpop.f32.mrf.mxu0
        %v654 = vadd.f32 0.0, %v653
        %655 = vmatmul.f32.gmra.mxu0 %v572
        %v656 = vpop.f32.mrf.mxu0
        %v657 = vadd.f32 0.0, %v656
        %658 = vmatmul.f32.gmra.mxu0 %v573
        %v659 = vpop.f32.mrf.mxu0
        %v660 = vadd.f32 0.0, %v659
        %661 = vmatmul.f32.gmra.mxu0 %v574
        %v662 = vpop.f32.mrf.mxu0
        %v663 = vadd.f32 0.0, %v662
        %664 = vmatmul.f32.gmra.mxu0 %v575
        %v665 = vpop.f32.mrf.mxu0
        %v666 = vadd.f32 0.0, %v665
        %667 = vmatmul.f32.gmra.mxu0 %v576
        %v668 = vpop.f32.mrf.mxu0
        %v669 = vadd.f32 0.0, %v668
        %670 = vmatmul.f32.gmra.mxu0 %v577
        %v671 = vpop.f32.mrf.mxu0
        %v672 = vadd.f32 0.0, %v671
        %673 = vmatmul.f32.gmra.mxu0 %v578
        %v674 = vpop.f32.mrf.mxu0
        %v675 = vadd.f32 0.0, %v674
        %676 = vmatmul.f32.gmra.mxu0 %v579
        %v677 = vpop.f32.mrf.mxu0
        %v678 = vadd.f32 0.0, %v677
        %679 = vmatmul.f32.gmra.mxu0 %v580
        %v680 = vpop.f32.mrf.mxu0
        %v681 = vadd.f32 0.0, %v680
        %682 = vmatmul.f32.gmra.mxu0 %v581
        %v683 = vpop.f32.mrf.mxu0
        %v684 = vadd.f32 0.0, %v683
        %685 = vmatmul.f32.gmra.mxu0 %v582
        %v686 = vpop.f32.mrf.mxu0
        %v687 = vadd.f32 0.0, %v686
        %688 = vmatmul.f32.gmra.mxu0 %v583
        %v689 = vpop.f32.mrf.mxu0
        %v690 = vadd.f32 0.0, %v689
        %691 = vmatmul.f32.gmra.mxu0 %v584
        %v692 = vpop.f32.mrf.mxu0
        %v693 = vadd.f32 0.0, %v692
        %694 = vmatmul.f32.gmra.mxu0 %v585
        %v695 = vpop.f32.mrf.mxu0
        %v696 = vadd.f32 0.0, %v695
        %697 = vmatmul.f32.gmra.mxu0 %v586
        %v698 = vpop.f32.mrf.mxu0
        %v699 = vadd.f32 0.0, %v698
        %700 = vmatmul.f32.gmra.mxu0 %v587
        %v701 = vpop.f32.mrf.mxu0
        %v702 = vadd.f32 0.0, %v701
        %703 = vmatmul.f32.gmra.mxu0 %v588
        %v704 = vpop.f32.mrf.mxu0
        %v705 = vadd.f32 0.0, %v704
        %706 = vmatmul.f32.gmra.mxu0 %v589
        %v707 = vpop.f32.mrf.mxu0
        %v708 = vadd.f32 0.0, %v707
        %709 = vmatmul.f32.gmra.mxu0 %v590
        %v710 = vpop.f32.mrf.mxu0
        %v711 = vadd.f32 0.0, %v710
        %712 = vmatmul.f32.gmra.mxu0 %v591
        %v713 = vpop.f32.mrf.mxu0
        %v714 = vadd.f32 0.0, %v713
        %715 = vmatmul.f32.gmra.mxu0 %v592
        %v716 = vpop.f32.mrf.mxu0
        %v717 = vadd.f32 0.0, %v716
        %718 = vmatmul.f32.gmra.mxu0 %v593
        %v719 = vpop.f32.mrf.mxu0
        %v720 = vadd.f32 0.0, %v719
        %721 = vmatmul.f32.gmra.mxu0 %v594
        %v722 = vpop.f32.mrf.mxu0
        %v723 = vadd.f32 0.0, %v722
        %724 = vdwg.mxu0
        %v725 = vadd.f32 %v468, %v630
        %v726 = vadd.f32 %v471, %v633
        %v727 = vadd.f32 %v474, %v636
        %v728 = vadd.f32 %v477, %v639
        %v729 = vadd.f32 %v480, %v642
        %v730 = vadd.f32 %v483, %v645
        %v731 = vadd.f32 %v486, %v648
        %v732 = vadd.f32 %v489, %v651
        %v733 = vadd.f32 %v492, %v654
        %v734 = vadd.f32 %v495, %v657
        %v735 = vadd.f32 %v498, %v660
        %v736 = vadd.f32 %v501, %v663
        %v737 = vadd.f32 %v504, %v666
        %v738 = vadd.f32 %v507, %v669
        %v739 = vadd.f32 %v510, %v672
        %v740 = vadd.f32 %v513, %v675
        %v741 = vadd.f32 %v516, %v678
        %v742 = vadd.f32 %v519, %v681
        %v743 = vadd.f32 %v522, %v684
        %v744 = vadd.f32 %v525, %v687
        %v745 = vadd.f32 %v528, %v690
        %v746 = vadd.f32 %v531, %v693
        %v747 = vadd.f32 %v534, %v696
        %v748 = vadd.f32 %v537, %v699
        %v749 = vadd.f32 %v540, %v702
        %v750 = vadd.f32 %v543, %v705
        %v751 = vadd.f32 %v546, %v708
        %v752 = vadd.f32 %v549, %v711
        %v753 = vadd.f32 %v552, %v714
        %v754 = vadd.f32 %v555, %v717
        %v755 = vadd.f32 %v558, %v720
        %v756 = vadd.f32 %v561, %v723
        %s757 = scalar_lea.vmem %s239, 24
        %v758 = vld [vmem:[%s757] sm:$0xff]
        %v759 = vld [vmem:[%s757 + $0x8] sm:$0xff]
        %v760 = vld [vmem:[%s757 + $0x18] sm:$0xff]
        %v761 = vld [vmem:[%s757 + $0x20] sm:$0xff]
        %v762 = vld [vmem:[%s757 + $0x30] sm:$0xff]
        %v763 = vld [vmem:[%s757 + $0x38] sm:$0xff]
        %v764 = vld [vmem:[%s757 + $0x48] sm:$0xff]
        %v765 = vld [vmem:[%s757 + $0x50] sm:$0xff]
        %v766 = vld [vmem:[%s757 + $0x60] sm:$0xff]
        %v767 = vld [vmem:[%s757 + $0x68] sm:$0xff]
        %v768 = vld [vmem:[%s757 + $0x78] sm:$0xff]
        %v769 = vld [vmem:[%s757 + $0x80] sm:$0xff]
        %v770 = vld [vmem:[%s757 + $0x90] sm:$0xff]
        %v771 = vld [vmem:[%s757 + $0x98] sm:$0xff]
        %v772 = vld [vmem:[%s757 + $0xa8] sm:$0xff]
        %v773 = vld [vmem:[%s757 + $0xb0] sm:$0xff]
        %v774 = vld [vmem:[%s757 + $0xc0] sm:$0xff]
        %v775 = vld [vmem:[%s757 + $0xc8] sm:$0xff]
        %v776 = vld [vmem:[%s757 + $0xd8] sm:$0xff]
        %v777 = vld [vmem:[%s757 + $0xe0] sm:$0xff]
        %v778 = vld [vmem:[%s757 + $0xf0] sm:$0xff]
        %v779 = vld [vmem:[%s757 + $0xf8] sm:$0xff]
        %v780 = vld [vmem:[%s757 + $0x108] sm:$0xff]
        %v781 = vld [vmem:[%s757 + $0x110] sm:$0xff]
        %v782 = vld [vmem:[%s757 + $0x120] sm:$0xff]
        %v783 = vld [vmem:[%s757 + $0x128] sm:$0xff]
        %v784 = vld [vmem:[%s757 + $0x138] sm:$0xff]
        %v785 = vld [vmem:[%s757 + $0x140] sm:$0xff]
        %v786 = vld [vmem:[%s757 + $0x150] sm:$0xff]
        %v787 = vld [vmem:[%s757 + $0x158] sm:$0xff]
        %v788 = vld [vmem:[%s757 + $0x168] sm:$0xff]
        %v789 = vld [vmem:[%s757 + $0x170] sm:$0xff]
        %s790 = scalar_lea.vmem %s1, 384
        %v791 = vld [vmem:[%s790] sm:$0xff]
        %v792 = vld [vmem:[%s790 + $0x8] sm:$0xff]
        %v793 = vld [vmem:[%s790 + $0x10] sm:$0xff]
        %v794 = vld [vmem:[%s790 + $0x18] sm:$0xff]
        %v795 = vld [vmem:[%s790 + $0x20] sm:$0xff]
        %v796 = vld [vmem:[%s790 + $0x28] sm:$0xff]
        %v797 = vld [vmem:[%s790 + $0x30] sm:$0xff]
        %v798 = vld [vmem:[%s790 + $0x38] sm:$0xff]
        %v799 = vld [vmem:[%s790 + $0x40] sm:$0xff]
        %v800 = vld [vmem:[%s790 + $0x48] sm:$0xff]
        %v801 = vld [vmem:[%s790 + $0x50] sm:$0xff]
        %v802 = vld [vmem:[%s790 + $0x58] sm:$0xff]
        %v803 = vld [vmem:[%s790 + $0x60] sm:$0xff]
        %v804 = vld [vmem:[%s790 + $0x68] sm:$0xff]
        %v805 = vld [vmem:[%s790 + $0x70] sm:$0xff]
        %v806 = vld [vmem:[%s790 + $0x78] sm:$0xff]
        %807 = vmatpush.msra.mxu0 %v806
        %808 = vmatpush.msra.mxu0 %v805
        %809 = vmatpush.msra.mxu0 %v804
        %810 = vmatpush.msra.mxu0 %v803
        %811 = vmatpush.msra.mxu0 %v802
        %812 = vmatpush.msra.mxu0 %v801
        %813 = vmatpush.msra.mxu0 %v800
        %814 = vmatpush.msra.mxu0 %v799
        %815 = vmatpush.msra.mxu0 %v798
        %816 = vmatpush.msra.mxu0 %v797
        %817 = vmatpush.msra.mxu0 %v796
        %818 = vmatpush.msra.mxu0 %v795
        %819 = vmatpush.msra.mxu0 %v794
        %820 = vmatpush.msra.mxu0 %v793
        %821 = vmatpush.msra.mxu0 %v792
        %822 = vmatpush.msra.mxu0 %v791
        %823 = vmatmul.f32.gmra.mxu0 %v758
        %v824 = vpop.f32.mrf.mxu0
        %v825 = vadd.f32 0.0, %v824
        %826 = vmatmul.f32.gmra.mxu0 %v759
        %v827 = vpop.f32.mrf.mxu0
        %v828 = vadd.f32 0.0, %v827
        %829 = vmatmul.f32.gmra.mxu0 %v760
        %v830 = vpop.f32.mrf.mxu0
        %v831 = vadd.f32 0.0, %v830
        %832 = vmatmul.f32.gmra.mxu0 %v761
        %v833 = vpop.f32.mrf.mxu0
        %v834 = vadd.f32 0.0, %v833
        %835 = vmatmul.f32.gmra.mxu0 %v762
        %v836 = vpop.f32.mrf.mxu0
        %v837 = vadd.f32 0.0, %v836
        %838 = vmatmul.f32.gmra.mxu0 %v763
        %v839 = vpop.f32.mrf.mxu0
        %v840 = vadd.f32 0.0, %v839
        %841 = vmatmul.f32.gmra.mxu0 %v764
        %v842 = vpop.f32.mrf.mxu0
        %v843 = vadd.f32 0.0, %v842
        %844 = vmatmul.f32.gmra.mxu0 %v765
        %v845 = vpop.f32.mrf.mxu0
        %v846 = vadd.f32 0.0, %v845
        %847 = vmatmul.f32.gmra.mxu0 %v766
        %v848 = vpop.f32.mrf.mxu0
        %v849 = vadd.f32 0.0, %v848
        %850 = vmatmul.f32.gmra.mxu0 %v767
        %v851 = vpop.f32.mrf.mxu0
        %v852 = vadd.f32 0.0, %v851
        %853 = vmatmul.f32.gmra.mxu0 %v768
        %v854 = vpop.f32.mrf.mxu0
        %v855 = vadd.f32 0.0, %v854
        %856 = vmatmul.f32.gmra.mxu0 %v769
        %v857 = vpop.f32.mrf.mxu0
        %v858 = vadd.f32 0.0, %v857
        %859 = vmatmul.f32.gmra.mxu0 %v770
        %v860 = vpop.f32.mrf.mxu0
        %v861 = vadd.f32 0.0, %v860
        %862 = vmatmul.f32.gmra.mxu0 %v771
        %v863 = vpop.f32.mrf.mxu0
        %v864 = vadd.f32 0.0, %v863
        %865 = vmatmul.f32.gmra.mxu0 %v772
        %v866 = vpop.f32.mrf.mxu0
        %v867 = vadd.f32 0.0, %v866
        %868 = vmatmul.f32.gmra.mxu0 %v773
        %v869 = vpop.f32.mrf.mxu0
        %v870 = vadd.f32 0.0, %v869
        %871 = vmatmul.f32.gmra.mxu0 %v774
        %v872 = vpop.f32.mrf.mxu0
        %v873 = vadd.f32 0.0, %v872
        %874 = vmatmul.f32.gmra.mxu0 %v775
        %v875 = vpop.f32.mrf.mxu0
        %v876 = vadd.f32 0.0, %v875
        %877 = vmatmul.f32.gmra.mxu0 %v776
        %v878 = vpop.f32.mrf.mxu0
        %v879 = vadd.f32 0.0, %v878
        %880 = vmatmul.f32.gmra.mxu0 %v777
        %v881 = vpop.f32.mrf.mxu0
        %v882 = vadd.f32 0.0, %v881
        %883 = vmatmul.f32.gmra.mxu0 %v778
        %v884 = vpop.f32.mrf.mxu0
        %v885 = vadd.f32 0.0, %v884
        %886 = vmatmul.f32.gmra.mxu0 %v779
        %v887 = vpop.f32.mrf.mxu0
        %v888 = vadd.f32 0.0, %v887
        %889 = vmatmul.f32.gmra.mxu0 %v780
        %v890 = vpop.f32.mrf.mxu0
        %v891 = vadd.f32 0.0, %v890
        %892 = vmatmul.f32.gmra.mxu0 %v781
        %v893 = vpop.f32.mrf.mxu0
        %v894 = vadd.f32 0.0, %v893
        %895 = vmatmul.f32.gmra.mxu0 %v782
        %v896 = vpop.f32.mrf.mxu0
        %v897 = vadd.f32 0.0, %v896
        %898 = vmatmul.f32.gmra.mxu0 %v783
        %v899 = vpop.f32.mrf.mxu0
        %v900 = vadd.f32 0.0, %v899
        %901 = vmatmul.f32.gmra.mxu0 %v784
        %v902 = vpop.f32.mrf.mxu0
        %v903 = vadd.f32 0.0, %v902
        %904 = vmatmul.f32.gmra.mxu0 %v785
        %v905 = vpop.f32.mrf.mxu0
        %v906 = vadd.f32 0.0, %v905
        %907 = vmatmul.f32.gmra.mxu0 %v786
        %v908 = vpop.f32.mrf.mxu0
        %v909 = vadd.f32 0.0, %v908
        %910 = vmatmul.f32.gmra.mxu0 %v787
        %v911 = vpop.f32.mrf.mxu0
        %v912 = vadd.f32 0.0, %v911
        %913 = vmatmul.f32.gmra.mxu0 %v788
        %v914 = vpop.f32.mrf.mxu0
        %v915 = vadd.f32 0.0, %v914
        %916 = vmatmul.f32.gmra.mxu0 %v789
        %v917 = vpop.f32.mrf.mxu0
        %v918 = vadd.f32 0.0, %v917
        %919 = vdwg.mxu0
        %v920 = vadd.f32 %v725, %v825
        %v921 = vadd.f32 %v726, %v828
        %v922 = vadd.f32 %v727, %v831
        %v923 = vadd.f32 %v728, %v834
        %v924 = vadd.f32 %v729, %v837
        %v925 = vadd.f32 %v730, %v840
        %v926 = vadd.f32 %v731, %v843
        %v927 = vadd.f32 %v732, %v846
        %v928 = vadd.f32 %v733, %v849
        %v929 = vadd.f32 %v734, %v852
        %v930 = vadd.f32 %v735, %v855
        %v931 = vadd.f32 %v736, %v858
        %v932 = vadd.f32 %v737, %v861
        %v933 = vadd.f32 %v738, %v864
        %v934 = vadd.f32 %v739, %v867
        %v935 = vadd.f32 %v740, %v870
        %v936 = vadd.f32 %v741, %v873
        %v937 = vadd.f32 %v742, %v876
        %v938 = vadd.f32 %v743, %v879
        %v939 = vadd.f32 %v744, %v882
        %v940 = vadd.f32 %v745, %v885
        %v941 = vadd.f32 %v746, %v888
        %v942 = vadd.f32 %v747, %v891
        %v943 = vadd.f32 %v748, %v894
        %v944 = vadd.f32 %v749, %v897
        %v945 = vadd.f32 %v750, %v900
        %v946 = vadd.f32 %v751, %v903
        %v947 = vadd.f32 %v752, %v906
        %v948 = vadd.f32 %v753, %v909
        %v949 = vadd.f32 %v754, %v912
        %v950 = vadd.f32 %v755, %v915
        %v951 = vadd.f32 %v756, %v918
        %v952 = vld [vmem:[%s757 + $0x1] sm:$0xff]
        %v953 = vld [vmem:[%s757 + $0x9] sm:$0xff]
        %v954 = vld [vmem:[%s757 + $0x19] sm:$0xff]
        %v955 = vld [vmem:[%s757 + $0x21] sm:$0xff]
        %v956 = vld [vmem:[%s757 + $0x31] sm:$0xff]
        %v957 = vld [vmem:[%s757 + $0x39] sm:$0xff]
        %v958 = vld [vmem:[%s757 + $0x49] sm:$0xff]
        %v959 = vld [vmem:[%s757 + $0x51] sm:$0xff]
        %v960 = vld [vmem:[%s757 + $0x61] sm:$0xff]
        %v961 = vld [vmem:[%s757 + $0x69] sm:$0xff]
        %v962 = vld [vmem:[%s757 + $0x79] sm:$0xff]
        %v963 = vld [vmem:[%s757 + $0x81] sm:$0xff]
        %v964 = vld [vmem:[%s757 + $0x91] sm:$0xff]
        %v965 = vld [vmem:[%s757 + $0x99] sm:$0xff]
        %v966 = vld [vmem:[%s757 + $0xa9] sm:$0xff]
        %v967 = vld [vmem:[%s757 + $0xb1] sm:$0xff]
        %v968 = vld [vmem:[%s757 + $0xc1] sm:$0xff]
        %v969 = vld [vmem:[%s757 + $0xc9] sm:$0xff]
        %v970 = vld [vmem:[%s757 + $0xd9] sm:$0xff]
        %v971 = vld [vmem:[%s757 + $0xe1] sm:$0xff]
        %v972 = vld [vmem:[%s757 + $0xf1] sm:$0xff]
        %v973 = vld [vmem:[%s757 + $0xf9] sm:$0xff]
        %v974 = vld [vmem:[%s757 + $0x109] sm:$0xff]
        %v975 = vld [vmem:[%s757 + $0x111] sm:$0xff]
        %v976 = vld [vmem:[%s757 + $0x121] sm:$0xff]
        %v977 = vld [vmem:[%s757 + $0x129] sm:$0xff]
        %v978 = vld [vmem:[%s757 + $0x139] sm:$0xff]
        %v979 = vld [vmem:[%s757 + $0x141] sm:$0xff]
        %v980 = vld [vmem:[%s757 + $0x151] sm:$0xff]
        %v981 = vld [vmem:[%s757 + $0x159] sm:$0xff]
        %v982 = vld [vmem:[%s757 + $0x169] sm:$0xff]
        %v983 = vld [vmem:[%s757 + $0x171] sm:$0xff]
        %s984 = scalar_lea.vmem %s1, 512
        %v985 = vld [vmem:[%s984] sm:$0xff]
        %v986 = vld [vmem:[%s984 + $0x8] sm:$0xff]
        %v987 = vld [vmem:[%s984 + $0x10] sm:$0xff]
        %v988 = vld [vmem:[%s984 + $0x18] sm:$0xff]
        %v989 = vld [vmem:[%s984 + $0x20] sm:$0xff]
        %v990 = vld [vmem:[%s984 + $0x28] sm:$0xff]
        %v991 = vld [vmem:[%s984 + $0x30] sm:$0xff]
        %v992 = vld [vmem:[%s984 + $0x38] sm:$0xff]
        %v993 = vld [vmem:[%s984 + $0x40] sm:$0xff]
        %v994 = vld [vmem:[%s984 + $0x48] sm:$0xff]
        %v995 = vld [vmem:[%s984 + $0x50] sm:$0xff]
        %v996 = vld [vmem:[%s984 + $0x58] sm:$0xff]
        %v997 = vld [vmem:[%s984 + $0x60] sm:$0xff]
        %v998 = vld [vmem:[%s984 + $0x68] sm:$0xff]
        %v999 = vld [vmem:[%s984 + $0x70] sm:$0xff]
        %v1000 = vld [vmem:[%s984 + $0x78] sm:$0xff]
        %1001 = vmatpush.msra.mxu0 %v1000
        %1002 = vmatpush.msra.mxu0 %v999
        %1003 = vmatpush.msra.mxu0 %v998
        %1004 = vmatpush.msra.mxu0 %v997
        %1005 = vmatpush.msra.mxu0 %v996
        %1006 = vmatpush.msra.mxu0 %v995
        %1007 = vmatpush.msra.mxu0 %v994
        %1008 = vmatpush.msra.mxu0 %v993
        %1009 = vmatpush.msra.mxu0 %v992
        %1010 = vmatpush.msra.mxu0 %v991
        %1011 = vmatpush.msra.mxu0 %v990
        %1012 = vmatpush.msra.mxu0 %v989
        %1013 = vmatpush.msra.mxu0 %v988
        %1014 = vmatpush.msra.mxu0 %v987
        %1015 = vmatpush.msra.mxu0 %v986
        %1016 = vmatpush.msra.mxu0 %v985
        %1017 = vmatmul.f32.gmra.mxu0 %v952
        %v1018 = vpop.f32.mrf.mxu0
        %v1019 = vadd.f32 0.0, %v1018
        %1020 = vmatmul.f32.gmra.mxu0 %v953
        %v1021 = vpop.f32.mrf.mxu0
        %v1022 = vadd.f32 0.0, %v1021
        %1023 = vmatmul.f32.gmra.mxu0 %v954
        %v1024 = vpop.f32.mrf.mxu0
        %v1025 = vadd.f32 0.0, %v1024
        %1026 = vmatmul.f32.gmra.mxu0 %v955
        %v1027 = vpop.f32.mrf.mxu0
        %v1028 = vadd.f32 0.0, %v1027
        %1029 = vmatmul.f32.gmra.mxu0 %v956
        %v1030 = vpop.f32.mrf.mxu0
        %v1031 = vadd.f32 0.0, %v1030
        %1032 = vmatmul.f32.gmra.mxu0 %v957
        %v1033 = vpop.f32.mrf.mxu0
        %v1034 = vadd.f32 0.0, %v1033
        %1035 = vmatmul.f32.gmra.mxu0 %v958
        %v1036 = vpop.f32.mrf.mxu0
        %v1037 = vadd.f32 0.0, %v1036
        %1038 = vmatmul.f32.gmra.mxu0 %v959
        %v1039 = vpop.f32.mrf.mxu0
        %v1040 = vadd.f32 0.0, %v1039
        %1041 = vmatmul.f32.gmra.mxu0 %v960
        %v1042 = vpop.f32.mrf.mxu0
        %v1043 = vadd.f32 0.0, %v1042
        %1044 = vmatmul.f32.gmra.mxu0 %v961
        %v1045 = vpop.f32.mrf.mxu0
        %v1046 = vadd.f32 0.0, %v1045
        %1047 = vmatmul.f32.gmra.mxu0 %v962
        %v1048 = vpop.f32.mrf.mxu0
        %v1049 = vadd.f32 0.0, %v1048
        %1050 = vmatmul.f32.gmra.mxu0 %v963
        %v1051 = vpop.f32.mrf.mxu0
        %v1052 = vadd.f32 0.0, %v1051
        %1053 = vmatmul.f32.gmra.mxu0 %v964
        %v1054 = vpop.f32.mrf.mxu0
        %v1055 = vadd.f32 0.0, %v1054
        %1056 = vmatmul.f32.gmra.mxu0 %v965
        %v1057 = vpop.f32.mrf.mxu0
        %v1058 = vadd.f32 0.0, %v1057
        %1059 = vmatmul.f32.gmra.mxu0 %v966
        %v1060 = vpop.f32.mrf.mxu0
        %v1061 = vadd.f32 0.0, %v1060
        %1062 = vmatmul.f32.gmra.mxu0 %v967
        %v1063 = vpop.f32.mrf.mxu0
        %v1064 = vadd.f32 0.0, %v1063
        %1065 = vmatmul.f32.gmra.mxu0 %v968
        %v1066 = vpop.f32.mrf.mxu0
        %v1067 = vadd.f32 0.0, %v1066
        %1068 = vmatmul.f32.gmra.mxu0 %v969
        %v1069 = vpop.f32.mrf.mxu0
        %v1070 = vadd.f32 0.0, %v1069
        %1071 = vmatmul.f32.gmra.mxu0 %v970
        %v1072 = vpop.f32.mrf.mxu0
        %v1073 = vadd.f32 0.0, %v1072
        %1074 = vmatmul.f32.gmra.mxu0 %v971
        %v1075 = vpop.f32.mrf.mxu0
        %v1076 = vadd.f32 0.0, %v1075
        %1077 = vmatmul.f32.gmra.mxu0 %v972
        %v1078 = vpop.f32.mrf.mxu0
        %v1079 = vadd.f32 0.0, %v1078
        %1080 = vmatmul.f32.gmra.mxu0 %v973
        %v1081 = vpop.f32.mrf.mxu0
        %v1082 = vadd.f32 0.0, %v1081
        %1083 = vmatmul.f32.gmra.mxu0 %v974
        %v1084 = vpop.f32.mrf.mxu0
        %v1085 = vadd.f32 0.0, %v1084
        %1086 = vmatmul.f32.gmra.mxu0 %v975
        %v1087 = vpop.f32.mrf.mxu0
        %v1088 = vadd.f32 0.0, %v1087
        %1089 = vmatmul.f32.gmra.mxu0 %v976
        %v1090 = vpop.f32.mrf.mxu0
        %v1091 = vadd.f32 0.0, %v1090
        %1092 = vmatmul.f32.gmra.mxu0 %v977
        %v1093 = vpop.f32.mrf.mxu0
        %v1094 = vadd.f32 0.0, %v1093
        %1095 = vmatmul.f32.gmra.mxu0 %v978
        %v1096 = vpop.f32.mrf.mxu0
        %v1097 = vadd.f32 0.0, %v1096
        %1098 = vmatmul.f32.gmra.mxu0 %v979
        %v1099 = vpop.f32.mrf.mxu0
        %v1100 = vadd.f32 0.0, %v1099
        %1101 = vmatmul.f32.gmra.mxu0 %v980
        %v1102 = vpop.f32.mrf.mxu0
        %v1103 = vadd.f32 0.0, %v1102
        %1104 = vmatmul.f32.gmra.mxu0 %v981
        %v1105 = vpop.f32.mrf.mxu0
        %v1106 = vadd.f32 0.0, %v1105
        %1107 = vmatmul.f32.gmra.mxu0 %v982
        %v1108 = vpop.f32.mrf.mxu0
        %v1109 = vadd.f32 0.0, %v1108
        %1110 = vmatmul.f32.gmra.mxu0 %v983
        %v1111 = vpop.f32.mrf.mxu0
        %v1112 = vadd.f32 0.0, %v1111
        %1113 = vdwg.mxu0
        %v1114 = vadd.f32 %v920, %v1019
        %v1115 = vadd.f32 %v921, %v1022
        %v1116 = vadd.f32 %v922, %v1025
        %v1117 = vadd.f32 %v923, %v1028
        %v1118 = vadd.f32 %v924, %v1031
        %v1119 = vadd.f32 %v925, %v1034
        %v1120 = vadd.f32 %v926, %v1037
        %v1121 = vadd.f32 %v927, %v1040
        %v1122 = vadd.f32 %v928, %v1043
        %v1123 = vadd.f32 %v929, %v1046
        %v1124 = vadd.f32 %v930, %v1049
        %v1125 = vadd.f32 %v931, %v1052
        %v1126 = vadd.f32 %v932, %v1055
        %v1127 = vadd.f32 %v933, %v1058
        %v1128 = vadd.f32 %v934, %v1061
        %v1129 = vadd.f32 %v935, %v1064
        %v1130 = vadd.f32 %v936, %v1067
        %v1131 = vadd.f32 %v937, %v1070
        %v1132 = vadd.f32 %v938, %v1073
        %v1133 = vadd.f32 %v939, %v1076
        %v1134 = vadd.f32 %v940, %v1079
        %v1135 = vadd.f32 %v941, %v1082
        %v1136 = vadd.f32 %v942, %v1085
        %v1137 = vadd.f32 %v943, %v1088
        %v1138 = vadd.f32 %v944, %v1091
        %v1139 = vadd.f32 %v945, %v1094
        %v1140 = vadd.f32 %v946, %v1097
        %v1141 = vadd.f32 %v947, %v1100
        %v1142 = vadd.f32 %v948, %v1103
        %v1143 = vadd.f32 %v949, %v1106
        %v1144 = vadd.f32 %v950, %v1109
        %v1145 = vadd.f32 %v951, %v1112
        %v1146 = vld [vmem:[%s757 + $0x2] sm:$0xff]
        %v1147 = vld [vmem:[%s757 + $0xa] sm:$0xff]
        %v1148 = vld [vmem:[%s757 + $0x1a] sm:$0xff]
        %v1149 = vld [vmem:[%s757 + $0x22] sm:$0xff]
        %v1150 = vld [vmem:[%s757 + $0x32] sm:$0xff]
        %v1151 = vld [vmem:[%s757 + $0x3a] sm:$0xff]
        %v1152 = vld [vmem:[%s757 + $0x4a] sm:$0xff]
        %v1153 = vld [vmem:[%s757 + $0x52] sm:$0xff]
        %v1154 = vld [vmem:[%s757 + $0x62] sm:$0xff]
        %v1155 = vld [vmem:[%s757 + $0x6a] sm:$0xff]
        %v1156 = vld [vmem:[%s757 + $0x7a] sm:$0xff]
        %v1157 = vld [vmem:[%s757 + $0x82] sm:$0xff]
        %v1158 = vld [vmem:[%s757 + $0x92] sm:$0xff]
        %v1159 = vld [vmem:[%s757 + $0x9a] sm:$0xff]
        %v1160 = vld [vmem:[%s757 + $0xaa] sm:$0xff]
        %v1161 = vld [vmem:[%s757 + $0xb2] sm:$0xff]
        %v1162 = vld [vmem:[%s757 + $0xc2] sm:$0xff]
        %v1163 = vld [vmem:[%s757 + $0xca] sm:$0xff]
        %v1164 = vld [vmem:[%s757 + $0xda] sm:$0xff]
        %v1165 = vld [vmem:[%s757 + $0xe2] sm:$0xff]
        %v1166 = vld [vmem:[%s757 + $0xf2] sm:$0xff]
        %v1167 = vld [vmem:[%s757 + $0xfa] sm:$0xff]
        %v1168 = vld [vmem:[%s757 + $0x10a] sm:$0xff]
        %v1169 = vld [vmem:[%s757 + $0x112] sm:$0xff]
        %v1170 = vld [vmem:[%s757 + $0x122] sm:$0xff]
        %v1171 = vld [vmem:[%s757 + $0x12a] sm:$0xff]
        %v1172 = vld [vmem:[%s757 + $0x13a] sm:$0xff]
        %v1173 = vld [vmem:[%s757 + $0x142] sm:$0xff]
        %v1174 = vld [vmem:[%s757 + $0x152] sm:$0xff]
        %v1175 = vld [vmem:[%s757 + $0x15a] sm:$0xff]
        %v1176 = vld [vmem:[%s757 + $0x16a] sm:$0xff]
        %v1177 = vld [vmem:[%s757 + $0x172] sm:$0xff]
        %s1178 = scalar_lea.vmem %s1, 640
        %v1179 = vld [vmem:[%s1178] sm:$0xff]
        %v1180 = vld [vmem:[%s1178 + $0x8] sm:$0xff]
        %v1181 = vld [vmem:[%s1178 + $0x10] sm:$0xff]
        %v1182 = vld [vmem:[%s1178 + $0x18] sm:$0xff]
        %v1183 = vld [vmem:[%s1178 + $0x20] sm:$0xff]
        %v1184 = vld [vmem:[%s1178 + $0x28] sm:$0xff]
        %v1185 = vld [vmem:[%s1178 + $0x30] sm:$0xff]
        %v1186 = vld [vmem:[%s1178 + $0x38] sm:$0xff]
        %v1187 = vld [vmem:[%s1178 + $0x40] sm:$0xff]
        %v1188 = vld [vmem:[%s1178 + $0x48] sm:$0xff]
        %v1189 = vld [vmem:[%s1178 + $0x50] sm:$0xff]
        %v1190 = vld [vmem:[%s1178 + $0x58] sm:$0xff]
        %v1191 = vld [vmem:[%s1178 + $0x60] sm:$0xff]
        %v1192 = vld [vmem:[%s1178 + $0x68] sm:$0xff]
        %v1193 = vld [vmem:[%s1178 + $0x70] sm:$0xff]
        %v1194 = vld [vmem:[%s1178 + $0x78] sm:$0xff]
        %1195 = vmatpush.msra.mxu0 %v1194
        %1196 = vmatpush.msra.mxu0 %v1193
        %1197 = vmatpush.msra.mxu0 %v1192
        %1198 = vmatpush.msra.mxu0 %v1191
        %1199 = vmatpush.msra.mxu0 %v1190
        %1200 = vmatpush.msra.mxu0 %v1189
        %1201 = vmatpush.msra.mxu0 %v1188
        %1202 = vmatpush.msra.mxu0 %v1187
        %1203 = vmatpush.msra.mxu0 %v1186
        %1204 = vmatpush.msra.mxu0 %v1185
        %1205 = vmatpush.msra.mxu0 %v1184
        %1206 = vmatpush.msra.mxu0 %v1183
        %1207 = vmatpush.msra.mxu0 %v1182
        %1208 = vmatpush.msra.mxu0 %v1181
        %1209 = vmatpush.msra.mxu0 %v1180
        %1210 = vmatpush.msra.mxu0 %v1179
        %1211 = vmatmul.f32.gmra.mxu0 %v1146
        %v1212 = vpop.f32.mrf.mxu0
        %v1213 = vadd.f32 0.0, %v1212
        %1214 = vmatmul.f32.gmra.mxu0 %v1147
        %v1215 = vpop.f32.mrf.mxu0
        %v1216 = vadd.f32 0.0, %v1215
        %1217 = vmatmul.f32.gmra.mxu0 %v1148
        %v1218 = vpop.f32.mrf.mxu0
        %v1219 = vadd.f32 0.0, %v1218
        %1220 = vmatmul.f32.gmra.mxu0 %v1149
        %v1221 = vpop.f32.mrf.mxu0
        %v1222 = vadd.f32 0.0, %v1221
        %1223 = vmatmul.f32.gmra.mxu0 %v1150
        %v1224 = vpop.f32.mrf.mxu0
        %v1225 = vadd.f32 0.0, %v1224
        %1226 = vmatmul.f32.gmra.mxu0 %v1151
        %v1227 = vpop.f32.mrf.mxu0
        %v1228 = vadd.f32 0.0, %v1227
        %1229 = vmatmul.f32.gmra.mxu0 %v1152
        %v1230 = vpop.f32.mrf.mxu0
        %v1231 = vadd.f32 0.0, %v1230
        %1232 = vmatmul.f32.gmra.mxu0 %v1153
        %v1233 = vpop.f32.mrf.mxu0
        %v1234 = vadd.f32 0.0, %v1233
        %1235 = vmatmul.f32.gmra.mxu0 %v1154
        %v1236 = vpop.f32.mrf.mxu0
        %v1237 = vadd.f32 0.0, %v1236
        %1238 = vmatmul.f32.gmra.mxu0 %v1155
        %v1239 = vpop.f32.mrf.mxu0
        %v1240 = vadd.f32 0.0, %v1239
        %1241 = vmatmul.f32.gmra.mxu0 %v1156
        %v1242 = vpop.f32.mrf.mxu0
        %v1243 = vadd.f32 0.0, %v1242
        %1244 = vmatmul.f32.gmra.mxu0 %v1157
        %v1245 = vpop.f32.mrf.mxu0
        %v1246 = vadd.f32 0.0, %v1245
        %1247 = vmatmul.f32.gmra.mxu0 %v1158
        %v1248 = vpop.f32.mrf.mxu0
        %v1249 = vadd.f32 0.0, %v1248
        %1250 = vmatmul.f32.gmra.mxu0 %v1159
        %v1251 = vpop.f32.mrf.mxu0
        %v1252 = vadd.f32 0.0, %v1251
        %1253 = vmatmul.f32.gmra.mxu0 %v1160
        %v1254 = vpop.f32.mrf.mxu0
        %v1255 = vadd.f32 0.0, %v1254
        %1256 = vmatmul.f32.gmra.mxu0 %v1161
        %v1257 = vpop.f32.mrf.mxu0
        %v1258 = vadd.f32 0.0, %v1257
        %1259 = vmatmul.f32.gmra.mxu0 %v1162
        %v1260 = vpop.f32.mrf.mxu0
        %v1261 = vadd.f32 0.0, %v1260
        %1262 = vmatmul.f32.gmra.mxu0 %v1163
        %v1263 = vpop.f32.mrf.mxu0
        %v1264 = vadd.f32 0.0, %v1263
        %1265 = vmatmul.f32.gmra.mxu0 %v1164
        %v1266 = vpop.f32.mrf.mxu0
        %v1267 = vadd.f32 0.0, %v1266
        %1268 = vmatmul.f32.gmra.mxu0 %v1165
        %v1269 = vpop.f32.mrf.mxu0
        %v1270 = vadd.f32 0.0, %v1269
        %1271 = vmatmul.f32.gmra.mxu0 %v1166
        %v1272 = vpop.f32.mrf.mxu0
        %v1273 = vadd.f32 0.0, %v1272
        %1274 = vmatmul.f32.gmra.mxu0 %v1167
        %v1275 = vpop.f32.mrf.mxu0
        %v1276 = vadd.f32 0.0, %v1275
        %1277 = vmatmul.f32.gmra.mxu0 %v1168
        %v1278 = vpop.f32.mrf.mxu0
        %v1279 = vadd.f32 0.0, %v1278
        %1280 = vmatmul.f32.gmra.mxu0 %v1169
        %v1281 = vpop.f32.mrf.mxu0
        %v1282 = vadd.f32 0.0, %v1281
        %1283 = vmatmul.f32.gmra.mxu0 %v1170
        %v1284 = vpop.f32.mrf.mxu0
        %v1285 = vadd.f32 0.0, %v1284
        %1286 = vmatmul.f32.gmra.mxu0 %v1171
        %v1287 = vpop.f32.mrf.mxu0
        %v1288 = vadd.f32 0.0, %v1287
        %1289 = vmatmul.f32.gmra.mxu0 %v1172
        %v1290 = vpop.f32.mrf.mxu0
        %v1291 = vadd.f32 0.0, %v1290
        %1292 = vmatmul.f32.gmra.mxu0 %v1173
        %v1293 = vpop.f32.mrf.mxu0
        %v1294 = vadd.f32 0.0, %v1293
        %1295 = vmatmul.f32.gmra.mxu0 %v1174
        %v1296 = vpop.f32.mrf.mxu0
        %v1297 = vadd.f32 0.0, %v1296
        %1298 = vmatmul.f32.gmra.mxu0 %v1175
        %v1299 = vpop.f32.mrf.mxu0
        %v1300 = vadd.f32 0.0, %v1299
        %1301 = vmatmul.f32.gmra.mxu0 %v1176
        %v1302 = vpop.f32.mrf.mxu0
        %v1303 = vadd.f32 0.0, %v1302
        %1304 = vmatmul.f32.gmra.mxu0 %v1177
        %v1305 = vpop.f32.mrf.mxu0
        %v1306 = vadd.f32 0.0, %v1305
        %1307 = vdwg.mxu0
        %v1308 = vadd.f32 %v1114, %v1213
        %v1309 = vadd.f32 %v1115, %v1216
        %v1310 = vadd.f32 %v1116, %v1219
        %v1311 = vadd.f32 %v1117, %v1222
        %v1312 = vadd.f32 %v1118, %v1225
        %v1313 = vadd.f32 %v1119, %v1228
        %v1314 = vadd.f32 %v1120, %v1231
        %v1315 = vadd.f32 %v1121, %v1234
        %v1316 = vadd.f32 %v1122, %v1237
        %v1317 = vadd.f32 %v1123, %v1240
        %v1318 = vadd.f32 %v1124, %v1243
        %v1319 = vadd.f32 %v1125, %v1246
        %v1320 = vadd.f32 %v1126, %v1249
        %v1321 = vadd.f32 %v1127, %v1252
        %v1322 = vadd.f32 %v1128, %v1255
        %v1323 = vadd.f32 %v1129, %v1258
        %v1324 = vadd.f32 %v1130, %v1261
        %v1325 = vadd.f32 %v1131, %v1264
        %v1326 = vadd.f32 %v1132, %v1267
        %v1327 = vadd.f32 %v1133, %v1270
        %v1328 = vadd.f32 %v1134, %v1273
        %v1329 = vadd.f32 %v1135, %v1276
        %v1330 = vadd.f32 %v1136, %v1279
        %v1331 = vadd.f32 %v1137, %v1282
        %v1332 = vadd.f32 %v1138, %v1285
        %v1333 = vadd.f32 %v1139, %v1288
        %v1334 = vadd.f32 %v1140, %v1291
        %v1335 = vadd.f32 %v1141, %v1294
        %v1336 = vadd.f32 %v1142, %v1297
        %v1337 = vadd.f32 %v1143, %v1300
        %v1338 = vadd.f32 %v1144, %v1303
        %v1339 = vadd.f32 %v1145, %v1306
        %s1340 = scalar_lea.vmem %s239, 48
        %v1341 = vld [vmem:[%s1340] sm:$0xff]
        %v1342 = vld [vmem:[%s1340 + $0x8] sm:$0xff]
        %v1343 = vld [vmem:[%s1340 + $0x18] sm:$0xff]
        %v1344 = vld [vmem:[%s1340 + $0x20] sm:$0xff]
        %v1345 = vld [vmem:[%s1340 + $0x30] sm:$0xff]
        %v1346 = vld [vmem:[%s1340 + $0x38] sm:$0xff]
        %v1347 = vld [vmem:[%s1340 + $0x48] sm:$0xff]
        %v1348 = vld [vmem:[%s1340 + $0x50] sm:$0xff]
        %v1349 = vld [vmem:[%s1340 + $0x60] sm:$0xff]
        %v1350 = vld [vmem:[%s1340 + $0x68] sm:$0xff]
        %v1351 = vld [vmem:[%s1340 + $0x78] sm:$0xff]
        %v1352 = vld [vmem:[%s1340 + $0x80] sm:$0xff]
        %v1353 = vld [vmem:[%s1340 + $0x90] sm:$0xff]
        %v1354 = vld [vmem:[%s1340 + $0x98] sm:$0xff]
        %v1355 = vld [vmem:[%s1340 + $0xa8] sm:$0xff]
        %v1356 = vld [vmem:[%s1340 + $0xb0] sm:$0xff]
        %v1357 = vld [vmem:[%s1340 + $0xc0] sm:$0xff]
        %v1358 = vld [vmem:[%s1340 + $0xc8] sm:$0xff]
        %v1359 = vld [vmem:[%s1340 + $0xd8] sm:$0xff]
        %v1360 = vld [vmem:[%s1340 + $0xe0] sm:$0xff]
        %v1361 = vld [vmem:[%s1340 + $0xf0] sm:$0xff]
        %v1362 = vld [vmem:[%s1340 + $0xf8] sm:$0xff]
        %v1363 = vld [vmem:[%s1340 + $0x108] sm:$0xff]
        %v1364 = vld [vmem:[%s1340 + $0x110] sm:$0xff]
        %v1365 = vld [vmem:[%s1340 + $0x120] sm:$0xff]
        %v1366 = vld [vmem:[%s1340 + $0x128] sm:$0xff]
        %v1367 = vld [vmem:[%s1340 + $0x138] sm:$0xff]
        %v1368 = vld [vmem:[%s1340 + $0x140] sm:$0xff]
        %v1369 = vld [vmem:[%s1340 + $0x150] sm:$0xff]
        %v1370 = vld [vmem:[%s1340 + $0x158] sm:$0xff]
        %v1371 = vld [vmem:[%s1340 + $0x168] sm:$0xff]
        %v1372 = vld [vmem:[%s1340 + $0x170] sm:$0xff]
        %s1373 = scalar_lea.vmem %s1, 768
        %v1374 = vld [vmem:[%s1373] sm:$0xff]
        %v1375 = vld [vmem:[%s1373 + $0x8] sm:$0xff]
        %v1376 = vld [vmem:[%s1373 + $0x10] sm:$0xff]
        %v1377 = vld [vmem:[%s1373 + $0x18] sm:$0xff]
        %v1378 = vld [vmem:[%s1373 + $0x20] sm:$0xff]
        %v1379 = vld [vmem:[%s1373 + $0x28] sm:$0xff]
        %v1380 = vld [vmem:[%s1373 + $0x30] sm:$0xff]
        %v1381 = vld [vmem:[%s1373 + $0x38] sm:$0xff]
        %v1382 = vld [vmem:[%s1373 + $0x40] sm:$0xff]
        %v1383 = vld [vmem:[%s1373 + $0x48] sm:$0xff]
        %v1384 = vld [vmem:[%s1373 + $0x50] sm:$0xff]
        %v1385 = vld [vmem:[%s1373 + $0x58] sm:$0xff]
        %v1386 = vld [vmem:[%s1373 + $0x60] sm:$0xff]
        %v1387 = vld [vmem:[%s1373 + $0x68] sm:$0xff]
        %v1388 = vld [vmem:[%s1373 + $0x70] sm:$0xff]
        %v1389 = vld [vmem:[%s1373 + $0x78] sm:$0xff]
        %1390 = vmatpush.msra.mxu0 %v1389
        %1391 = vmatpush.msra.mxu0 %v1388
        %1392 = vmatpush.msra.mxu0 %v1387
        %1393 = vmatpush.msra.mxu0 %v1386
        %1394 = vmatpush.msra.mxu0 %v1385
        %1395 = vmatpush.msra.mxu0 %v1384
        %1396 = vmatpush.msra.mxu0 %v1383
        %1397 = vmatpush.msra.mxu0 %v1382
        %1398 = vmatpush.msra.mxu0 %v1381
        %1399 = vmatpush.msra.mxu0 %v1380
        %1400 = vmatpush.msra.mxu0 %v1379
        %1401 = vmatpush.msra.mxu0 %v1378
        %1402 = vmatpush.msra.mxu0 %v1377
        %1403 = vmatpush.msra.mxu0 %v1376
        %1404 = vmatpush.msra.mxu0 %v1375
        %1405 = vmatpush.msra.mxu0 %v1374
        %1406 = vmatmul.f32.gmra.mxu0 %v1341
        %v1407 = vpop.f32.mrf.mxu0
        %v1408 = vadd.f32 0.0, %v1407
        %1409 = vmatmul.f32.gmra.mxu0 %v1342
        %v1410 = vpop.f32.mrf.mxu0
        %v1411 = vadd.f32 0.0, %v1410
        %1412 = vmatmul.f32.gmra.mxu0 %v1343
        %v1413 = vpop.f32.mrf.mxu0
        %v1414 = vadd.f32 0.0, %v1413
        %1415 = vmatmul.f32.gmra.mxu0 %v1344
        %v1416 = vpop.f32.mrf.mxu0
        %v1417 = vadd.f32 0.0, %v1416
        %1418 = vmatmul.f32.gmra.mxu0 %v1345
        %v1419 = vpop.f32.mrf.mxu0
        %v1420 = vadd.f32 0.0, %v1419
        %1421 = vmatmul.f32.gmra.mxu0 %v1346
        %v1422 = vpop.f32.mrf.mxu0
        %v1423 = vadd.f32 0.0, %v1422
        %1424 = vmatmul.f32.gmra.mxu0 %v1347
        %v1425 = vpop.f32.mrf.mxu0
        %v1426 = vadd.f32 0.0, %v1425
        %1427 = vmatmul.f32.gmra.mxu0 %v1348
        %v1428 = vpop.f32.mrf.mxu0
        %v1429 = vadd.f32 0.0, %v1428
        %1430 = vmatmul.f32.gmra.mxu0 %v1349
        %v1431 = vpop.f32.mrf.mxu0
        %v1432 = vadd.f32 0.0, %v1431
        %1433 = vmatmul.f32.gmra.mxu0 %v1350
        %v1434 = vpop.f32.mrf.mxu0
        %v1435 = vadd.f32 0.0, %v1434
        %1436 = vmatmul.f32.gmra.mxu0 %v1351
        %v1437 = vpop.f32.mrf.mxu0
        %v1438 = vadd.f32 0.0, %v1437
        %1439 = vmatmul.f32.gmra.mxu0 %v1352
        %v1440 = vpop.f32.mrf.mxu0
        %v1441 = vadd.f32 0.0, %v1440
        %1442 = vmatmul.f32.gmra.mxu0 %v1353
        %v1443 = vpop.f32.mrf.mxu0
        %v1444 = vadd.f32 0.0, %v1443
        %1445 = vmatmul.f32.gmra.mxu0 %v1354
        %v1446 = vpop.f32.mrf.mxu0
        %v1447 = vadd.f32 0.0, %v1446
        %1448 = vmatmul.f32.gmra.mxu0 %v1355
        %v1449 = vpop.f32.mrf.mxu0
        %v1450 = vadd.f32 0.0, %v1449
        %1451 = vmatmul.f32.gmra.mxu0 %v1356
        %v1452 = vpop.f32.mrf.mxu0
        %v1453 = vadd.f32 0.0, %v1452
        %1454 = vmatmul.f32.gmra.mxu0 %v1357
        %v1455 = vpop.f32.mrf.mxu0
        %v1456 = vadd.f32 0.0, %v1455
        %1457 = vmatmul.f32.gmra.mxu0 %v1358
        %v1458 = vpop.f32.mrf.mxu0
        %v1459 = vadd.f32 0.0, %v1458
        %1460 = vmatmul.f32.gmra.mxu0 %v1359
        %v1461 = vpop.f32.mrf.mxu0
        %v1462 = vadd.f32 0.0, %v1461
        %1463 = vmatmul.f32.gmra.mxu0 %v1360
        %v1464 = vpop.f32.mrf.mxu0
        %v1465 = vadd.f32 0.0, %v1464
        %1466 = vmatmul.f32.gmra.mxu0 %v1361
        %v1467 = vpop.f32.mrf.mxu0
        %v1468 = vadd.f32 0.0, %v1467
        %1469 = vmatmul.f32.gmra.mxu0 %v1362
        %v1470 = vpop.f32.mrf.mxu0
        %v1471 = vadd.f32 0.0, %v1470
        %1472 = vmatmul.f32.gmra.mxu0 %v1363
        %v1473 = vpop.f32.mrf.mxu0
        %v1474 = vadd.f32 0.0, %v1473
        %1475 = vmatmul.f32.gmra.mxu0 %v1364
        %v1476 = vpop.f32.mrf.mxu0
        %v1477 = vadd.f32 0.0, %v1476
        %1478 = vmatmul.f32.gmra.mxu0 %v1365
        %v1479 = vpop.f32.mrf.mxu0
        %v1480 = vadd.f32 0.0, %v1479
        %1481 = vmatmul.f32.gmra.mxu0 %v1366
        %v1482 = vpop.f32.mrf.mxu0
        %v1483 = vadd.f32 0.0, %v1482
        %1484 = vmatmul.f32.gmra.mxu0 %v1367
        %v1485 = vpop.f32.mrf.mxu0
        %v1486 = vadd.f32 0.0, %v1485
        %1487 = vmatmul.f32.gmra.mxu0 %v1368
        %v1488 = vpop.f32.mrf.mxu0
        %v1489 = vadd.f32 0.0, %v1488
        %1490 = vmatmul.f32.gmra.mxu0 %v1369
        %v1491 = vpop.f32.mrf.mxu0
        %v1492 = vadd.f32 0.0, %v1491
        %1493 = vmatmul.f32.gmra.mxu0 %v1370
        %v1494 = vpop.f32.mrf.mxu0
        %v1495 = vadd.f32 0.0, %v1494
        %1496 = vmatmul.f32.gmra.mxu0 %v1371
        %v1497 = vpop.f32.mrf.mxu0
        %v1498 = vadd.f32 0.0, %v1497
        %1499 = vmatmul.f32.gmra.mxu0 %v1372
        %v1500 = vpop.f32.mrf.mxu0
        %v1501 = vadd.f32 0.0, %v1500
        %1502 = vdwg.mxu0
        %v1503 = vadd.f32 %v1308, %v1408
        %v1504 = vadd.f32 %v1309, %v1411
        %v1505 = vadd.f32 %v1310, %v1414
        %v1506 = vadd.f32 %v1311, %v1417
        %v1507 = vadd.f32 %v1312, %v1420
        %v1508 = vadd.f32 %v1313, %v1423
        %v1509 = vadd.f32 %v1314, %v1426
        %v1510 = vadd.f32 %v1315, %v1429
        %v1511 = vadd.f32 %v1316, %v1432
        %v1512 = vadd.f32 %v1317, %v1435
        %v1513 = vadd.f32 %v1318, %v1438
        %v1514 = vadd.f32 %v1319, %v1441
        %v1515 = vadd.f32 %v1320, %v1444
        %v1516 = vadd.f32 %v1321, %v1447
        %v1517 = vadd.f32 %v1322, %v1450
        %v1518 = vadd.f32 %v1323, %v1453
        %v1519 = vadd.f32 %v1324, %v1456
        %v1520 = vadd.f32 %v1325, %v1459
        %v1521 = vadd.f32 %v1326, %v1462
        %v1522 = vadd.f32 %v1327, %v1465
        %v1523 = vadd.f32 %v1328, %v1468
        %v1524 = vadd.f32 %v1329, %v1471
        %v1525 = vadd.f32 %v1330, %v1474
        %v1526 = vadd.f32 %v1331, %v1477
        %v1527 = vadd.f32 %v1332, %v1480
        %v1528 = vadd.f32 %v1333, %v1483
        %v1529 = vadd.f32 %v1334, %v1486
        %v1530 = vadd.f32 %v1335, %v1489
        %v1531 = vadd.f32 %v1336, %v1492
        %v1532 = vadd.f32 %v1337, %v1495
        %v1533 = vadd.f32 %v1338, %v1498
        %v1534 = vadd.f32 %v1339, %v1501
        %v1535 = vld [vmem:[%s1340 + $0x1] sm:$0xff]
        %v1536 = vld [vmem:[%s1340 + $0x9] sm:$0xff]
        %v1537 = vld [vmem:[%s1340 + $0x19] sm:$0xff]
        %v1538 = vld [vmem:[%s1340 + $0x21] sm:$0xff]
        %v1539 = vld [vmem:[%s1340 + $0x31] sm:$0xff]
        %v1540 = vld [vmem:[%s1340 + $0x39] sm:$0xff]
        %v1541 = vld [vmem:[%s1340 + $0x49] sm:$0xff]
        %v1542 = vld [vmem:[%s1340 + $0x51] sm:$0xff]
        %v1543 = vld [vmem:[%s1340 + $0x61] sm:$0xff]
        %v1544 = vld [vmem:[%s1340 + $0x69] sm:$0xff]
        %v1545 = vld [vmem:[%s1340 + $0x79] sm:$0xff]
        %v1546 = vld [vmem:[%s1340 + $0x81] sm:$0xff]
        %v1547 = vld [vmem:[%s1340 + $0x91] sm:$0xff]
        %v1548 = vld [vmem:[%s1340 + $0x99] sm:$0xff]
        %v1549 = vld [vmem:[%s1340 + $0xa9] sm:$0xff]
        %v1550 = vld [vmem:[%s1340 + $0xb1] sm:$0xff]
        %v1551 = vld [vmem:[%s1340 + $0xc1] sm:$0xff]
        %v1552 = vld [vmem:[%s1340 + $0xc9] sm:$0xff]
        %v1553 = vld [vmem:[%s1340 + $0xd9] sm:$0xff]
        %v1554 = vld [vmem:[%s1340 + $0xe1] sm:$0xff]
        %v1555 = vld [vmem:[%s1340 + $0xf1] sm:$0xff]
        %v1556 = vld [vmem:[%s1340 + $0xf9] sm:$0xff]
        %v1557 = vld [vmem:[%s1340 + $0x109] sm:$0xff]
        %v1558 = vld [vmem:[%s1340 + $0x111] sm:$0xff]
        %v1559 = vld [vmem:[%s1340 + $0x121] sm:$0xff]
        %v1560 = vld [vmem:[%s1340 + $0x129] sm:$0xff]
        %v1561 = vld [vmem:[%s1340 + $0x139] sm:$0xff]
        %v1562 = vld [vmem:[%s1340 + $0x141] sm:$0xff]
        %v1563 = vld [vmem:[%s1340 + $0x151] sm:$0xff]
        %v1564 = vld [vmem:[%s1340 + $0x159] sm:$0xff]
        %v1565 = vld [vmem:[%s1340 + $0x169] sm:$0xff]
        %v1566 = vld [vmem:[%s1340 + $0x171] sm:$0xff]
        %s1567 = scalar_lea.vmem %s1, 896
        %v1568 = vld [vmem:[%s1567] sm:$0xff]
        %v1569 = vld [vmem:[%s1567 + $0x8] sm:$0xff]
        %v1570 = vld [vmem:[%s1567 + $0x10] sm:$0xff]
        %v1571 = vld [vmem:[%s1567 + $0x18] sm:$0xff]
        %v1572 = vld [vmem:[%s1567 + $0x20] sm:$0xff]
        %v1573 = vld [vmem:[%s1567 + $0x28] sm:$0xff]
        %v1574 = vld [vmem:[%s1567 + $0x30] sm:$0xff]
        %v1575 = vld [vmem:[%s1567 + $0x38] sm:$0xff]
        %v1576 = vld [vmem:[%s1567 + $0x40] sm:$0xff]
        %v1577 = vld [vmem:[%s1567 + $0x48] sm:$0xff]
        %v1578 = vld [vmem:[%s1567 + $0x50] sm:$0xff]
        %v1579 = vld [vmem:[%s1567 + $0x58] sm:$0xff]
        %v1580 = vld [vmem:[%s1567 + $0x60] sm:$0xff]
        %v1581 = vld [vmem:[%s1567 + $0x68] sm:$0xff]
        %v1582 = vld [vmem:[%s1567 + $0x70] sm:$0xff]
        %v1583 = vld [vmem:[%s1567 + $0x78] sm:$0xff]
        %1584 = vmatpush.msra.mxu0 %v1583
        %1585 = vmatpush.msra.mxu0 %v1582
        %1586 = vmatpush.msra.mxu0 %v1581
        %1587 = vmatpush.msra.mxu0 %v1580
        %1588 = vmatpush.msra.mxu0 %v1579
        %1589 = vmatpush.msra.mxu0 %v1578
        %1590 = vmatpush.msra.mxu0 %v1577
        %1591 = vmatpush.msra.mxu0 %v1576
        %1592 = vmatpush.msra.mxu0 %v1575
        %1593 = vmatpush.msra.mxu0 %v1574
        %1594 = vmatpush.msra.mxu0 %v1573
        %1595 = vmatpush.msra.mxu0 %v1572
        %1596 = vmatpush.msra.mxu0 %v1571
        %1597 = vmatpush.msra.mxu0 %v1570
        %1598 = vmatpush.msra.mxu0 %v1569
        %1599 = vmatpush.msra.mxu0 %v1568
        %1600 = vmatmul.f32.gmra.mxu0 %v1535
        %v1601 = vpop.f32.mrf.mxu0
        %v1602 = vadd.f32 0.0, %v1601
        %1603 = vmatmul.f32.gmra.mxu0 %v1536
        %v1604 = vpop.f32.mrf.mxu0
        %v1605 = vadd.f32 0.0, %v1604
        %1606 = vmatmul.f32.gmra.mxu0 %v1537
        %v1607 = vpop.f32.mrf.mxu0
        %v1608 = vadd.f32 0.0, %v1607
        %1609 = vmatmul.f32.gmra.mxu0 %v1538
        %v1610 = vpop.f32.mrf.mxu0
        %v1611 = vadd.f32 0.0, %v1610
        %1612 = vmatmul.f32.gmra.mxu0 %v1539
        %v1613 = vpop.f32.mrf.mxu0
        %v1614 = vadd.f32 0.0, %v1613
        %1615 = vmatmul.f32.gmra.mxu0 %v1540
        %v1616 = vpop.f32.mrf.mxu0
        %v1617 = vadd.f32 0.0, %v1616
        %1618 = vmatmul.f32.gmra.mxu0 %v1541
        %v1619 = vpop.f32.mrf.mxu0
        %v1620 = vadd.f32 0.0, %v1619
        %1621 = vmatmul.f32.gmra.mxu0 %v1542
        %v1622 = vpop.f32.mrf.mxu0
        %v1623 = vadd.f32 0.0, %v1622
        %1624 = vmatmul.f32.gmra.mxu0 %v1543
        %v1625 = vpop.f32.mrf.mxu0
        %v1626 = vadd.f32 0.0, %v1625
        %1627 = vmatmul.f32.gmra.mxu0 %v1544
        %v1628 = vpop.f32.mrf.mxu0
        %v1629 = vadd.f32 0.0, %v1628
        %1630 = vmatmul.f32.gmra.mxu0 %v1545
        %v1631 = vpop.f32.mrf.mxu0
        %v1632 = vadd.f32 0.0, %v1631
        %1633 = vmatmul.f32.gmra.mxu0 %v1546
        %v1634 = vpop.f32.mrf.mxu0
        %v1635 = vadd.f32 0.0, %v1634
        %1636 = vmatmul.f32.gmra.mxu0 %v1547
        %v1637 = vpop.f32.mrf.mxu0
        %v1638 = vadd.f32 0.0, %v1637
        %1639 = vmatmul.f32.gmra.mxu0 %v1548
        %v1640 = vpop.f32.mrf.mxu0
        %v1641 = vadd.f32 0.0, %v1640
        %1642 = vmatmul.f32.gmra.mxu0 %v1549
        %v1643 = vpop.f32.mrf.mxu0
        %v1644 = vadd.f32 0.0, %v1643
        %1645 = vmatmul.f32.gmra.mxu0 %v1550
        %v1646 = vpop.f32.mrf.mxu0
        %v1647 = vadd.f32 0.0, %v1646
        %1648 = vmatmul.f32.gmra.mxu0 %v1551
        %v1649 = vpop.f32.mrf.mxu0
        %v1650 = vadd.f32 0.0, %v1649
        %1651 = vmatmul.f32.gmra.mxu0 %v1552
        %v1652 = vpop.f32.mrf.mxu0
        %v1653 = vadd.f32 0.0, %v1652
        %1654 = vmatmul.f32.gmra.mxu0 %v1553
        %v1655 = vpop.f32.mrf.mxu0
        %v1656 = vadd.f32 0.0, %v1655
        %1657 = vmatmul.f32.gmra.mxu0 %v1554
        %v1658 = vpop.f32.mrf.mxu0
        %v1659 = vadd.f32 0.0, %v1658
        %1660 = vmatmul.f32.gmra.mxu0 %v1555
        %v1661 = vpop.f32.mrf.mxu0
        %v1662 = vadd.f32 0.0, %v1661
        %1663 = vmatmul.f32.gmra.mxu0 %v1556
        %v1664 = vpop.f32.mrf.mxu0
        %v1665 = vadd.f32 0.0, %v1664
        %1666 = vmatmul.f32.gmra.mxu0 %v1557
        %v1667 = vpop.f32.mrf.mxu0
        %v1668 = vadd.f32 0.0, %v1667
        %1669 = vmatmul.f32.gmra.mxu0 %v1558
        %v1670 = vpop.f32.mrf.mxu0
        %v1671 = vadd.f32 0.0, %v1670
        %1672 = vmatmul.f32.gmra.mxu0 %v1559
        %v1673 = vpop.f32.mrf.mxu0
        %v1674 = vadd.f32 0.0, %v1673
        %1675 = vmatmul.f32.gmra.mxu0 %v1560
        %v1676 = vpop.f32.mrf.mxu0
        %v1677 = vadd.f32 0.0, %v1676
        %1678 = vmatmul.f32.gmra.mxu0 %v1561
        %v1679 = vpop.f32.mrf.mxu0
        %v1680 = vadd.f32 0.0, %v1679
        %1681 = vmatmul.f32.gmra.mxu0 %v1562
        %v1682 = vpop.f32.mrf.mxu0
        %v1683 = vadd.f32 0.0, %v1682
        %1684 = vmatmul.f32.gmra.mxu0 %v1563
        %v1685 = vpop.f32.mrf.mxu0
        %v1686 = vadd.f32 0.0, %v1685
        %1687 = vmatmul.f32.gmra.mxu0 %v1564
        %v1688 = vpop.f32.mrf.mxu0
        %v1689 = vadd.f32 0.0, %v1688
        %1690 = vmatmul.f32.gmra.mxu0 %v1565
        %v1691 = vpop.f32.mrf.mxu0
        %v1692 = vadd.f32 0.0, %v1691
        %1693 = vmatmul.f32.gmra.mxu0 %v1566
        %v1694 = vpop.f32.mrf.mxu0
        %v1695 = vadd.f32 0.0, %v1694
        %1696 = vdwg.mxu0
        %v1697 = vadd.f32 %v1503, %v1602
        %v1698 = vadd.f32 %v1504, %v1605
        %v1699 = vadd.f32 %v1505, %v1608
        %v1700 = vadd.f32 %v1506, %v1611
        %v1701 = vadd.f32 %v1507, %v1614
        %v1702 = vadd.f32 %v1508, %v1617
        %v1703 = vadd.f32 %v1509, %v1620
        %v1704 = vadd.f32 %v1510, %v1623
        %v1705 = vadd.f32 %v1511, %v1626
        %v1706 = vadd.f32 %v1512, %v1629
        %v1707 = vadd.f32 %v1513, %v1632
        %v1708 = vadd.f32 %v1514, %v1635
        %v1709 = vadd.f32 %v1515, %v1638
        %v1710 = vadd.f32 %v1516, %v1641
        %v1711 = vadd.f32 %v1517, %v1644
        %v1712 = vadd.f32 %v1518, %v1647
        %v1713 = vadd.f32 %v1519, %v1650
        %v1714 = vadd.f32 %v1520, %v1653
        %v1715 = vadd.f32 %v1521, %v1656
        %v1716 = vadd.f32 %v1522, %v1659
        %v1717 = vadd.f32 %v1523, %v1662
        %v1718 = vadd.f32 %v1524, %v1665
        %v1719 = vadd.f32 %v1525, %v1668
        %v1720 = vadd.f32 %v1526, %v1671
        %v1721 = vadd.f32 %v1527, %v1674
        %v1722 = vadd.f32 %v1528, %v1677
        %v1723 = vadd.f32 %v1529, %v1680
        %v1724 = vadd.f32 %v1530, %v1683
        %v1725 = vadd.f32 %v1531, %v1686
        %v1726 = vadd.f32 %v1532, %v1689
        %v1727 = vadd.f32 %v1533, %v1692
        %v1728 = vadd.f32 %v1534, %v1695
        %v1729 = vld [vmem:[%s1340 + $0x2] sm:$0xff]
        %v1730 = vld [vmem:[%s1340 + $0xa] sm:$0xff]
        %v1731 = vld [vmem:[%s1340 + $0x1a] sm:$0xff]
        %v1732 = vld [vmem:[%s1340 + $0x22] sm:$0xff]
        %v1733 = vld [vmem:[%s1340 + $0x32] sm:$0xff]
        %v1734 = vld [vmem:[%s1340 + $0x3a] sm:$0xff]
        %v1735 = vld [vmem:[%s1340 + $0x4a] sm:$0xff]
        %v1736 = vld [vmem:[%s1340 + $0x52] sm:$0xff]
        %v1737 = vld [vmem:[%s1340 + $0x62] sm:$0xff]
        %v1738 = vld [vmem:[%s1340 + $0x6a] sm:$0xff]
        %v1739 = vld [vmem:[%s1340 + $0x7a] sm:$0xff]
        %v1740 = vld [vmem:[%s1340 + $0x82] sm:$0xff]
        %v1741 = vld [vmem:[%s1340 + $0x92] sm:$0xff]
        %v1742 = vld [vmem:[%s1340 + $0x9a] sm:$0xff]
        %v1743 = vld [vmem:[%s1340 + $0xaa] sm:$0xff]
        %v1744 = vld [vmem:[%s1340 + $0xb2] sm:$0xff]
        %v1745 = vld [vmem:[%s1340 + $0xc2] sm:$0xff]
        %v1746 = vld [vmem:[%s1340 + $0xca] sm:$0xff]
        %v1747 = vld [vmem:[%s1340 + $0xda] sm:$0xff]
        %v1748 = vld [vmem:[%s1340 + $0xe2] sm:$0xff]
        %v1749 = vld [vmem:[%s1340 + $0xf2] sm:$0xff]
        %v1750 = vld [vmem:[%s1340 + $0xfa] sm:$0xff]
        %v1751 = vld [vmem:[%s1340 + $0x10a] sm:$0xff]
        %v1752 = vld [vmem:[%s1340 + $0x112] sm:$0xff]
        %v1753 = vld [vmem:[%s1340 + $0x122] sm:$0xff]
        %v1754 = vld [vmem:[%s1340 + $0x12a] sm:$0xff]
        %v1755 = vld [vmem:[%s1340 + $0x13a] sm:$0xff]
        %v1756 = vld [vmem:[%s1340 + $0x142] sm:$0xff]
        %v1757 = vld [vmem:[%s1340 + $0x152] sm:$0xff]
        %v1758 = vld [vmem:[%s1340 + $0x15a] sm:$0xff]
        %v1759 = vld [vmem:[%s1340 + $0x16a] sm:$0xff]
        %v1760 = vld [vmem:[%s1340 + $0x172] sm:$0xff]
        %s1761 = scalar_lea.vmem %s1, 1024
        %v1762 = vld [vmem:[%s1761] sm:$0xff]
        %v1763 = vld [vmem:[%s1761 + $0x8] sm:$0xff]
        %v1764 = vld [vmem:[%s1761 + $0x10] sm:$0xff]
        %v1765 = vld [vmem:[%s1761 + $0x18] sm:$0xff]
        %v1766 = vld [vmem:[%s1761 + $0x20] sm:$0xff]
        %v1767 = vld [vmem:[%s1761 + $0x28] sm:$0xff]
        %v1768 = vld [vmem:[%s1761 + $0x30] sm:$0xff]
        %v1769 = vld [vmem:[%s1761 + $0x38] sm:$0xff]
        %v1770 = vld [vmem:[%s1761 + $0x40] sm:$0xff]
        %v1771 = vld [vmem:[%s1761 + $0x48] sm:$0xff]
        %v1772 = vld [vmem:[%s1761 + $0x50] sm:$0xff]
        %v1773 = vld [vmem:[%s1761 + $0x58] sm:$0xff]
        %v1774 = vld [vmem:[%s1761 + $0x60] sm:$0xff]
        %v1775 = vld [vmem:[%s1761 + $0x68] sm:$0xff]
        %v1776 = vld [vmem:[%s1761 + $0x70] sm:$0xff]
        %v1777 = vld [vmem:[%s1761 + $0x78] sm:$0xff]
        %1778 = vmatpush.msra.mxu0 %v1777
        %1779 = vmatpush.msra.mxu0 %v1776
        %1780 = vmatpush.msra.mxu0 %v1775
        %1781 = vmatpush.msra.mxu0 %v1774
        %1782 = vmatpush.msra.mxu0 %v1773
        %1783 = vmatpush.msra.mxu0 %v1772
        %1784 = vmatpush.msra.mxu0 %v1771
        %1785 = vmatpush.msra.mxu0 %v1770
        %1786 = vmatpush.msra.mxu0 %v1769
        %1787 = vmatpush.msra.mxu0 %v1768
        %1788 = vmatpush.msra.mxu0 %v1767
        %1789 = vmatpush.msra.mxu0 %v1766
        %1790 = vmatpush.msra.mxu0 %v1765
        %1791 = vmatpush.msra.mxu0 %v1764
        %1792 = vmatpush.msra.mxu0 %v1763
        %1793 = vmatpush.msra.mxu0 %v1762
        %1794 = vmatmul.f32.gmra.mxu0 %v1729
        %v1795 = vpop.f32.mrf.mxu0
        %v1796 = vadd.f32 0.0, %v1795
        %1797 = vmatmul.f32.gmra.mxu0 %v1730
        %v1798 = vpop.f32.mrf.mxu0
        %v1799 = vadd.f32 0.0, %v1798
        %1800 = vmatmul.f32.gmra.mxu0 %v1731
        %v1801 = vpop.f32.mrf.mxu0
        %v1802 = vadd.f32 0.0, %v1801
        %1803 = vmatmul.f32.gmra.mxu0 %v1732
        %v1804 = vpop.f32.mrf.mxu0
        %v1805 = vadd.f32 0.0, %v1804
        %1806 = vmatmul.f32.gmra.mxu0 %v1733
        %v1807 = vpop.f32.mrf.mxu0
        %v1808 = vadd.f32 0.0, %v1807
        %1809 = vmatmul.f32.gmra.mxu0 %v1734
        %v1810 = vpop.f32.mrf.mxu0
        %v1811 = vadd.f32 0.0, %v1810
        %1812 = vmatmul.f32.gmra.mxu0 %v1735
        %v1813 = vpop.f32.mrf.mxu0
        %v1814 = vadd.f32 0.0, %v1813
        %1815 = vmatmul.f32.gmra.mxu0 %v1736
        %v1816 = vpop.f32.mrf.mxu0
        %v1817 = vadd.f32 0.0, %v1816
        %1818 = vmatmul.f32.gmra.mxu0 %v1737
        %v1819 = vpop.f32.mrf.mxu0
        %v1820 = vadd.f32 0.0, %v1819
        %1821 = vmatmul.f32.gmra.mxu0 %v1738
        %v1822 = vpop.f32.mrf.mxu0
        %v1823 = vadd.f32 0.0, %v1822
        %1824 = vmatmul.f32.gmra.mxu0 %v1739
        %v1825 = vpop.f32.mrf.mxu0
        %v1826 = vadd.f32 0.0, %v1825
        %1827 = vmatmul.f32.gmra.mxu0 %v1740
        %v1828 = vpop.f32.mrf.mxu0
        %v1829 = vadd.f32 0.0, %v1828
        %1830 = vmatmul.f32.gmra.mxu0 %v1741
        %v1831 = vpop.f32.mrf.mxu0
        %v1832 = vadd.f32 0.0, %v1831
        %1833 = vmatmul.f32.gmra.mxu0 %v1742
        %v1834 = vpop.f32.mrf.mxu0
        %v1835 = vadd.f32 0.0, %v1834
        %1836 = vmatmul.f32.gmra.mxu0 %v1743
        %v1837 = vpop.f32.mrf.mxu0
        %v1838 = vadd.f32 0.0, %v1837
        %1839 = vmatmul.f32.gmra.mxu0 %v1744
        %v1840 = vpop.f32.mrf.mxu0
        %v1841 = vadd.f32 0.0, %v1840
        %1842 = vmatmul.f32.gmra.mxu0 %v1745
        %v1843 = vpop.f32.mrf.mxu0
        %v1844 = vadd.f32 0.0, %v1843
        %1845 = vmatmul.f32.gmra.mxu0 %v1746
        %v1846 = vpop.f32.mrf.mxu0
        %v1847 = vadd.f32 0.0, %v1846
        %1848 = vmatmul.f32.gmra.mxu0 %v1747
        %v1849 = vpop.f32.mrf.mxu0
        %v1850 = vadd.f32 0.0, %v1849
        %1851 = vmatmul.f32.gmra.mxu0 %v1748
        %v1852 = vpop.f32.mrf.mxu0
        %v1853 = vadd.f32 0.0, %v1852
        %1854 = vmatmul.f32.gmra.mxu0 %v1749
        %v1855 = vpop.f32.mrf.mxu0
        %v1856 = vadd.f32 0.0, %v1855
        %1857 = vmatmul.f32.gmra.mxu0 %v1750
        %v1858 = vpop.f32.mrf.mxu0
        %v1859 = vadd.f32 0.0, %v1858
        %1860 = vmatmul.f32.gmra.mxu0 %v1751
        %v1861 = vpop.f32.mrf.mxu0
        %v1862 = vadd.f32 0.0, %v1861
        %1863 = vmatmul.f32.gmra.mxu0 %v1752
        %v1864 = vpop.f32.mrf.mxu0
        %v1865 = vadd.f32 0.0, %v1864
        %1866 = vmatmul.f32.gmra.mxu0 %v1753
        %v1867 = vpop.f32.mrf.mxu0
        %v1868 = vadd.f32 0.0, %v1867
        %1869 = vmatmul.f32.gmra.mxu0 %v1754
        %v1870 = vpop.f32.mrf.mxu0
        %v1871 = vadd.f32 0.0, %v1870
        %1872 = vmatmul.f32.gmra.mxu0 %v1755
        %v1873 = vpop.f32.mrf.mxu0
        %v1874 = vadd.f32 0.0, %v1873
        %1875 = vmatmul.f32.gmra.mxu0 %v1756
        %v1876 = vpop.f32.mrf.mxu0
        %v1877 = vadd.f32 0.0, %v1876
        %1878 = vmatmul.f32.gmra.mxu0 %v1757
        %v1879 = vpop.f32.mrf.mxu0
        %v1880 = vadd.f32 0.0, %v1879
        %1881 = vmatmul.f32.gmra.mxu0 %v1758
        %v1882 = vpop.f32.mrf.mxu0
        %v1883 = vadd.f32 0.0, %v1882
        %1884 = vmatmul.f32.gmra.mxu0 %v1759
        %v1885 = vpop.f32.mrf.mxu0
        %v1886 = vadd.f32 0.0, %v1885
        %1887 = vmatmul.f32.gmra.mxu0 %v1760
        %v1888 = vpop.f32.mrf.mxu0
        %v1889 = vadd.f32 0.0, %v1888
        %1890 = vdwg.mxu0
        %v1891 = vadd.f32 %v1697, %v1796
        %v1892 = vadd.f32 %v1698, %v1799
        %v1893 = vadd.f32 %v1699, %v1802
        %v1894 = vadd.f32 %v1700, %v1805
        %v1895 = vadd.f32 %v1701, %v1808
        %v1896 = vadd.f32 %v1702, %v1811
        %v1897 = vadd.f32 %v1703, %v1814
        %v1898 = vadd.f32 %v1704, %v1817
        %v1899 = vadd.f32 %v1705, %v1820
        %v1900 = vadd.f32 %v1706, %v1823
        %v1901 = vadd.f32 %v1707, %v1826
        %v1902 = vadd.f32 %v1708, %v1829
        %v1903 = vadd.f32 %v1709, %v1832
        %v1904 = vadd.f32 %v1710, %v1835
        %v1905 = vadd.f32 %v1711, %v1838
        %v1906 = vadd.f32 %v1712, %v1841
        %v1907 = vadd.f32 %v1713, %v1844
        %v1908 = vadd.f32 %v1714, %v1847
        %v1909 = vadd.f32 %v1715, %v1850
        %v1910 = vadd.f32 %v1716, %v1853
        %v1911 = vadd.f32 %v1717, %v1856
        %v1912 = vadd.f32 %v1718, %v1859
        %v1913 = vadd.f32 %v1719, %v1862
        %v1914 = vadd.f32 %v1720, %v1865
        %v1915 = vadd.f32 %v1721, %v1868
        %v1916 = vadd.f32 %v1722, %v1871
        %v1917 = vadd.f32 %v1723, %v1874
        %v1918 = vadd.f32 %v1724, %v1877
        %v1919 = vadd.f32 %v1725, %v1880
        %v1920 = vadd.f32 %v1726, %v1883
        %v1921 = vadd.f32 %v1727, %v1886
        %v1922 = vadd.f32 %v1728, %v1889
        %v1923 = vld [vmem:[%s2] sm:$0x1]
        %v1925 = vperm.slane %v1923, 0
        %v1927 = vadd.f32 %v1891, %v1925
        %v1928 = vadd.f32 %v1892, %v1925
        %v1929 = vadd.f32 %v1893, %v1925
        %v1930 = vadd.f32 %v1894, %v1925
        %v1931 = vadd.f32 %v1895, %v1925
        %v1932 = vadd.f32 %v1896, %v1925
        %v1933 = vadd.f32 %v1897, %v1925
        %v1934 = vadd.f32 %v1898, %v1925
        %v1935 = vadd.f32 %v1899, %v1925
        %v1936 = vadd.f32 %v1900, %v1925
        %v1937 = vadd.f32 %v1901, %v1925
        %v1938 = vadd.f32 %v1902, %v1925
        %v1939 = vadd.f32 %v1903, %v1925
        %v1940 = vadd.f32 %v1904, %v1925
        %v1941 = vadd.f32 %v1905, %v1925
        %v1942 = vadd.f32 %v1906, %v1925
        %v1943 = vadd.f32 %v1907, %v1925
        %v1944 = vadd.f32 %v1908, %v1925
        %v1945 = vadd.f32 %v1909, %v1925
        %v1946 = vadd.f32 %v1910, %v1925
        %v1947 = vadd.f32 %v1911, %v1925
        %v1948 = vadd.f32 %v1912, %v1925
        %v1949 = vadd.f32 %v1913, %v1925
        %v1950 = vadd.f32 %v1914, %v1925
        %v1951 = vadd.f32 %v1915, %v1925
        %v1952 = vadd.f32 %v1916, %v1925
        %v1953 = vadd.f32 %v1917, %v1925
        %v1954 = vadd.f32 %v1918, %v1925
        %v1955 = vadd.f32 %v1919, %v1925
        %v1956 = vadd.f32 %v1920, %v1925
        %v1957 = vadd.f32 %v1921, %v1925
        %v1958 = vadd.f32 %v1922, %v1925
        %v1959 = vadd.f32 %v1927, %v1928
        %v1960 = vadd.f32 %v1959, %v1929
        %v1961 = vadd.f32 %v1960, %v1930
        %v1962 = vadd.f32 %v1961, %v1931
        %v1963 = vadd.f32 %v1962, %v1932
        %v1964 = vadd.f32 %v1963, %v1933
        %v1965 = vadd.f32 %v1964, %v1934
        %v1966 = vadd.f32 %v1965, %v1935
        %v1967 = vadd.f32 %v1966, %v1936
        %v1968 = vadd.f32 %v1967, %v1937
        %v1969 = vadd.f32 %v1968, %v1938
        %v1970 = vadd.f32 %v1969, %v1939
        %v1971 = vadd.f32 %v1970, %v1940
        %v1972 = vadd.f32 %v1971, %v1941
        %v1973 = vadd.f32 %v1972, %v1942
        %v1974 = vadd.f32 %v1973, %v1943
        %v1975 = vadd.f32 %v1974, %v1944
        %v1976 = vadd.f32 %v1975, %v1945
        %v1977 = vadd.f32 %v1976, %v1946
        %v1978 = vadd.f32 %v1977, %v1947
        %v1979 = vadd.f32 %v1978, %v1948
        %v1980 = vadd.f32 %v1979, %v1949
        %v1981 = vadd.f32 %v1980, %v1950
        %v1982 = vadd.f32 %v1981, %v1951
        %v1983 = vadd.f32 %v1982, %v1952
        %v1984 = vadd.f32 %v1983, %v1953
        %v1985 = vadd.f32 %v1984, %v1954
        %v1986 = vadd.f32 %v1985, %v1955
        %v1987 = vadd.f32 %v1986, %v1956
        %v1988 = vadd.f32 %v1987, %v1957
        %v1989 = vadd.f32 %v1988, %v1958
        %v1990 = vrot.slane %v1989, 4
        %v1991 = vadd.f32 %v1989, %v1990
        %v1992 = vrot.slane %v1991, 2
        %v1993 = vadd.f32 %v1991, %v1992
        %v1994 = vrot.slane %v1993, 1
        %v1995 = vadd.f32 %v1993, %v1994
        %v1996 = vrcp.pop 256.0
        %v1997 = vmul.f32 256.0, %v1996
        %v1998 = vsub.f32 1.0, %v1997
        %v1999 = vmul.f32 %v1996, %v1998
        %v2000 = vadd.f32 %v1996, %v1999
        %vm2001 = vweird.f32 %v1996
        %v2002 = vsel %vm2001, %v1996, %v2000
        %v2003 = vmul.f32 %v1995, %v2002
        %v2004 = vsub.f32 %v1927, %v2003
        %v2005 = vsub.f32 %v1928, %v2003
        %v2006 = vsub.f32 %v1929, %v2003
        %v2007 = vsub.f32 %v1930, %v2003
        %v2008 = vsub.f32 %v1931, %v2003
        %v2009 = vsub.f32 %v1932, %v2003
        %v2010 = vsub.f32 %v1933, %v2003
        %v2011 = vsub.f32 %v1934, %v2003
        %v2012 = vsub.f32 %v1935, %v2003
        %v2013 = vsub.f32 %v1936, %v2003
        %v2014 = vsub.f32 %v1937, %v2003
        %v2015 = vsub.f32 %v1938, %v2003
        %v2016 = vsub.f32 %v1939, %v2003
        %v2017 = vsub.f32 %v1940, %v2003
        %v2018 = vsub.f32 %v1941, %v2003
        %v2019 = vsub.f32 %v1942, %v2003
        %v2020 = vsub.f32 %v1943, %v2003
        %v2021 = vsub.f32 %v1944, %v2003
        %v2022 = vsub.f32 %v1945, %v2003
        %v2023 = vsub.f32 %v1946, %v2003
        %v2024 = vsub.f32 %v1947, %v2003
        %v2025 = vsub.f32 %v1948, %v2003
        %v2026 = vsub.f32 %v1949, %v2003
        %v2027 = vsub.f32 %v1950, %v2003
        %v2028 = vsub.f32 %v1951, %v2003
        %v2029 = vsub.f32 %v1952, %v2003
        %v2030 = vsub.f32 %v1953, %v2003
        %v2031 = vsub.f32 %v1954, %v2003
        %v2032 = vsub.f32 %v1955, %v2003
        %v2033 = vsub.f32 %v1956, %v2003
        %v2034 = vsub.f32 %v1957, %v2003
        %v2035 = vsub.f32 %v1958, %v2003
        %v2036 = vmul.f32 %v2004, %v2004
        %v2037 = vmul.f32 %v2005, %v2005
        %v2038 = vmul.f32 %v2006, %v2006
        %v2039 = vmul.f32 %v2007, %v2007
        %v2040 = vmul.f32 %v2008, %v2008
        %v2041 = vmul.f32 %v2009, %v2009
        %v2042 = vmul.f32 %v2010, %v2010
        %v2043 = vmul.f32 %v2011, %v2011
        %v2044 = vmul.f32 %v2012, %v2012
        %v2045 = vmul.f32 %v2013, %v2013
        %v2046 = vmul.f32 %v2014, %v2014
        %v2047 = vmul.f32 %v2015, %v2015
        %v2048 = vmul.f32 %v2016, %v2016
        %v2049 = vmul.f32 %v2017, %v2017
        %v2050 = vmul.f32 %v2018, %v2018
        %v2051 = vmul.f32 %v2019, %v2019
        %v2052 = vmul.f32 %v2020, %v2020
        %v2053 = vmul.f32 %v2021, %v2021
        %v2054 = vmul.f32 %v2022, %v2022
        %v2055 = vmul.f32 %v2023, %v2023
        %v2056 = vmul.f32 %v2024, %v2024
        %v2057 = vmul.f32 %v2025, %v2025
        %v2058 = vmul.f32 %v2026, %v2026
        %v2059 = vmul.f32 %v2027, %v2027
        %v2060 = vmul.f32 %v2028, %v2028
        %v2061 = vmul.f32 %v2029, %v2029
        %v2062 = vmul.f32 %v2030, %v2030
        %v2063 = vmul.f32 %v2031, %v2031
        %v2064 = vmul.f32 %v2032, %v2032
        %v2065 = vmul.f32 %v2033, %v2033
        %v2066 = vmul.f32 %v2034, %v2034
        %v2067 = vmul.f32 %v2035, %v2035
        %v2068 = vadd.f32 %v2036, %v2037
        %v2069 = vadd.f32 %v2068, %v2038
        %v2070 = vadd.f32 %v2069, %v2039
        %v2071 = vadd.f32 %v2070, %v2040
        %v2072 = vadd.f32 %v2071, %v2041
        %v2073 = vadd.f32 %v2072, %v2042
        %v2074 = vadd.f32 %v2073, %v2043
        %v2075 = vadd.f32 %v2074, %v2044
        %v2076 = vadd.f32 %v2075, %v2045
        %v2077 = vadd.f32 %v2076, %v2046
        %v2078 = vadd.f32 %v2077, %v2047
        %v2079 = vadd.f32 %v2078, %v2048
        %v2080 = vadd.f32 %v2079, %v2049
        %v2081 = vadd.f32 %v2080, %v2050
        %v2082 = vadd.f32 %v2081, %v2051
        %v2083 = vadd.f32 %v2082, %v2052
        %v2084 = vadd.f32 %v2083, %v2053
        %v2085 = vadd.f32 %v2084, %v2054
        %v2086 = vadd.f32 %v2085, %v2055
        %v2087 = vadd.f32 %v2086, %v2056
        %v2088 = vadd.f32 %v2087, %v2057
        %v2089 = vadd.f32 %v2088, %v2058
        %v2090 = vadd.f32 %v2089, %v2059
        %v2091 = vadd.f32 %v2090, %v2060
        %v2092 = vadd.f32 %v2091, %v2061
        %v2093 = vadd.f32 %v2092, %v2062
        %v2094 = vadd.f32 %v2093, %v2063
        %v2095 = vadd.f32 %v2094, %v2064
        %v2096 = vadd.f32 %v2095, %v2065
        %v2097 = vadd.f32 %v2096, %v2066
        %v2098 = vadd.f32 %v2097, %v2067
        %v2099 = vrot.slane %v2098, 4
        %v2100 = vadd.f32 %v2098, %v2099
        %v2101 = vrot.slane %v2100, 2
        %v2102 = vadd.f32 %v2100, %v2101
        %v2103 = vrot.slane %v2102, 1
        %v2104 = vadd.f32 %v2102, %v2103
        %v2105 = vmul.f32 %v2104, %v2002
        %v2106 = vadd.f32 %v2105, 1e-05
        %v2107 = vrsqrt.pop %v2106
        %v2108 = vmul.f32 %v2107, %v2106
        %v2109 = vmul.f32 %v2108, %v2107
        %v2110 = vmul.f32 0.5, %v2109
        %v2111 = vsub.f32 1.5, %v2110
        %v2112 = vmul.f32 %v2107, %v2111
        %vm2113 = vweird.f32 %v2106
        %vm2114 = vweird.f32 %v2107
        %vm2115 = vmor %vm2113, %vm2114
        %v2116 = vsel %vm2115, %v2107, %v2112
        %v2117 = vmul.f32 %v2004, %v2116
        %v2118 = vmul.f32 %v2005, %v2116
        %v2119 = vmul.f32 %v2006, %v2116
        %v2120 = vmul.f32 %v2007, %v2116
        %v2121 = vmul.f32 %v2008, %v2116
        %v2122 = vmul.f32 %v2009, %v2116
        %v2123 = vmul.f32 %v2010, %v2116
        %v2124 = vmul.f32 %v2011, %v2116
        %v2125 = vmul.f32 %v2012, %v2116
        %v2126 = vmul.f32 %v2013, %v2116
        %v2127 = vmul.f32 %v2014, %v2116
        %v2128 = vmul.f32 %v2015, %v2116
        %v2129 = vmul.f32 %v2016, %v2116
        %v2130 = vmul.f32 %v2017, %v2116
        %v2131 = vmul.f32 %v2018, %v2116
        %v2132 = vmul.f32 %v2019, %v2116
        %v2133 = vmul.f32 %v2020, %v2116
        %v2134 = vmul.f32 %v2021, %v2116
        %v2135 = vmul.f32 %v2022, %v2116
        %v2136 = vmul.f32 %v2023, %v2116
        %v2137 = vmul.f32 %v2024, %v2116
        %v2138 = vmul.f32 %v2025, %v2116
        %v2139 = vmul.f32 %v2026, %v2116
        %v2140 = vmul.f32 %v2027, %v2116
        %v2141 = vmul.f32 %v2028, %v2116
        %v2142 = vmul.f32 %v2029, %v2116
        %v2143 = vmul.f32 %v2030, %v2116
        %v2144 = vmul.f32 %v2031, %v2116
        %v2145 = vmul.f32 %v2032, %v2116
        %v2146 = vmul.f32 %v2033, %v2116
        %v2147 = vmul.f32 %v2034, %v2116
        %v2148 = vmul.f32 %v2035, %v2116
        %v2149 = vmax.f32 %v2117, 0.0
        %v2150 = vmax.f32 %v2118, 0.0
        %v2151 = vmax.f32 %v2119, 0.0
        %v2152 = vmax.f32 %v2120, 0.0
        %v2153 = vmax.f32 %v2121, 0.0
        %v2154 = vmax.f32 %v2122, 0.0
        %v2155 = vmax.f32 %v2123, 0.0
        %v2156 = vmax.f32 %v2124, 0.0
        %v2157 = vmax.f32 %v2125, 0.0
        %v2158 = vmax.f32 %v2126, 0.0
        %v2159 = vmax.f32 %v2127, 0.0
        %v2160 = vmax.f32 %v2128, 0.0
        %v2161 = vmax.f32 %v2129, 0.0
        %v2162 = vmax.f32 %v2130, 0.0
        %v2163 = vmax.f32 %v2131, 0.0
        %v2164 = vmax.f32 %v2132, 0.0
        %v2165 = vmax.f32 %v2133, 0.0
        %v2166 = vmax.f32 %v2134, 0.0
        %v2167 = vmax.f32 %v2135, 0.0
        %v2168 = vmax.f32 %v2136, 0.0
        %v2169 = vmax.f32 %v2137, 0.0
        %v2170 = vmax.f32 %v2138, 0.0
        %v2171 = vmax.f32 %v2139, 0.0
        %v2172 = vmax.f32 %v2140, 0.0
        %v2173 = vmax.f32 %v2141, 0.0
        %v2174 = vmax.f32 %v2142, 0.0
        %v2175 = vmax.f32 %v2143, 0.0
        %v2176 = vmax.f32 %v2144, 0.0
        %v2177 = vmax.f32 %v2145, 0.0
        %v2178 = vmax.f32 %v2146, 0.0
        %v2179 = vmax.f32 %v2147, 0.0
        %v2180 = vmax.f32 %v2148, 0.0
        %s2181 = scalar_lea.vmem [#allocation2], 24
        %2182 = vst [vmem:[%s2181 + $0x1] sm:$0xff] %v2149
        %2183 = vst [vmem:[%s2181 + $0x9] sm:$0xff] %v2150
        %2184 = vst [vmem:[%s2181 + $0x19] sm:$0xff] %v2151
        %2185 = vst [vmem:[%s2181 + $0x21] sm:$0xff] %v2152
        %2186 = vst [vmem:[%s2181 + $0x31] sm:$0xff] %v2153
        %2187 = vst [vmem:[%s2181 + $0x39] sm:$0xff] %v2154
        %2188 = vst [vmem:[%s2181 + $0x49] sm:$0xff] %v2155
        %2189 = vst [vmem:[%s2181 + $0x51] sm:$0xff] %v2156
        %2190 = vst [vmem:[%s2181 + $0x61] sm:$0xff] %v2157
        %2191 = vst [vmem:[%s2181 + $0x69] sm:$0xff] %v2158
        %2192 = vst [vmem:[%s2181 + $0x79] sm:$0xff] %v2159
        %2193 = vst [vmem:[%s2181 + $0x81] sm:$0xff] %v2160
        %2194 = vst [vmem:[%s2181 + $0x91] sm:$0xff] %v2161
        %2195 = vst [vmem:[%s2181 + $0x99] sm:$0xff] %v2162
        %2196 = vst [vmem:[%s2181 + $0xa9] sm:$0xff] %v2163
        %2197 = vst [vmem:[%s2181 + $0xb1] sm:$0xff] %v2164
        %2198 = vst [vmem:[%s2181 + $0xc1] sm:$0xff] %v2165
        %2199 = vst [vmem:[%s2181 + $0xc9] sm:$0xff] %v2166
        %2200 = vst [vmem:[%s2181 + $0xd9] sm:$0xff] %v2167
        %2201 = vst [vmem:[%s2181 + $0xe1] sm:$0xff] %v2168
        %2202 = vst [vmem:[%s2181 + $0xf1] sm:$0xff] %v2169
        %2203 = vst [vmem:[%s2181 + $0xf9] sm:$0xff] %v2170
        %2204 = vst [vmem:[%s2181 + $0x109] sm:$0xff] %v2171
        %2205 = vst [vmem:[%s2181 + $0x111] sm:$0xff] %v2172
        %2206 = vst [vmem:[%s2181 + $0x121] sm:$0xff] %v2173
        %2207 = vst [vmem:[%s2181 + $0x129] sm:$0xff] %v2174
        %2208 = vst [vmem:[%s2181 + $0x139] sm:$0xff] %v2175
        %2209 = vst [vmem:[%s2181 + $0x141] sm:$0xff] %v2176
        %2210 = vst [vmem:[%s2181 + $0x151] sm:$0xff] %v2177
        %2211 = vst [vmem:[%s2181 + $0x159] sm:$0xff] %v2178
        %2212 = vst [vmem:[%s2181 + $0x169] sm:$0xff] %v2179
        %2213 = vst [vmem:[%s2181 + $0x171] sm:$0xff] %v2180
        %2214 = vst [vmem:[#allocation2 + $0x1] sm:$0xff] %v2151
        %2215 = vst [vmem:[#allocation2 + $0x9] sm:$0xff] %v2152
        %s2216 = scalar_lea.vmem [#allocation2], 408
        %2217 = vst [vmem:[%s2216 + $0x1] sm:$0xff] %v2177
        %2218 = vst [vmem:[%s2216 + $0x9] sm:$0xff] %v2178
        %v2219 = vld [vmem:[#allocation2 + $0x2] sm:$0x1]
        %v2220 = vld [vmem:[#allocation2 + $0x1a] sm:$0x1]
        %v2221 = vld [vmem:[#allocation2 + $0x32] sm:$0x1]
        %v2222 = vld [vmem:[#allocation2 + $0x4a] sm:$0x1]
        %v2223 = vld [vmem:[#allocation2 + $0x62] sm:$0x1]
        %v2224 = vld [vmem:[#allocation2 + $0x7a] sm:$0x1]
        %v2225 = vld [vmem:[#allocation2 + $0x92] sm:$0x1]
        %v2226 = vld [vmem:[#allocation2 + $0xaa] sm:$0x1]
        %v2227 = vld [vmem:[#allocation2 + $0xc2] sm:$0x1]
        %v2228 = vld [vmem:[#allocation2 + $0xda] sm:$0x1]
        %v2229 = vld [vmem:[#allocation2 + $0xf2] sm:$0x1]
        %v2230 = vld [vmem:[#allocation2 + $0x10a] sm:$0x1]
        %v2231 = vld [vmem:[#allocation2 + $0x122] sm:$0x1]
        %v2232 = vld [vmem:[#allocation2 + $0x13a] sm:$0x1]
        %v2233 = vld [vmem:[#allocation2 + $0x152] sm:$0x1]
        %v2234 = vld [vmem:[#allocation2 + $0x16a] sm:$0x1]
        %v2235 = vld [vmem:[#allocation2 + $0x182] sm:$0x1]
        %v2236 = vld [vmem:[#allocation2 + $0x19a] sm:$0x1]
        %2237 = vst [vmem:[#allocation2] sm:$0x1] %v2219
        %2238 = vst [vmem:[#allocation2 + $0x18] sm:$0x1] %v2220
        %2239 = vst [vmem:[#allocation2 + $0x30] sm:$0x1] %v2221
        %2240 = vst [vmem:[#allocation2 + $0x48] sm:$0x1] %v2222
        %2241 = vst [vmem:[#allocation2 + $0x60] sm:$0x1] %v2223
        %2242 = vst [vmem:[#allocation2 + $0x78] sm:$0x1] %v2224
        %2243 = vst [vmem:[#allocation2 + $0x90] sm:$0x1] %v2225
        %2244 = vst [vmem:[#allocation2 + $0xa8] sm:$0x1] %v2226
        %2245 = vst [vmem:[#allocation2 + $0xc0] sm:$0x1] %v2227
        %2246 = vst [vmem:[#allocation2 + $0xd8] sm:$0x1] %v2228
        %2247 = vst [vmem:[#allocation2 + $0xf0] sm:$0x1] %v2229
        %2248 = vst [vmem:[#allocation2 + $0x108] sm:$0x1] %v2230
        %2249 = vst [vmem:[#allocation2 + $0x120] sm:$0x1] %v2231
        %2250 = vst [vmem:[#allocation2 + $0x138] sm:$0x1] %v2232
        %2251 = vst [vmem:[#allocation2 + $0x150] sm:$0x1] %v2233
        %2252 = vst [vmem:[#allocation2 + $0x168] sm:$0x1] %v2234
        %2253 = vst [vmem:[#allocation2 + $0x180] sm:$0x1] %v2235
        %2254 = vst [vmem:[#allocation2 + $0x198] sm:$0x1] %v2236
        %v2255 = vld [vmem:[#allocation2 + $0xf] sm:$0x1]
        %v2256 = vld [vmem:[#allocation2 + $0x27] sm:$0x1]
        %v2257 = vld [vmem:[#allocation2 + $0x3f] sm:$0x1]
        %v2258 = vld [vmem:[#allocation2 + $0x57] sm:$0x1]
        %v2259 = vld [vmem:[#allocation2 + $0x6f] sm:$0x1]
        %v2260 = vld [vmem:[#allocation2 + $0x87] sm:$0x1]
        %v2261 = vld [vmem:[#allocation2 + $0x9f] sm:$0x1]
        %v2262 = vld [vmem:[#allocation2 + $0xb7] sm:$0x1]
        %v2263 = vld [vmem:[#allocation2 + $0xcf] sm:$0x1]
        %v2264 = vld [vmem:[#allocation2 + $0xe7] sm:$0x1]
        %v2265 = vld [vmem:[#allocation2 + $0xff] sm:$0x1]
        %v2266 = vld [vmem:[#allocation2 + $0x117] sm:$0x1]
        %v2267 = vld [vmem:[#allocation2 + $0x12f] sm:$0x1]
        %v2268 = vld [vmem:[#allocation2 + $0x147] sm:$0x1]
        %v2269 = vld [vmem:[#allocation2 + $0x15f] sm:$0x1]
        %v2270 = vld [vmem:[#allocation2 + $0x177] sm:$0x1]
        %v2271 = vld [vmem:[#allocation2 + $0x18f] sm:$0x1]
        %v2272 = vld [vmem:[#allocation2 + $0x1a7] sm:$0x1]
        %2273 = vst [vmem:[#allocation2 + $0x11] sm:$0x1] %v2255
        %2274 = vst [vmem:[#allocation2 + $0x29] sm:$0x1] %v2256
        %2275 = vst [vmem:[#allocation2 + $0x41] sm:$0x1] %v2257
        %2276 = vst [vmem:[#allocation2 + $0x59] sm:$0x1] %v2258
        %2277 = vst [vmem:[#allocation2 + $0x71] sm:$0x1] %v2259
        %2278 = vst [vmem:[#allocation2 + $0x89] sm:$0x1] %v2260
        %2279 = vst [vmem:[#allocation2 + $0xa1] sm:$0x1] %v2261
        %2280 = vst [vmem:[#allocation2 + $0xb9] sm:$0x1] %v2262
        %2281 = vst [vmem:[#allocation2 + $0xd1] sm:$0x1] %v2263
        %2282 = vst [vmem:[#allocation2 + $0xe9] sm:$0x1] %v2264
        %2283 = vst [vmem:[#allocation2 + $0x101] sm:$0x1] %v2265
        %2284 = vst [vmem:[#allocation2 + $0x119] sm:$0x1] %v2266
        %2285 = vst [vmem:[#allocation2 + $0x131] sm:$0x1] %v2267
        %2286 = vst [vmem:[#allocation2 + $0x149] sm:$0x1] %v2268
        %2287 = vst [vmem:[#allocation2 + $0x161] sm:$0x1] %v2269
        %2288 = vst [vmem:[#allocation2 + $0x179] sm:$0x1] %v2270
        %2289 = vst [vmem:[#allocation2 + $0x191] sm:$0x1] %v2271
        %2290 = vst [vmem:[#allocation2 + $0x1a9] sm:$0x1] %v2272
        %v2291 = vld [vmem:[#allocation2] sm:$0xff]
        %v2292 = vld [vmem:[#allocation2 + $0x8] sm:$0xff]
        %v2293 = vld [vmem:[#allocation2 + $0x18] sm:$0xff]
        %v2294 = vld [vmem:[#allocation2 + $0x20] sm:$0xff]
        %v2295 = vld [vmem:[#allocation2 + $0x30] sm:$0xff]
        %v2296 = vld [vmem:[#allocation2 + $0x38] sm:$0xff]
        %v2297 = vld [vmem:[#allocation2 + $0x48] sm:$0xff]
        %v2298 = vld [vmem:[#allocation2 + $0x50] sm:$0xff]
        %v2299 = vld [vmem:[#allocation2 + $0x60] sm:$0xff]
        %v2300 = vld [vmem:[#allocation2 + $0x68] sm:$0xff]
        %v2301 = vld [vmem:[#allocation2 + $0x78] sm:$0xff]
        %v2302 = vld [vmem:[#allocation2 + $0x80] sm:$0xff]
        %v2303 = vld [vmem:[#allocation2 + $0x90] sm:$0xff]
        %v2304 = vld [vmem:[#allocation2 + $0x98] sm:$0xff]
        %v2305 = vld [vmem:[#allocation2 + $0xa8] sm:$0xff]
        %v2306 = vld [vmem:[#allocation2 + $0xb0] sm:$0xff]
        %v2307 = vld [vmem:[#allocation2 + $0xc0] sm:$0xff]
        %v2308 = vld [vmem:[#allocation2 + $0xc8] sm:$0xff]
        %v2309 = vld [vmem:[#allocation2 + $0xd8] sm:$0xff]
        %v2310 = vld [vmem:[#allocation2 + $0xe0] sm:$0xff]
        %v2311 = vld [vmem:[#allocation2 + $0xf0] sm:$0xff]
        %v2312 = vld [vmem:[#allocation2 + $0xf8] sm:$0xff]
        %v2313 = vld [vmem:[#allocation2 + $0x108] sm:$0xff]
        %v2314 = vld [vmem:[#allocation2 + $0x110] sm:$0xff]
        %v2315 = vld [vmem:[#allocation2 + $0x120] sm:$0xff]
        %v2316 = vld [vmem:[#allocation2 + $0x128] sm:$0xff]
        %v2317 = vld [vmem:[#allocation2 + $0x138] sm:$0xff]
        %v2318 = vld [vmem:[#allocation2 + $0x140] sm:$0xff]
        %v2319 = vld [vmem:[#allocation2 + $0x150] sm:$0xff]
        %v2320 = vld [vmem:[#allocation2 + $0x158] sm:$0xff]
        %v2321 = vld [vmem:[#allocation2 + $0x168] sm:$0xff]
        %v2322 = vld [vmem:[#allocation2 + $0x170] sm:$0xff]
        %v2323 = vld [vmem:[#allocation3] sm:$0xff]
        %v2324 = vld [vmem:[#allocation3 + $0x8] sm:$0xff]
        %v2325 = vld [vmem:[#allocation3 + $0x10] sm:$0xff]
        %v2326 = vld [vmem:[#allocation3 + $0x18] sm:$0xff]
        %v2327 = vld [vmem:[#allocation3 + $0x20] sm:$0xff]
        %v2328 = vld [vmem:[#allocation3 + $0x28] sm:$0xff]
        %v2329 = vld [vmem:[#allocation3 + $0x30] sm:$0xff]
        %v2330 = vld [vmem:[#allocation3 + $0x38] sm:$0xff]
        %v2331 = vld [vmem:[#allocation3 + $0x40] sm:$0xff]
        %v2332 = vld [vmem:[#allocation3 + $0x48] sm:$0xff]
        %v2333 = vld [vmem:[#allocation3 + $0x50] sm:$0xff]
        %v2334 = vld [vmem:[#allocation3 + $0x58] sm:$0xff]
        %v2335 = vld [vmem:[#allocation3 + $0x60] sm:$0xff]
        %v2336 = vld [vmem:[#allocation3 + $0x68] sm:$0xff]
        %v2337 = vld [vmem:[#allocation3 + $0x70] sm:$0xff]
        %v2338 = vld [vmem:[#allocation3 + $0x78] sm:$0xff]
        %v2339 = vld [vmem:[#allocation2 + $0x1] sm:$0xff]
        %v2340 = vld [vmem:[#allocation2 + $0x9] sm:$0xff]
        %v2341 = vld [vmem:[#allocation2 + $0x19] sm:$0xff]
        %v2342 = vld [vmem:[#allocation2 + $0x21] sm:$0xff]
        %v2343 = vld [vmem:[#allocation2 + $0x31] sm:$0xff]
        %v2344 = vld [vmem:[#allocation2 + $0x39] sm:$0xff]
        %v2345 = vld [vmem:[#allocation2 + $0x49] sm:$0xff]
        %v2346 = vld [vmem:[#allocation2 + $0x51] sm:$0xff]
        %v2347 = vld [vmem:[#allocation2 + $0x61] sm:$0xff]
        %v2348 = vld [vmem:[#allocation2 + $0x69] sm:$0xff]
        %v2349 = vld [vmem:[#allocation2 + $0x79] sm:$0xff]
        %v2350 = vld [vmem:[#allocation2 + $0x81] sm:$0xff]
        %v2351 = vld [vmem:[#allocation2 + $0x91] sm:$0xff]
        %v2352 = vld [vmem:[#allocation2 + $0x99] sm:$0xff]
        %v2353 = vld [vmem:[#allocation2 + $0xa9] sm:$0xff]
        %v2354 = vld [vmem:[#allocation2 + $0xb1] sm:$0xff]
        %v2355 = vld [vmem:[#allocation2 + $0xc1] sm:$0xff]
        %v2356 = vld [vmem:[#allocation2 + $0xc9] sm:$0xff]
        %v2357 = vld [vmem:[#allocation2 + $0xd9] sm:$0xff]
        %v2358 = vld [vmem:[#allocation2 + $0xe1] sm:$0xff]
        %v2359 = vld [vmem:[#allocation2 + $0xf1] sm:$0xff]
        %v2360 = vld [vmem:[#allocation2 + $0xf9] sm:$0xff]
        %v2361 = vld [vmem:[#allocation2 + $0x109] sm:$0xff]
        %v2362 = vld [vmem:[#allocation2 + $0x111] sm:$0xff]
        %v2363 = vld [vmem:[#allocation2 + $0x121] sm:$0xff]
        %v2364 = vld [vmem:[#allocation2 + $0x129] sm:$0xff]
        %v2365 = vld [vmem:[#allocation2 + $0x139] sm:$0xff]
        %v2366 = vld [vmem:[#allocation2 + $0x141] sm:$0xff]
        %v2367 = vld [vmem:[#allocation2 + $0x151] sm:$0xff]
        %v2368 = vld [vmem:[#allocation2 + $0x159] sm:$0xff]
        %v2369 = vld [vmem:[#allocation2 + $0x169] sm:$0xff]
        %v2370 = vld [vmem:[#allocation2 + $0x171] sm:$0xff]
        %s2371 = scalar_lea.vmem [#allocation3], 128
        %v2372 = vld [vmem:[%s2371] sm:$0xff]
        %v2373 = vld [vmem:[%s2371 + $0x8] sm:$0xff]
        %v2374 = vld [vmem:[%s2371 + $0x10] sm:$0xff]
        %v2375 = vld [vmem:[%s2371 + $0x18] sm:$0xff]
        %v2376 = vld [vmem:[%s2371 + $0x20] sm:$0xff]
        %v2377 = vld [vmem:[%s2371 + $0x28] sm:$0xff]
        %v2378 = vld [vmem:[%s2371 + $0x30] sm:$0xff]
        %v2379 = vld [vmem:[%s2371 + $0x38] sm:$0xff]
        %v2380 = vld [vmem:[%s2371 + $0x40] sm:$0xff]
        %v2381 = vld [vmem:[%s2371 + $0x48] sm:$0xff]
        %v2382 = vld [vmem:[%s2371 + $0x50] sm:$0xff]
        %v2383 = vld [vmem:[%s2371 + $0x58] sm:$0xff]
        %v2384 = vld [vmem:[%s2371 + $0x60] sm:$0xff]
        %v2385 = vld [vmem:[%s2371 + $0x68] sm:$0xff]
        %v2386 = vld [vmem:[%s2371 + $0x70] sm:$0xff]
        %v2387 = vld [vmem:[%s2371 + $0x78] sm:$0xff]
        %2388 = vmatpush.msra.mxu0 %v2387
        %2389 = vmatpush.msra.mxu0 %v2386
        %2390 = vmatpush.msra.mxu0 %v2385
        %2391 = vmatpush.msra.mxu0 %v2384
        %2392 = vmatpush.msra.mxu0 %v2383
        %2393 = vmatpush.msra.mxu0 %v2382
        %2394 = vmatpush.msra.mxu0 %v2381
        %2395 = vmatpush.msra.mxu0 %v2380
        %2396 = vmatpush.msra.mxu0 %v2379
        %2397 = vmatpush.msra.mxu0 %v2378
        %2398 = vmatpush.msra.mxu0 %v2377
        %2399 = vmatpush.msra.mxu0 %v2376
        %2400 = vmatpush.msra.mxu0 %v2375
        %2401 = vmatpush.msra.mxu0 %v2374
        %2402 = vmatpush.msra.mxu0 %v2373
        %2403 = vmatpush.msra.mxu0 %v2372
        %2404 = vmatmul.f32.gmra.mxu0 %v2339
        %v2405 = vpop.f32.mrf.mxu0
        %v2406 = vadd.f32 0.0, %v2405
        %2407 = vmatmul.f32.gmra.mxu0 %v2340
        %v2408 = vpop.f32.mrf.mxu0
        %v2409 = vadd.f32 0.0, %v2408
        %2410 = vmatmul.f32.gmra.mxu0 %v2341
        %v2411 = vpop.f32.mrf.mxu0
        %v2412 = vadd.f32 0.0, %v2411
        %2413 = vmatmul.f32.gmra.mxu0 %v2342
        %v2414 = vpop.f32.mrf.mxu0
        %v2415 = vadd.f32 0.0, %v2414
        %2416 = vmatmul.f32.gmra.mxu0 %v2343
        %v2417 = vpop.f32.mrf.mxu0
        %v2418 = vadd.f32 0.0, %v2417
        %2419 = vmatmul.f32.gmra.mxu0 %v2344
        %v2420 = vpop.f32.mrf.mxu0
        %v2421 = vadd.f32 0.0, %v2420
        %2422 = vmatmul.f32.gmra.mxu0 %v2345
        %v2423 = vpop.f32.mrf.mxu0
        %v2424 = vadd.f32 0.0, %v2423
        %2425 = vmatmul.f32.gmra.mxu0 %v2346
        %v2426 = vpop.f32.mrf.mxu0
        %v2427 = vadd.f32 0.0, %v2426
        %2428 = vmatmul.f32.gmra.mxu0 %v2347
        %v2429 = vpop.f32.mrf.mxu0
        %v2430 = vadd.f32 0.0, %v2429
        %2431 = vmatmul.f32.gmra.mxu0 %v2348
        %v2432 = vpop.f32.mrf.mxu0
        %v2433 = vadd.f32 0.0, %v2432
        %2434 = vmatmul.f32.gmra.mxu0 %v2349
        %v2435 = vpop.f32.mrf.mxu0
        %v2436 = vadd.f32 0.0, %v2435
        %2437 = vmatmul.f32.gmra.mxu0 %v2350
        %v2438 = vpop.f32.mrf.mxu0
        %v2439 = vadd.f32 0.0, %v2438
        %2440 = vmatmul.f32.gmra.mxu0 %v2351
        %v2441 = vpop.f32.mrf.mxu0
        %v2442 = vadd.f32 0.0, %v2441
        %2443 = vmatmul.f32.gmra.mxu0 %v2352
        %v2444 = vpop.f32.mrf.mxu0
        %v2445 = vadd.f32 0.0, %v2444
        %2446 = vmatmul.f32.gmra.mxu0 %v2353
        %v2447 = vpop.f32.mrf.mxu0
        %v2448 = vadd.f32 0.0, %v2447
        %2449 = vmatmul.f32.gmra.mxu0 %v2354
        %v2450 = vpop.f32.mrf.mxu0
        %v2451 = vadd.f32 0.0, %v2450
        %2452 = vmatmul.f32.gmra.mxu0 %v2355
        %v2453 = vpop.f32.mrf.mxu0
        %v2454 = vadd.f32 0.0, %v2453
        %2455 = vmatmul.f32.gmra.mxu0 %v2356
        %v2456 = vpop.f32.mrf.mxu0
        %v2457 = vadd.f32 0.0, %v2456
        %2458 = vmatmul.f32.gmra.mxu0 %v2357
        %v2459 = vpop.f32.mrf.mxu0
        %v2460 = vadd.f32 0.0, %v2459
        %2461 = vmatmul.f32.gmra.mxu0 %v2358
        %v2462 = vpop.f32.mrf.mxu0
        %v2463 = vadd.f32 0.0, %v2462
        %2464 = vmatmul.f32.gmra.mxu0 %v2359
        %v2465 = vpop.f32.mrf.mxu0
        %v2466 = vadd.f32 0.0, %v2465
        %2467 = vmatmul.f32.gmra.mxu0 %v2360
        %v2468 = vpop.f32.mrf.mxu0
        %v2469 = vadd.f32 0.0, %v2468
        %2470 = vmatmul.f32.gmra.mxu0 %v2361
        %v2471 = vpop.f32.mrf.mxu0
        %v2472 = vadd.f32 0.0, %v2471
        %2473 = vmatmul.f32.gmra.mxu0 %v2362
        %v2474 = vpop.f32.mrf.mxu0
        %v2475 = vadd.f32 0.0, %v2474
        %2476 = vmatmul.f32.gmra.mxu0 %v2363
        %v2477 = vpop.f32.mrf.mxu0
        %v2478 = vadd.f32 0.0, %v2477
        %2479 = vmatmul.f32.gmra.mxu0 %v2364
        %v2480 = vpop.f32.mrf.mxu0
        %v2481 = vadd.f32 0.0, %v2480
        %2482 = vmatmul.f32.gmra.mxu0 %v2365
        %v2483 = vpop.f32.mrf.mxu0
        %v2484 = vadd.f32 0.0, %v2483
        %2485 = vmatmul.f32.gmra.mxu0 %v2366
        %v2486 = vpop.f32.mrf.mxu0
        %v2487 = vadd.f32 0.0, %v2486
        %2488 = vmatmul.f32.gmra.mxu0 %v2367
        %v2489 = vpop.f32.mrf.mxu0
        %v2490 = vadd.f32 0.0, %v2489
        %2491 = vmatmul.f32.gmra.mxu0 %v2368
        %v2492 = vpop.f32.mrf.mxu0
        %v2493 = vadd.f32 0.0, %v2492
        %2494 = vmatmul.f32.gmra.mxu0 %v2369
        %v2495 = vpop.f32.mrf.mxu0
        %v2496 = vadd.f32 0.0, %v2495
        %2497 = vmatmul.f32.gmra.mxu0 %v2370
        %v2498 = vpop.f32.mrf.mxu0
        %v2499 = vadd.f32 0.0, %v2498
        %2500 = vdwg.mxu0
        %2501 = vmatpush.msra.mxu0 %v2338
        %2502 = vmatpush.msra.mxu0 %v2337
        %2503 = vmatpush.msra.mxu0 %v2336
        %2504 = vmatpush.msra.mxu0 %v2335
        %2505 = vmatpush.msra.mxu0 %v2334
        %2506 = vmatpush.msra.mxu0 %v2333
        %2507 = vmatpush.msra.mxu0 %v2332
        %2508 = vmatpush.msra.mxu0 %v2331
        %2509 = vmatpush.msra.mxu0 %v2330
        %2510 = vmatpush.msra.mxu0 %v2329
        %2511 = vmatpush.msra.mxu0 %v2328
        %2512 = vmatpush.msra.mxu0 %v2327
        %2513 = vmatpush.msra.mxu0 %v2326
        %2514 = vmatpush.msra.mxu0 %v2325
        %2515 = vmatpush.msra.mxu0 %v2324
        %2516 = vmatpush.msra.mxu0 %v2323
        %2517 = vmatmul.f32.gmra.mxu0 %v2291
        %v2518 = vpop.f32.mrf.mxu0
        %v2519 = vadd.f32 %v2406, %v2518
        %2520 = vmatmul.f32.gmra.mxu0 %v2292
        %v2521 = vpop.f32.mrf.mxu0
        %v2522 = vadd.f32 %v2409, %v2521
        %2523 = vmatmul.f32.gmra.mxu0 %v2293
        %v2524 = vpop.f32.mrf.mxu0
        %v2525 = vadd.f32 %v2412, %v2524
        %2526 = vmatmul.f32.gmra.mxu0 %v2294
        %v2527 = vpop.f32.mrf.mxu0
        %v2528 = vadd.f32 %v2415, %v2527
        %2529 = vmatmul.f32.gmra.mxu0 %v2295
        %v2530 = vpop.f32.mrf.mxu0
        %v2531 = vadd.f32 %v2418, %v2530
        %2532 = vmatmul.f32.gmra.mxu0 %v2296
        %v2533 = vpop.f32.mrf.mxu0
        %v2534 = vadd.f32 %v2421, %v2533
        %2535 = vmatmul.f32.gmra.mxu0 %v2297
        %v2536 = vpop.f32.mrf.mxu0
        %v2537 = vadd.f32 %v2424, %v2536
        %2538 = vmatmul.f32.gmra.mxu0 %v2298
        %v2539 = vpop.f32.mrf.mxu0
        %v2540 = vadd.f32 %v2427, %v2539
        %2541 = vmatmul.f32.gmra.mxu0 %v2299
        %v2542 = vpop.f32.mrf.mxu0
        %v2543 = vadd.f32 %v2430, %v2542
        %2544 = vmatmul.f32.gmra.mxu0 %v2300
        %v2545 = vpop.f32.mrf.mxu0
        %v2546 = vadd.f32 %v2433, %v2545
        %2547 = vmatmul.f32.gmra.mxu0 %v2301
        %v2548 = vpop.f32.mrf.mxu0
        %v2549 = vadd.f32 %v2436, %v2548
        %2550 = vmatmul.f32.gmra.mxu0 %v2302
        %v2551 = vpop.f32.mrf.mxu0
        %v2552 = vadd.f32 %v2439, %v2551
        %2553 = vmatmul.f32.gmra.mxu0 %v2303
        %v2554 = vpop.f32.mrf.mxu0
        %v2555 = vadd.f32 %v2442, %v2554
        %2556 = vmatmul.f32.gmra.mxu0 %v2304
        %v2557 = vpop.f32.mrf.mxu0
        %v2558 = vadd.f32 %v2445, %v2557
        %2559 = vmatmul.f32.gmra.mxu0 %v2305
        %v2560 = vpop.f32.mrf.mxu0
        %v2561 = vadd.f32 %v2448, %v2560
        %2562 = vmatmul.f32.gmra.mxu0 %v2306
        %v2563 = vpop.f32.mrf.mxu0
        %v2564 = vadd.f32 %v2451, %v2563
        %2565 = vmatmul.f32.gmra.mxu0 %v2307
        %v2566 = vpop.f32.mrf.mxu0
        %v2567 = vadd.f32 %v2454, %v2566
        %2568 = vmatmul.f32.gmra.mxu0 %v2308
        %v2569 = vpop.f32.mrf.mxu0
        %v2570 = vadd.f32 %v2457, %v2569
        %2571 = vmatmul.f32.gmra.mxu0 %v2309
        %v2572 = vpop.f32.mrf.mxu0
        %v2573 = vadd.f32 %v2460, %v2572
        %2574 = vmatmul.f32.gmra.mxu0 %v2310
        %v2575 = vpop.f32.mrf.mxu0
        %v2576 = vadd.f32 %v2463, %v2575
        %2577 = vmatmul.f32.gmra.mxu0 %v2311
        %v2578 = vpop.f32.mrf.mxu0
        %v2579 = vadd.f32 %v2466, %v2578
        %2580 = vmatmul.f32.gmra.mxu0 %v2312
        %v2581 = vpop.f32.mrf.mxu0
        %v2582 = vadd.f32 %v2469, %v2581
        %2583 = vmatmul.f32.gmra.mxu0 %v2313
        %v2584 = vpop.f32.mrf.mxu0
        %v2585 = vadd.f32 %v2472, %v2584
        %2586 = vmatmul.f32.gmra.mxu0 %v2314
        %v2587 = vpop.f32.mrf.mxu0
        %v2588 = vadd.f32 %v2475, %v2587
        %2589 = vmatmul.f32.gmra.mxu0 %v2315
        %v2590 = vpop.f32.mrf.mxu0
        %v2591 = vadd.f32 %v2478, %v2590
        %2592 = vmatmul.f32.gmra.mxu0 %v2316
        %v2593 = vpop.f32.mrf.mxu0
        %v2594 = vadd.f32 %v2481, %v2593
        %2595 = vmatmul.f32.gmra.mxu0 %v2317
        %v2596 = vpop.f32.mrf.mxu0
        %v2597 = vadd.f32 %v2484, %v2596
        %2598 = vmatmul.f32.gmra.mxu0 %v2318
        %v2599 = vpop.f32.mrf.mxu0
        %v2600 = vadd.f32 %v2487, %v2599
        %2601 = vmatmul.f32.gmra.mxu0 %v2319
        %v2602 = vpop.f32.mrf.mxu0
        %v2603 = vadd.f32 %v2490, %v2602
        %2604 = vmatmul.f32.gmra.mxu0 %v2320
        %v2605 = vpop.f32.mrf.mxu0
        %v2606 = vadd.f32 %v2493, %v2605
        %2607 = vmatmul.f32.gmra.mxu0 %v2321
        %v2608 = vpop.f32.mrf.mxu0
        %v2609 = vadd.f32 %v2496, %v2608
        %2610 = vmatmul.f32.gmra.mxu0 %v2322
        %v2611 = vpop.f32.mrf.mxu0
        %v2612 = vadd.f32 %v2499, %v2611
        %2613 = vdwg.mxu0
        %v2614 = vld [vmem:[#allocation2 + $0x2] sm:$0xff]
        %v2615 = vld [vmem:[#allocation2 + $0xa] sm:$0xff]
        %v2616 = vld [vmem:[#allocation2 + $0x1a] sm:$0xff]
        %v2617 = vld [vmem:[#allocation2 + $0x22] sm:$0xff]
        %v2618 = vld [vmem:[#allocation2 + $0x32] sm:$0xff]
        %v2619 = vld [vmem:[#allocation2 + $0x3a] sm:$0xff]
        %v2620 = vld [vmem:[#allocation2 + $0x4a] sm:$0xff]
        %v2621 = vld [vmem:[#allocation2 + $0x52] sm:$0xff]
        %v2622 = vld [vmem:[#allocation2 + $0x62] sm:$0xff]
        %v2623 = vld [vmem:[#allocation2 + $0x6a] sm:$0xff]
        %v2624 = vld [vmem:[#allocation2 + $0x7a] sm:$0xff]
        %v2625 = vld [vmem:[#allocation2 + $0x82] sm:$0xff]
        %v2626 = vld [vmem:[#allocation2 + $0x92] sm:$0xff]
        %v2627 = vld [vmem:[#allocation2 + $0x9a] sm:$0xff]
        %v2628 = vld [vmem:[#allocation2 + $0xaa] sm:$0xff]
        %v2629 = vld [vmem:[#allocation2 + $0xb2] sm:$0xff]
        %v2630 = vld [vmem:[#allocation2 + $0xc2] sm:$0xff]
        %v2631 = vld [vmem:[#allocation2 + $0xca] sm:$0xff]
        %v2632 = vld [vmem:[#allocation2 + $0xda] sm:$0xff]
        %v2633 = vld [vmem:[#allocation2 + $0xe2] sm:$0xff]
        %v2634 = vld [vmem:[#allocation2 + $0xf2] sm:$0xff]
        %v2635 = vld [vmem:[#allocation2 + $0xfa] sm:$0xff]
        %v2636 = vld [vmem:[#allocation2 + $0x10a] sm:$0xff]
        %v2637 = vld [vmem:[#allocation2 + $0x112] sm:$0xff]
        %v2638 = vld [vmem:[#allocation2 + $0x122] sm:$0xff]
        %v2639 = vld [vmem:[#allocation2 + $0x12a] sm:$0xff]
        %v2640 = vld [vmem:[#allocation2 + $0x13a] sm:$0xff]
        %v2641 = vld [vmem:[#allocation2 + $0x142] sm:$0xff]
        %v2642 = vld [vmem:[#allocation2 + $0x152] sm:$0xff]
        %v2643 = vld [vmem:[#allocation2 + $0x15a] sm:$0xff]
        %v2644 = vld [vmem:[#allocation2 + $0x16a] sm:$0xff]
        %v2645 = vld [vmem:[#allocation2 + $0x172] sm:$0xff]
        %s2646 = scalar_lea.vmem [#allocation3], 256
        %v2647 = vld [vmem:[%s2646] sm:$0xff]
        %v2648 = vld [vmem:[%s2646 + $0x8] sm:$0xff]
        %v2649 = vld [vmem:[%s2646 + $0x10] sm:$0xff]
        %v2650 = vld [vmem:[%s2646 + $0x18] sm:$0xff]
        %v2651 = vld [vmem:[%s2646 + $0x20] sm:$0xff]
        %v2652 = vld [vmem:[%s2646 + $0x28] sm:$0xff]
        %v2653 = vld [vmem:[%s2646 + $0x30] sm:$0xff]
        %v2654 = vld [vmem:[%s2646 + $0x38] sm:$0xff]
        %v2655 = vld [vmem:[%s2646 + $0x40] sm:$0xff]
        %v2656 = vld [vmem:[%s2646 + $0x48] sm:$0xff]
        %v2657 = vld [vmem:[%s2646 + $0x50] sm:$0xff]
        %v2658 = vld [vmem:[%s2646 + $0x58] sm:$0xff]
        %v2659 = vld [vmem:[%s2646 + $0x60] sm:$0xff]
        %v2660 = vld [vmem:[%s2646 + $0x68] sm:$0xff]
        %v2661 = vld [vmem:[%s2646 + $0x70] sm:$0xff]
        %v2662 = vld [vmem:[%s2646 + $0x78] sm:$0xff]
        %2663 = vmatpush.msra.mxu0 %v2662
        %2664 = vmatpush.msra.mxu0 %v2661
        %2665 = vmatpush.msra.mxu0 %v2660
        %2666 = vmatpush.msra.mxu0 %v2659
        %2667 = vmatpush.msra.mxu0 %v2658
        %2668 = vmatpush.msra.mxu0 %v2657
        %2669 = vmatpush.msra.mxu0 %v2656
        %2670 = vmatpush.msra.mxu0 %v2655
        %2671 = vmatpush.msra.mxu0 %v2654
        %2672 = vmatpush.msra.mxu0 %v2653
        %2673 = vmatpush.msra.mxu0 %v2652
        %2674 = vmatpush.msra.mxu0 %v2651
        %2675 = vmatpush.msra.mxu0 %v2650
        %2676 = vmatpush.msra.mxu0 %v2649
        %2677 = vmatpush.msra.mxu0 %v2648
        %2678 = vmatpush.msra.mxu0 %v2647
        %2679 = vmatmul.f32.gmra.mxu0 %v2614
        %v2680 = vpop.f32.mrf.mxu0
        %v2681 = vadd.f32 0.0, %v2680
        %2682 = vmatmul.f32.gmra.mxu0 %v2615
        %v2683 = vpop.f32.mrf.mxu0
        %v2684 = vadd.f32 0.0, %v2683
        %2685 = vmatmul.f32.gmra.mxu0 %v2616
        %v2686 = vpop.f32.mrf.mxu0
        %v2687 = vadd.f32 0.0, %v2686
        %2688 = vmatmul.f32.gmra.mxu0 %v2617
        %v2689 = vpop.f32.mrf.mxu0
        %v2690 = vadd.f32 0.0, %v2689
        %2691 = vmatmul.f32.gmra.mxu0 %v2618
        %v2692 = vpop.f32.mrf.mxu0
        %v2693 = vadd.f32 0.0, %v2692
        %2694 = vmatmul.f32.gmra.mxu0 %v2619
        %v2695 = vpop.f32.mrf.mxu0
        %v2696 = vadd.f32 0.0, %v2695
        %2697 = vmatmul.f32.gmra.mxu0 %v2620
        %v2698 = vpop.f32.mrf.mxu0
        %v2699 = vadd.f32 0.0, %v2698
        %2700 = vmatmul.f32.gmra.mxu0 %v2621
        %v2701 = vpop.f32.mrf.mxu0
        %v2702 = vadd.f32 0.0, %v2701
        %2703 = vmatmul.f32.gmra.mxu0 %v2622
        %v2704 = vpop.f32.mrf.mxu0
        %v2705 = vadd.f32 0.0, %v2704
        %2706 = vmatmul.f32.gmra.mxu0 %v2623
        %v2707 = vpop.f32.mrf.mxu0
        %v2708 = vadd.f32 0.0, %v2707
        %2709 = vmatmul.f32.gmra.mxu0 %v2624
        %v2710 = vpop.f32.mrf.mxu0
        %v2711 = vadd.f32 0.0, %v2710
        %2712 = vmatmul.f32.gmra.mxu0 %v2625
        %v2713 = vpop.f32.mrf.mxu0
        %v2714 = vadd.f32 0.0, %v2713
        %2715 = vmatmul.f32.gmra.mxu0 %v2626
        %v2716 = vpop.f32.mrf.mxu0
        %v2717 = vadd.f32 0.0, %v2716
        %2718 = vmatmul.f32.gmra.mxu0 %v2627
        %v2719 = vpop.f32.mrf.mxu0
        %v2720 = vadd.f32 0.0, %v2719
        %2721 = vmatmul.f32.gmra.mxu0 %v2628
        %v2722 = vpop.f32.mrf.mxu0
        %v2723 = vadd.f32 0.0, %v2722
        %2724 = vmatmul.f32.gmra.mxu0 %v2629
        %v2725 = vpop.f32.mrf.mxu0
        %v2726 = vadd.f32 0.0, %v2725
        %2727 = vmatmul.f32.gmra.mxu0 %v2630
        %v2728 = vpop.f32.mrf.mxu0
        %v2729 = vadd.f32 0.0, %v2728
        %2730 = vmatmul.f32.gmra.mxu0 %v2631
        %v2731 = vpop.f32.mrf.mxu0
        %v2732 = vadd.f32 0.0, %v2731
        %2733 = vmatmul.f32.gmra.mxu0 %v2632
        %v2734 = vpop.f32.mrf.mxu0
        %v2735 = vadd.f32 0.0, %v2734
        %2736 = vmatmul.f32.gmra.mxu0 %v2633
        %v2737 = vpop.f32.mrf.mxu0
        %v2738 = vadd.f32 0.0, %v2737
        %2739 = vmatmul.f32.gmra.mxu0 %v2634
        %v2740 = vpop.f32.mrf.mxu0
        %v2741 = vadd.f32 0.0, %v2740
        %2742 = vmatmul.f32.gmra.mxu0 %v2635
        %v2743 = vpop.f32.mrf.mxu0
        %v2744 = vadd.f32 0.0, %v2743
        %2745 = vmatmul.f32.gmra.mxu0 %v2636
        %v2746 = vpop.f32.mrf.mxu0
        %v2747 = vadd.f32 0.0, %v2746
        %2748 = vmatmul.f32.gmra.mxu0 %v2637
        %v2749 = vpop.f32.mrf.mxu0
        %v2750 = vadd.f32 0.0, %v2749
        %2751 = vmatmul.f32.gmra.mxu0 %v2638
        %v2752 = vpop.f32.mrf.mxu0
        %v2753 = vadd.f32 0.0, %v2752
        %2754 = vmatmul.f32.gmra.mxu0 %v2639
        %v2755 = vpop.f32.mrf.mxu0
        %v2756 = vadd.f32 0.0, %v2755
        %2757 = vmatmul.f32.gmra.mxu0 %v2640
        %v2758 = vpop.f32.mrf.mxu0
        %v2759 = vadd.f32 0.0, %v2758
        %2760 = vmatmul.f32.gmra.mxu0 %v2641
        %v2761 = vpop.f32.mrf.mxu0
        %v2762 = vadd.f32 0.0, %v2761
        %2763 = vmatmul.f32.gmra.mxu0 %v2642
        %v2764 = vpop.f32.mrf.mxu0
        %v2765 = vadd.f32 0.0, %v2764
        %2766 = vmatmul.f32.gmra.mxu0 %v2643
        %v2767 = vpop.f32.mrf.mxu0
        %v2768 = vadd.f32 0.0, %v2767
        %2769 = vmatmul.f32.gmra.mxu0 %v2644
        %v2770 = vpop.f32.mrf.mxu0
        %v2771 = vadd.f32 0.0, %v2770
        %2772 = vmatmul.f32.gmra.mxu0 %v2645
        %v2773 = vpop.f32.mrf.mxu0
        %v2774 = vadd.f32 0.0, %v2773
        %2775 = vdwg.mxu0
        %v2776 = vadd.f32 %v2519, %v2681
        %v2777 = vadd.f32 %v2522, %v2684
        %v2778 = vadd.f32 %v2525, %v2687
        %v2779 = vadd.f32 %v2528, %v2690
        %v2780 = vadd.f32 %v2531, %v2693
        %v2781 = vadd.f32 %v2534, %v2696
        %v2782 = vadd.f32 %v2537, %v2699
        %v2783 = vadd.f32 %v2540, %v2702
        %v2784 = vadd.f32 %v2543, %v2705
        %v2785 = vadd.f32 %v2546, %v2708
        %v2786 = vadd.f32 %v2549, %v2711
        %v2787 = vadd.f32 %v2552, %v2714
        %v2788 = vadd.f32 %v2555, %v2717
        %v2789 = vadd.f32 %v2558, %v2720
        %v2790 = vadd.f32 %v2561, %v2723
        %v2791 = vadd.f32 %v2564, %v2726
        %v2792 = vadd.f32 %v2567, %v2729
        %v2793 = vadd.f32 %v2570, %v2732
        %v2794 = vadd.f32 %v2573, %v2735
        %v2795 = vadd.f32 %v2576, %v2738
        %v2796 = vadd.f32 %v2579, %v2741
        %v2797 = vadd.f32 %v2582, %v2744
        %v2798 = vadd.f32 %v2585, %v2747
        %v2799 = vadd.f32 %v2588, %v2750
        %v2800 = vadd.f32 %v2591, %v2753
        %v2801 = vadd.f32 %v2594, %v2756
        %v2802 = vadd.f32 %v2597, %v2759
        %v2803 = vadd.f32 %v2600, %v2762
        %v2804 = vadd.f32 %v2603, %v2765
        %v2805 = vadd.f32 %v2606, %v2768
        %v2806 = vadd.f32 %v2609, %v2771
        %v2807 = vadd.f32 %v2612, %v2774
        %v2808 = vld [vmem:[%s2181] sm:$0xff]
        %v2809 = vld [vmem:[%s2181 + $0x8] sm:$0xff]
        %v2810 = vld [vmem:[%s2181 + $0x18] sm:$0xff]
        %v2811 = vld [vmem:[%s2181 + $0x20] sm:$0xff]
        %v2812 = vld [vmem:[%s2181 + $0x30] sm:$0xff]
        %v2813 = vld [vmem:[%s2181 + $0x38] sm:$0xff]
        %v2814 = vld [vmem:[%s2181 + $0x48] sm:$0xff]
        %v2815 = vld [vmem:[%s2181 + $0x50] sm:$0xff]
        %v2816 = vld [vmem:[%s2181 + $0x60] sm:$0xff]
        %v2817 = vld [vmem:[%s2181 + $0x68] sm:$0xff]
        %v2818 = vld [vmem:[%s2181 + $0x78] sm:$0xff]
        %v2819 = vld [vmem:[%s2181 + $0x80] sm:$0xff]
        %v2820 = vld [vmem:[%s2181 + $0x90] sm:$0xff]
        %v2821 = vld [vmem:[%s2181 + $0x98] sm:$0xff]
        %v2822 = vld [vmem:[%s2181 + $0xa8] sm:$0xff]
        %v2823 = vld [vmem:[%s2181 + $0xb0] sm:$0xff]
        %v2824 = vld [vmem:[%s2181 + $0xc0] sm:$0xff]
        %v2825 = vld [vmem:[%s2181 + $0xc8] sm:$0xff]
        %v2826 = vld [vmem:[%s2181 + $0xd8] sm:$0xff]
        %v2827 = vld [vmem:[%s2181 + $0xe0] sm:$0xff]
        %v2828 = vld [vmem:[%s2181 + $0xf0] sm:$0xff]
        %v2829 = vld [vmem:[%s2181 + $0xf8] sm:$0xff]
        %v2830 = vld [vmem:[%s2181 + $0x108] sm:$0xff]
        %v2831 = vld [vmem:[%s2181 + $0x110] sm:$0xff]
        %v2832 = vld [vmem:[%s2181 + $0x120] sm:$0xff]
        %v2833 = vld [vmem:[%s2181 + $0x128] sm:$0xff]
        %v2834 = vld [vmem:[%s2181 + $0x138] sm:$0xff]
        %v2835 = vld [vmem:[%s2181 + $0x140] sm:$0xff]
        %v2836 = vld [vmem:[%s2181 + $0x150] sm:$0xff]
        %v2837 = vld [vmem:[%s2181 + $0x158] sm:$0xff]
        %v2838 = vld [vmem:[%s2181 + $0x168] sm:$0xff]
        %v2839 = vld [vmem:[%s2181 + $0x170] sm:$0xff]
        %s2840 = scalar_lea.vmem [#allocation3], 384
        %v2841 = vld [vmem:[%s2840] sm:$0xff]
        %v2842 = vld [vmem:[%s2840 + $0x8] sm:$0xff]
        %v2843 = vld [vmem:[%s2840 + $0x10] sm:$0xff]
        %v2844 = vld [vmem:[%s2840 + $0x18] sm:$0xff]
        %v2845 = vld [vmem:[%s2840 + $0x20] sm:$0xff]
        %v2846 = vld [vmem:[%s2840 + $0x28] sm:$0xff]
        %v2847 = vld [vmem:[%s2840 + $0x30] sm:$0xff]
        %v2848 = vld [vmem:[%s2840 + $0x38] sm:$0xff]
        %v2849 = vld [vmem:[%s2840 + $0x40] sm:$0xff]
        %v2850 = vld [vmem:[%s2840 + $0x48] sm:$0xff]
        %v2851 = vld [vmem:[%s2840 + $0x50] sm:$0xff]
        %v2852 = vld [vmem:[%s2840 + $0x58] sm:$0xff]
        %v2853 = vld [vmem:[%s2840 + $0x60] sm:$0xff]
        %v2854 = vld [vmem:[%s2840 + $0x68] sm:$0xff]
        %v2855 = vld [vmem:[%s2840 + $0x70] sm:$0xff]
        %v2856 = vld [vmem:[%s2840 + $0x78] sm:$0xff]
        %2857 = vmatpush.msra.mxu0 %v2856
        %2858 = vmatpush.msra.mxu0 %v2855
        %2859 = vmatpush.msra.mxu0 %v2854
        %2860 = vmatpush.msra.mxu0 %v2853
        %2861 = vmatpush.msra.mxu0 %v2852
        %2862 = vmatpush.msra.mxu0 %v2851
        %2863 = vmatpush.msra.mxu0 %v2850
        %2864 = vmatpush.msra.mxu0 %v2849
        %2865 = vmatpush.msra.mxu0 %v2848
        %2866 = vmatpush.msra.mxu0 %v2847
        %2867 = vmatpush.msra.mxu0 %v2846
        %2868 = vmatpush.msra.mxu0 %v2845
        %2869 = vmatpush.msra.mxu0 %v2844
        %2870 = vmatpush.msra.mxu0 %v2843
        %2871 = vmatpush.msra.mxu0 %v2842
        %2872 = vmatpush.msra.mxu0 %v2841
        %2873 = vmatmul.f32.gmra.mxu0 %v2808
        %v2874 = vpop.f32.mrf.mxu0
        %v2875 = vadd.f32 0.0, %v2874
        %2876 = vmatmul.f32.gmra.mxu0 %v2809
        %v2877 = vpop.f32.mrf.mxu0
        %v2878 = vadd.f32 0.0, %v2877
        %2879 = vmatmul.f32.gmra.mxu0 %v2810
        %v2880 = vpop.f32.mrf.mxu0
        %v2881 = vadd.f32 0.0, %v2880
        %2882 = vmatmul.f32.gmra.mxu0 %v2811
        %v2883 = vpop.f32.mrf.mxu0
        %v2884 = vadd.f32 0.0, %v2883
        %2885 = vmatmul.f32.gmra.mxu0 %v2812
        %v2886 = vpop.f32.mrf.mxu0
        %v2887 = vadd.f32 0.0, %v2886
        %2888 = vmatmul.f32.gmra.mxu0 %v2813
        %v2889 = vpop.f32.mrf.mxu0
        %v2890 = vadd.f32 0.0, %v2889
        %2891 = vmatmul.f32.gmra.mxu0 %v2814
        %v2892 = vpop.f32.mrf.mxu0
        %v2893 = vadd.f32 0.0, %v2892
        %2894 = vmatmul.f32.gmra.mxu0 %v2815
        %v2895 = vpop.f32.mrf.mxu0
        %v2896 = vadd.f32 0.0, %v2895
        %2897 = vmatmul.f32.gmra.mxu0 %v2816
        %v2898 = vpop.f32.mrf.mxu0
        %v2899 = vadd.f32 0.0, %v2898
        %2900 = vmatmul.f32.gmra.mxu0 %v2817
        %v2901 = vpop.f32.mrf.mxu0
        %v2902 = vadd.f32 0.0, %v2901
        %2903 = vmatmul.f32.gmra.mxu0 %v2818
        %v2904 = vpop.f32.mrf.mxu0
        %v2905 = vadd.f32 0.0, %v2904
        %2906 = vmatmul.f32.gmra.mxu0 %v2819
        %v2907 = vpop.f32.mrf.mxu0
        %v2908 = vadd.f32 0.0, %v2907
        %2909 = vmatmul.f32.gmra.mxu0 %v2820
        %v2910 = vpop.f32.mrf.mxu0
        %v2911 = vadd.f32 0.0, %v2910
        %2912 = vmatmul.f32.gmra.mxu0 %v2821
        %v2913 = vpop.f32.mrf.mxu0
        %v2914 = vadd.f32 0.0, %v2913
        %2915 = vmatmul.f32.gmra.mxu0 %v2822
        %v2916 = vpop.f32.mrf.mxu0
        %v2917 = vadd.f32 0.0, %v2916
        %2918 = vmatmul.f32.gmra.mxu0 %v2823
        %v2919 = vpop.f32.mrf.mxu0
        %v2920 = vadd.f32 0.0, %v2919
        %2921 = vmatmul.f32.gmra.mxu0 %v2824
        %v2922 = vpop.f32.mrf.mxu0
        %v2923 = vadd.f32 0.0, %v2922
        %2924 = vmatmul.f32.gmra.mxu0 %v2825
        %v2925 = vpop.f32.mrf.mxu0
        %v2926 = vadd.f32 0.0, %v2925
        %2927 = vmatmul.f32.gmra.mxu0 %v2826
        %v2928 = vpop.f32.mrf.mxu0
        %v2929 = vadd.f32 0.0, %v2928
        %2930 = vmatmul.f32.gmra.mxu0 %v2827
        %v2931 = vpop.f32.mrf.mxu0
        %v2932 = vadd.f32 0.0, %v2931
        %2933 = vmatmul.f32.gmra.mxu0 %v2828
        %v2934 = vpop.f32.mrf.mxu0
        %v2935 = vadd.f32 0.0, %v2934
        %2936 = vmatmul.f32.gmra.mxu0 %v2829
        %v2937 = vpop.f32.mrf.mxu0
        %v2938 = vadd.f32 0.0, %v2937
        %2939 = vmatmul.f32.gmra.mxu0 %v2830
        %v2940 = vpop.f32.mrf.mxu0
        %v2941 = vadd.f32 0.0, %v2940
        %2942 = vmatmul.f32.gmra.mxu0 %v2831
        %v2943 = vpop.f32.mrf.mxu0
        %v2944 = vadd.f32 0.0, %v2943
        %2945 = vmatmul.f32.gmra.mxu0 %v2832
        %v2946 = vpop.f32.mrf.mxu0
        %v2947 = vadd.f32 0.0, %v2946
        %2948 = vmatmul.f32.gmra.mxu0 %v2833
        %v2949 = vpop.f32.mrf.mxu0
        %v2950 = vadd.f32 0.0, %v2949
        %2951 = vmatmul.f32.gmra.mxu0 %v2834
        %v2952 = vpop.f32.mrf.mxu0
        %v2953 = vadd.f32 0.0, %v2952
        %2954 = vmatmul.f32.gmra.mxu0 %v2835
        %v2955 = vpop.f32.mrf.mxu0
        %v2956 = vadd.f32 0.0, %v2955
        %2957 = vmatmul.f32.gmra.mxu0 %v2836
        %v2958 = vpop.f32.mrf.mxu0
        %v2959 = vadd.f32 0.0, %v2958
        %2960 = vmatmul.f32.gmra.mxu0 %v2837
        %v2961 = vpop.f32.mrf.mxu0
        %v2962 = vadd.f32 0.0, %v2961
        %2963 = vmatmul.f32.gmra.mxu0 %v2838
        %v2964 = vpop.f32.mrf.mxu0
        %v2965 = vadd.f32 0.0, %v2964
        %2966 = vmatmul.f32.gmra.mxu0 %v2839
        %v2967 = vpop.f32.mrf.mxu0
        %v2968 = vadd.f32 0.0, %v2967
        %2969 = vdwg.mxu0
        %v2970 = vadd.f32 %v2776, %v2875
        %v2971 = vadd.f32 %v2777, %v2878
        %v2972 = vadd.f32 %v2778, %v2881
        %v2973 = vadd.f32 %v2779, %v2884
        %v2974 = vadd.f32 %v2780, %v2887
        %v2975 = vadd.f32 %v2781, %v2890
        %v2976 = vadd.f32 %v2782, %v2893
        %v2977 = vadd.f32 %v2783, %v2896
        %v2978 = vadd.f32 %v2784, %v2899
        %v2979 = vadd.f32 %v2785, %v2902
        %v2980 = vadd.f32 %v2786, %v2905
        %v2981 = vadd.f32 %v2787, %v2908
        %v2982 = vadd.f32 %v2788, %v2911
        %v2983 = vadd.f32 %v2789, %v2914
        %v2984 = vadd.f32 %v2790, %v2917
        %v2985 = vadd.f32 %v2791, %v2920
        %v2986 = vadd.f32 %v2792, %v2923
        %v2987 = vadd.f32 %v2793, %v2926
        %v2988 = vadd.f32 %v2794, %v2929
        %v2989 = vadd.f32 %v2795, %v2932
        %v2990 = vadd.f32 %v2796, %v2935
        %v2991 = vadd.f32 %v2797, %v2938
        %v2992 = vadd.f32 %v2798, %v2941
        %v2993 = vadd.f32 %v2799, %v2944
        %v2994 = vadd.f32 %v2800, %v2947
        %v2995 = vadd.f32 %v2801, %v2950
        %v2996 = vadd.f32 %v2802, %v2953
        %v2997 = vadd.f32 %v2803, %v2956
        %v2998 = vadd.f32 %v2804, %v2959
        %v2999 = vadd.f32 %v2805, %v2962
        %v3000 = vadd.f32 %v2806, %v2965
        %v3001 = vadd.f32 %v2807, %v2968
        %v3002 = vld [vmem:[%s2181 + $0x1] sm:$0xff]
        %v3003 = vld [vmem:[%s2181 + $0x9] sm:$0xff]
        %v3004 = vld [vmem:[%s2181 + $0x19] sm:$0xff]
        %v3005 = vld [vmem:[%s2181 + $0x21] sm:$0xff]
        %v3006 = vld [vmem:[%s2181 + $0x31] sm:$0xff]
        %v3007 = vld [vmem:[%s2181 + $0x39] sm:$0xff]
        %v3008 = vld [vmem:[%s2181 + $0x49] sm:$0xff]
        %v3009 = vld [vmem:[%s2181 + $0x51] sm:$0xff]
        %v3010 = vld [vmem:[%s2181 + $0x61] sm:$0xff]
        %v3011 = vld [vmem:[%s2181 + $0x69] sm:$0xff]
        %v3012 = vld [vmem:[%s2181 + $0x79] sm:$0xff]
        %v3013 = vld [vmem:[%s2181 + $0x81] sm:$0xff]
        %v3014 = vld [vmem:[%s2181 + $0x91] sm:$0xff]
        %v3015 = vld [vmem:[%s2181 + $0x99] sm:$0xff]
        %v3016 = vld [vmem:[%s2181 + $0xa9] sm:$0xff]
        %v3017 = vld [vmem:[%s2181 + $0xb1] sm:$0xff]
        %v3018 = vld [vmem:[%s2181 + $0xc1] sm:$0xff]
        %v3019 = vld [vmem:[%s2181 + $0xc9] sm:$0xff]
        %v3020 = vld [vmem:[%s2181 + $0xd9] sm:$0xff]
        %v3021 = vld [vmem:[%s2181 + $0xe1] sm:$0xff]
        %v3022 = vld [vmem:[%s2181 + $0xf1] sm:$0xff]
        %v3023 = vld [vmem:[%s2181 + $0xf9] sm:$0xff]
        %v3024 = vld [vmem:[%s2181 + $0x109] sm:$0xff]
        %v3025 = vld [vmem:[%s2181 + $0x111] sm:$0xff]
        %v3026 = vld [vmem:[%s2181 + $0x121] sm:$0xff]
        %v3027 = vld [vmem:[%s2181 + $0x129] sm:$0xff]
        %v3028 = vld [vmem:[%s2181 + $0x139] sm:$0xff]
        %v3029 = vld [vmem:[%s2181 + $0x141] sm:$0xff]
        %v3030 = vld [vmem:[%s2181 + $0x151] sm:$0xff]
        %v3031 = vld [vmem:[%s2181 + $0x159] sm:$0xff]
        %v3032 = vld [vmem:[%s2181 + $0x169] sm:$0xff]
        %v3033 = vld [vmem:[%s2181 + $0x171] sm:$0xff]
        %s3034 = scalar_lea.vmem [#allocation3], 512
        %v3035 = vld [vmem:[%s3034] sm:$0xff]
        %v3036 = vld [vmem:[%s3034 + $0x8] sm:$0xff]
        %v3037 = vld [vmem:[%s3034 + $0x10] sm:$0xff]
        %v3038 = vld [vmem:[%s3034 + $0x18] sm:$0xff]
        %v3039 = vld [vmem:[%s3034 + $0x20] sm:$0xff]
        %v3040 = vld [vmem:[%s3034 + $0x28] sm:$0xff]
        %v3041 = vld [vmem:[%s3034 + $0x30] sm:$0xff]
        %v3042 = vld [vmem:[%s3034 + $0x38] sm:$0xff]
        %v3043 = vld [vmem:[%s3034 + $0x40] sm:$0xff]
        %v3044 = vld [vmem:[%s3034 + $0x48] sm:$0xff]
        %v3045 = vld [vmem:[%s3034 + $0x50] sm:$0xff]
        %v3046 = vld [vmem:[%s3034 + $0x58] sm:$0xff]
        %v3047 = vld [vmem:[%s3034 + $0x60] sm:$0xff]
        %v3048 = vld [vmem:[%s3034 + $0x68] sm:$0xff]
        %v3049 = vld [vmem:[%s3034 + $0x70] sm:$0xff]
        %v3050 = vld [vmem:[%s3034 + $0x78] sm:$0xff]
        %3051 = vmatpush.msra.mxu0 %v3050
        %3052 = vmatpush.msra.mxu0 %v3049
        %3053 = vmatpush.msra.mxu0 %v3048
        %3054 = vmatpush.msra.mxu0 %v3047
        %3055 = vmatpush.msra.mxu0 %v3046
        %3056 = vmatpush.msra.mxu0 %v3045
        %3057 = vmatpush.msra.mxu0 %v3044
        %3058 = vmatpush.msra.mxu0 %v3043
        %3059 = vmatpush.msra.mxu0 %v3042
        %3060 = vmatpush.msra.mxu0 %v3041
        %3061 = vmatpush.msra.mxu0 %v3040
        %3062 = vmatpush.msra.mxu0 %v3039
        %3063 = vmatpush.msra.mxu0 %v3038
        %3064 = vmatpush.msra.mxu0 %v3037
        %3065 = vmatpush.msra.mxu0 %v3036
        %3066 = vmatpush.msra.mxu0 %v3035
        %3067 = vmatmul.f32.gmra.mxu0 %v3002
        %v3068 = vpop.f32.mrf.mxu0
        %v3069 = vadd.f32 0.0, %v3068
        %3070 = vmatmul.f32.gmra.mxu0 %v3003
        %v3071 = vpop.f32.mrf.mxu0
        %v3072 = vadd.f32 0.0, %v3071
        %3073 = vmatmul.f32.gmra.mxu0 %v3004
        %v3074 = vpop.f32.mrf.mxu0
        %v3075 = vadd.f32 0.0, %v3074
        %3076 = vmatmul.f32.gmra.mxu0 %v3005
        %v3077 = vpop.f32.mrf.mxu0
        %v3078 = vadd.f32 0.0, %v3077
        %3079 = vmatmul.f32.gmra.mxu0 %v3006
        %v3080 = vpop.f32.mrf.mxu0
        %v3081 = vadd.f32 0.0, %v3080
        %3082 = vmatmul.f32.gmra.mxu0 %v3007
        %v3083 = vpop.f32.mrf.mxu0
        %v3084 = vadd.f32 0.0, %v3083
        %3085 = vmatmul.f32.gmra.mxu0 %v3008
        %v3086 = vpop.f32.mrf.mxu0
        %v3087 = vadd.f32 0.0, %v3086
        %3088 = vmatmul.f32.gmra.mxu0 %v3009
        %v3089 = vpop.f32.mrf.mxu0
        %v3090 = vadd.f32 0.0, %v3089
        %3091 = vmatmul.f32.gmra.mxu0 %v3010
        %v3092 = vpop.f32.mrf.mxu0
        %v3093 = vadd.f32 0.0, %v3092
        %3094 = vmatmul.f32.gmra.mxu0 %v3011
        %v3095 = vpop.f32.mrf.mxu0
        %v3096 = vadd.f32 0.0, %v3095
        %3097 = vmatmul.f32.gmra.mxu0 %v3012
        %v3098 = vpop.f32.mrf.mxu0
        %v3099 = vadd.f32 0.0, %v3098
        %3100 = vmatmul.f32.gmra.mxu0 %v3013
        %v3101 = vpop.f32.mrf.mxu0
        %v3102 = vadd.f32 0.0, %v3101
        %3103 = vmatmul.f32.gmra.mxu0 %v3014
        %v3104 = vpop.f32.mrf.mxu0
        %v3105 = vadd.f32 0.0, %v3104
        %3106 = vmatmul.f32.gmra.mxu0 %v3015
        %v3107 = vpop.f32.mrf.mxu0
        %v3108 = vadd.f32 0.0, %v3107
        %3109 = vmatmul.f32.gmra.mxu0 %v3016
        %v3110 = vpop.f32.mrf.mxu0
        %v3111 = vadd.f32 0.0, %v3110
        %3112 = vmatmul.f32.gmra.mxu0 %v3017
        %v3113 = vpop.f32.mrf.mxu0
        %v3114 = vadd.f32 0.0, %v3113
        %3115 = vmatmul.f32.gmra.mxu0 %v3018
        %v3116 = vpop.f32.mrf.mxu0
        %v3117 = vadd.f32 0.0, %v3116
        %3118 = vmatmul.f32.gmra.mxu0 %v3019
        %v3119 = vpop.f32.mrf.mxu0
        %v3120 = vadd.f32 0.0, %v3119
        %3121 = vmatmul.f32.gmra.mxu0 %v3020
        %v3122 = vpop.f32.mrf.mxu0
        %v3123 = vadd.f32 0.0, %v3122
        %3124 = vmatmul.f32.gmra.mxu0 %v3021
        %v3125 = vpop.f32.mrf.mxu0
        %v3126 = vadd.f32 0.0, %v3125
        %3127 = vmatmul.f32.gmra.mxu0 %v3022
        %v3128 = vpop.f32.mrf.mxu0
        %v3129 = vadd.f32 0.0, %v3128
        %3130 = vmatmul.f32.gmra.mxu0 %v3023
        %v3131 = vpop.f32.mrf.mxu0
        %v3132 = vadd.f32 0.0, %v3131
        %3133 = vmatmul.f32.gmra.mxu0 %v3024
        %v3134 = vpop.f32.mrf.mxu0
        %v3135 = vadd.f32 0.0, %v3134
        %3136 = vmatmul.f32.gmra.mxu0 %v3025
        %v3137 = vpop.f32.mrf.mxu0
        %v3138 = vadd.f32 0.0, %v3137
        %3139 = vmatmul.f32.gmra.mxu0 %v3026
        %v3140 = vpop.f32.mrf.mxu0
        %v3141 = vadd.f32 0.0, %v3140
        %3142 = vmatmul.f32.gmra.mxu0 %v3027
        %v3143 = vpop.f32.mrf.mxu0
        %v3144 = vadd.f32 0.0, %v3143
        %3145 = vmatmul.f32.gmra.mxu0 %v3028
        %v3146 = vpop.f32.mrf.mxu0
        %v3147 = vadd.f32 0.0, %v3146
        %3148 = vmatmul.f32.gmra.mxu0 %v3029
        %v3149 = vpop.f32.mrf.mxu0
        %v3150 = vadd.f32 0.0, %v3149
        %3151 = vmatmul.f32.gmra.mxu0 %v3030
        %v3152 = vpop.f32.mrf.mxu0
        %v3153 = vadd.f32 0.0, %v3152
        %3154 = vmatmul.f32.gmra.mxu0 %v3031
        %v3155 = vpop.f32.mrf.mxu0
        %v3156 = vadd.f32 0.0, %v3155
        %3157 = vmatmul.f32.gmra.mxu0 %v3032
        %v3158 = vpop.f32.mrf.mxu0
        %v3159 = vadd.f32 0.0, %v3158
        %3160 = vmatmul.f32.gmra.mxu0 %v3033
        %v3161 = vpop.f32.mrf.mxu0
        %v3162 = vadd.f32 0.0, %v3161
        %3163 = vdwg.mxu0
        %v3164 = vadd.f32 %v2970, %v3069
        %v3165 = vadd.f32 %v2971, %v3072
        %v3166 = vadd.f32 %v2972, %v3075
        %v3167 = vadd.f32 %v2973, %v3078
        %v3168 = vadd.f32 %v2974, %v3081
        %v3169 = vadd.f32 %v2975, %v3084
        %v3170 = vadd.f32 %v2976, %v3087
        %v3171 = vadd.f32 %v2977, %v3090
        %v3172 = vadd.f32 %v2978, %v3093
        %v3173 = vadd.f32 %v2979, %v3096
        %v3174 = vadd.f32 %v2980, %v3099
        %v3175 = vadd.f32 %v2981, %v3102
        %v3176 = vadd.f32 %v2982, %v3105
        %v3177 = vadd.f32 %v2983, %v3108
        %v3178 = vadd.f32 %v2984, %v3111
        %v3179 = vadd.f32 %v2985, %v3114
        %v3180 = vadd.f32 %v2986, %v3117
        %v3181 = vadd.f32 %v2987, %v3120
        %v3182 = vadd.f32 %v2988, %v3123
        %v3183 = vadd.f32 %v2989, %v3126
        %v3184 = vadd.f32 %v2990, %v3129
        %v3185 = vadd.f32 %v2991, %v3132
        %v3186 = vadd.f32 %v2992, %v3135
        %v3187 = vadd.f32 %v2993, %v3138
        %v3188 = vadd.f32 %v2994, %v3141
        %v3189 = vadd.f32 %v2995, %v3144
        %v3190 = vadd.f32 %v2996, %v3147
        %v3191 = vadd.f32 %v2997, %v3150
        %v3192 = vadd.f32 %v2998, %v3153
        %v3193 = vadd.f32 %v2999, %v3156
        %v3194 = vadd.f32 %v3000, %v3159
        %v3195 = vadd.f32 %v3001, %v3162
        %v3196 = vld [vmem:[%s2181 + $0x2] sm:$0xff]
        %v3197 = vld [vmem:[%s2181 + $0xa] sm:$0xff]
        %v3198 = vld [vmem:[%s2181 + $0x1a] sm:$0xff]
        %v3199 = vld [vmem:[%s2181 + $0x22] sm:$0xff]
        %v3200 = vld [vmem:[%s2181 + $0x32] sm:$0xff]
        %v3201 = vld [vmem:[%s2181 + $0x3a] sm:$0xff]
        %v3202 = vld [vmem:[%s2181 + $0x4a] sm:$0xff]
        %v3203 = vld [vmem:[%s2181 + $0x52] sm:$0xff]
        %v3204 = vld [vmem:[%s2181 + $0x62] sm:$0xff]
        %v3205 = vld [vmem:[%s2181 + $0x6a] sm:$0xff]
        %v3206 = vld [vmem:[%s2181 + $0x7a] sm:$0xff]
        %v3207 = vld [vmem:[%s2181 + $0x82] sm:$0xff]
        %v3208 = vld [vmem:[%s2181 + $0x92] sm:$0xff]
        %v3209 = vld [vmem:[%s2181 + $0x9a] sm:$0xff]
        %v3210 = vld [vmem:[%s2181 + $0xaa] sm:$0xff]
        %v3211 = vld [vmem:[%s2181 + $0xb2] sm:$0xff]
        %v3212 = vld [vmem:[%s2181 + $0xc2] sm:$0xff]
        %v3213 = vld [vmem:[%s2181 + $0xca] sm:$0xff]
        %v3214 = vld [vmem:[%s2181 + $0xda] sm:$0xff]
        %v3215 = vld [vmem:[%s2181 + $0xe2] sm:$0xff]
        %v3216 = vld [vmem:[%s2181 + $0xf2] sm:$0xff]
        %v3217 = vld [vmem:[%s2181 + $0xfa] sm:$0xff]
        %v3218 = vld [vmem:[%s2181 + $0x10a] sm:$0xff]
        %v3219 = vld [vmem:[%s2181 + $0x112] sm:$0xff]
        %v3220 = vld [vmem:[%s2181 + $0x122] sm:$0xff]
        %v3221 = vld [vmem:[%s2181 + $0x12a] sm:$0xff]
        %v3222 = vld [vmem:[%s2181 + $0x13a] sm:$0xff]
        %v3223 = vld [vmem:[%s2181 + $0x142] sm:$0xff]
        %v3224 = vld [vmem:[%s2181 + $0x152] sm:$0xff]
        %v3225 = vld [vmem:[%s2181 + $0x15a] sm:$0xff]
        %v3226 = vld [vmem:[%s2181 + $0x16a] sm:$0xff]
        %v3227 = vld [vmem:[%s2181 + $0x172] sm:$0xff]
        %s3228 = scalar_lea.vmem [#allocation3], 640
        %v3229 = vld [vmem:[%s3228] sm:$0xff]
        %v3230 = vld [vmem:[%s3228 + $0x8] sm:$0xff]
        %v3231 = vld [vmem:[%s3228 + $0x10] sm:$0xff]
        %v3232 = vld [vmem:[%s3228 + $0x18] sm:$0xff]
        %v3233 = vld [vmem:[%s3228 + $0x20] sm:$0xff]
        %v3234 = vld [vmem:[%s3228 + $0x28] sm:$0xff]
        %v3235 = vld [vmem:[%s3228 + $0x30] sm:$0xff]
        %v3236 = vld [vmem:[%s3228 + $0x38] sm:$0xff]
        %v3237 = vld [vmem:[%s3228 + $0x40] sm:$0xff]
        %v3238 = vld [vmem:[%s3228 + $0x48] sm:$0xff]
        %v3239 = vld [vmem:[%s3228 + $0x50] sm:$0xff]
        %v3240 = vld [vmem:[%s3228 + $0x58] sm:$0xff]
        %v3241 = vld [vmem:[%s3228 + $0x60] sm:$0xff]
        %v3242 = vld [vmem:[%s3228 + $0x68] sm:$0xff]
        %v3243 = vld [vmem:[%s3228 + $0x70] sm:$0xff]
        %v3244 = vld [vmem:[%s3228 + $0x78] sm:$0xff]
        %3245 = vmatpush.msra.mxu0 %v3244
        %3246 = vmatpush.msra.mxu0 %v3243
        %3247 = vmatpush.msra.mxu0 %v3242
        %3248 = vmatpush.msra.mxu0 %v3241
        %3249 = vmatpush.msra.mxu0 %v3240
        %3250 = vmatpush.msra.mxu0 %v3239
        %3251 = vmatpush.msra.mxu0 %v3238
        %3252 = vmatpush.msra.mxu0 %v3237
        %3253 = vmatpush.msra.mxu0 %v3236
        %3254 = vmatpush.msra.mxu0 %v3235
        %3255 = vmatpush.msra.mxu0 %v3234
        %3256 = vmatpush.msra.mxu0 %v3233
        %3257 = vmatpush.msra.mxu0 %v3232
        %3258 = vmatpush.msra.mxu0 %v3231
        %3259 = vmatpush.msra.mxu0 %v3230
        %3260 = vmatpush.msra.mxu0 %v3229
        %3261 = vmatmul.f32.gmra.mxu0 %v3196
        %v3262 = vpop.f32.mrf.mxu0
        %v3263 = vadd.f32 0.0, %v3262
        %3264 = vmatmul.f32.gmra.mxu0 %v3197
        %v3265 = vpop.f32.mrf.mxu0
        %v3266 = vadd.f32 0.0, %v3265
        %3267 = vmatmul.f32.gmra.mxu0 %v3198
        %v3268 = vpop.f32.mrf.mxu0
        %v3269 = vadd.f32 0.0, %v3268
        %3270 = vmatmul.f32.gmra.mxu0 %v3199
        %v3271 = vpop.f32.mrf.mxu0
        %v3272 = vadd.f32 0.0, %v3271
        %3273 = vmatmul.f32.gmra.mxu0 %v3200
        %v3274 = vpop.f32.mrf.mxu0
        %v3275 = vadd.f32 0.0, %v3274
        %3276 = vmatmul.f32.gmra.mxu0 %v3201
        %v3277 = vpop.f32.mrf.mxu0
        %v3278 = vadd.f32 0.0, %v3277
        %3279 = vmatmul.f32.gmra.mxu0 %v3202
        %v3280 = vpop.f32.mrf.mxu0
        %v3281 = vadd.f32 0.0, %v3280
        %3282 = vmatmul.f32.gmra.mxu0 %v3203
        %v3283 = vpop.f32.mrf.mxu0
        %v3284 = vadd.f32 0.0, %v3283
        %3285 = vmatmul.f32.gmra.mxu0 %v3204
        %v3286 = vpop.f32.mrf.mxu0
        %v3287 = vadd.f32 0.0, %v3286
        %3288 = vmatmul.f32.gmra.mxu0 %v3205
        %v3289 = vpop.f32.mrf.mxu0
        %v3290 = vadd.f32 0.0, %v3289
        %3291 = vmatmul.f32.gmra.mxu0 %v3206
        %v3292 = vpop.f32.mrf.mxu0
        %v3293 = vadd.f32 0.0, %v3292
        %3294 = vmatmul.f32.gmra.mxu0 %v3207
        %v3295 = vpop.f32.mrf.mxu0
        %v3296 = vadd.f32 0.0, %v3295
        %3297 = vmatmul.f32.gmra.mxu0 %v3208
        %v3298 = vpop.f32.mrf.mxu0
        %v3299 = vadd.f32 0.0, %v3298
        %3300 = vmatmul.f32.gmra.mxu0 %v3209
        %v3301 = vpop.f32.mrf.mxu0
        %v3302 = vadd.f32 0.0, %v3301
        %3303 = vmatmul.f32.gmra.mxu0 %v3210
        %v3304 = vpop.f32.mrf.mxu0
        %v3305 = vadd.f32 0.0, %v3304
        %3306 = vmatmul.f32.gmra.mxu0 %v3211
        %v3307 = vpop.f32.mrf.mxu0
        %v3308 = vadd.f32 0.0, %v3307
        %3309 = vmatmul.f32.gmra.mxu0 %v3212
        %v3310 = vpop.f32.mrf.mxu0
        %v3311 = vadd.f32 0.0, %v3310
        %3312 = vmatmul.f32.gmra.mxu0 %v3213
        %v3313 = vpop.f32.mrf.mxu0
        %v3314 = vadd.f32 0.0, %v3313
        %3315 = vmatmul.f32.gmra.mxu0 %v3214
        %v3316 = vpop.f32.mrf.mxu0
        %v3317 = vadd.f32 0.0, %v3316
        %3318 = vmatmul.f32.gmra.mxu0 %v3215
        %v3319 = vpop.f32.mrf.mxu0
        %v3320 = vadd.f32 0.0, %v3319
        %3321 = vmatmul.f32.gmra.mxu0 %v3216
        %v3322 = vpop.f32.mrf.mxu0
        %v3323 = vadd.f32 0.0, %v3322
        %3324 = vmatmul.f32.gmra.mxu0 %v3217
        %v3325 = vpop.f32.mrf.mxu0
        %v3326 = vadd.f32 0.0, %v3325
        %3327 = vmatmul.f32.gmra.mxu0 %v3218
        %v3328 = vpop.f32.mrf.mxu0
        %v3329 = vadd.f32 0.0, %v3328
        %3330 = vmatmul.f32.gmra.mxu0 %v3219
        %v3331 = vpop.f32.mrf.mxu0
        %v3332 = vadd.f32 0.0, %v3331
        %3333 = vmatmul.f32.gmra.mxu0 %v3220
        %v3334 = vpop.f32.mrf.mxu0
        %v3335 = vadd.f32 0.0, %v3334
        %3336 = vmatmul.f32.gmra.mxu0 %v3221
        %v3337 = vpop.f32.mrf.mxu0
        %v3338 = vadd.f32 0.0, %v3337
        %3339 = vmatmul.f32.gmra.mxu0 %v3222
        %v3340 = vpop.f32.mrf.mxu0
        %v3341 = vadd.f32 0.0, %v3340
        %3342 = vmatmul.f32.gmra.mxu0 %v3223
        %v3343 = vpop.f32.mrf.mxu0
        %v3344 = vadd.f32 0.0, %v3343
        %3345 = vmatmul.f32.gmra.mxu0 %v3224
        %v3346 = vpop.f32.mrf.mxu0
        %v3347 = vadd.f32 0.0, %v3346
        %3348 = vmatmul.f32.gmra.mxu0 %v3225
        %v3349 = vpop.f32.mrf.mxu0
        %v3350 = vadd.f32 0.0, %v3349
        %3351 = vmatmul.f32.gmra.mxu0 %v3226
        %v3352 = vpop.f32.mrf.mxu0
        %v3353 = vadd.f32 0.0, %v3352
        %3354 = vmatmul.f32.gmra.mxu0 %v3227
        %v3355 = vpop.f32.mrf.mxu0
        %v3356 = vadd.f32 0.0, %v3355
        %3357 = vdwg.mxu0
        %v3358 = vadd.f32 %v3164, %v3263
        %v3359 = vadd.f32 %v3165, %v3266
        %v3360 = vadd.f32 %v3166, %v3269
        %v3361 = vadd.f32 %v3167, %v3272
        %v3362 = vadd.f32 %v3168, %v3275
        %v3363 = vadd.f32 %v3169, %v3278
        %v3364 = vadd.f32 %v3170, %v3281
        %v3365 = vadd.f32 %v3171, %v3284
        %v3366 = vadd.f32 %v3172, %v3287
        %v3367 = vadd.f32 %v3173, %v3290
        %v3368 = vadd.f32 %v3174, %v3293
        %v3369 = vadd.f32 %v3175, %v3296
        %v3370 = vadd.f32 %v3176, %v3299
        %v3371 = vadd.f32 %v3177, %v3302
        %v3372 = vadd.f32 %v3178, %v3305
        %v3373 = vadd.f32 %v3179, %v3308
        %v3374 = vadd.f32 %v3180, %v3311
        %v3375 = vadd.f32 %v3181, %v3314
        %v3376 = vadd.f32 %v3182, %v3317
        %v3377 = vadd.f32 %v3183, %v3320
        %v3378 = vadd.f32 %v3184, %v3323
        %v3379 = vadd.f32 %v3185, %v3326
        %v3380 = vadd.f32 %v3186, %v3329
        %v3381 = vadd.f32 %v3187, %v3332
        %v3382 = vadd.f32 %v3188, %v3335
        %v3383 = vadd.f32 %v3189, %v3338
        %v3384 = vadd.f32 %v3190, %v3341
        %v3385 = vadd.f32 %v3191, %v3344
        %v3386 = vadd.f32 %v3192, %v3347
        %v3387 = vadd.f32 %v3193, %v3350
        %v3388 = vadd.f32 %v3194, %v3353
        %v3389 = vadd.f32 %v3195, %v3356
        %s3390 = scalar_lea.vmem [#allocation2], 48
        %v3391 = vld [vmem:[%s3390] sm:$0xff]
        %v3392 = vld [vmem:[%s3390 + $0x8] sm:$0xff]
        %v3393 = vld [vmem:[%s3390 + $0x18] sm:$0xff]
        %v3394 = vld [vmem:[%s3390 + $0x20] sm:$0xff]
        %v3395 = vld [vmem:[%s3390 + $0x30] sm:$0xff]
        %v3396 = vld [vmem:[%s3390 + $0x38] sm:$0xff]
        %v3397 = vld [vmem:[%s3390 + $0x48] sm:$0xff]
        %v3398 = vld [vmem:[%s3390 + $0x50] sm:$0xff]
        %v3399 = vld [vmem:[%s3390 + $0x60] sm:$0xff]
        %v3400 = vld [vmem:[%s3390 + $0x68] sm:$0xff]
        %v3401 = vld [vmem:[%s3390 + $0x78] sm:$0xff]
        %v3402 = vld [vmem:[%s3390 + $0x80] sm:$0xff]
        %v3403 = vld [vmem:[%s3390 + $0x90] sm:$0xff]
        %v3404 = vld [vmem:[%s3390 + $0x98] sm:$0xff]
        %v3405 = vld [vmem:[%s3390 + $0xa8] sm:$0xff]
        %v3406 = vld [vmem:[%s3390 + $0xb0] sm:$0xff]
        %v3407 = vld [vmem:[%s3390 + $0xc0] sm:$0xff]
        %v3408 = vld [vmem:[%s3390 + $0xc8] sm:$0xff]
        %v3409 = vld [vmem:[%s3390 + $0xd8] sm:$0xff]
        %v3410 = vld [vmem:[%s3390 + $0xe0] sm:$0xff]
        %v3411 = vld [vmem:[%s3390 + $0xf0] sm:$0xff]
        %v3412 = vld [vmem:[%s3390 + $0xf8] sm:$0xff]
        %v3413 = vld [vmem:[%s3390 + $0x108] sm:$0xff]
        %v3414 = vld [vmem:[%s3390 + $0x110] sm:$0xff]
        %v3415 = vld [vmem:[%s3390 + $0x120] sm:$0xff]
        %v3416 = vld [vmem:[%s3390 + $0x128] sm:$0xff]
        %v3417 = vld [vmem:[%s3390 + $0x138] sm:$0xff]
        %v3418 = vld [vmem:[%s3390 + $0x140] sm:$0xff]
        %v3419 = vld [vmem:[%s3390 + $0x150] sm:$0xff]
        %v3420 = vld [vmem:[%s3390 + $0x158] sm:$0xff]
        %v3421 = vld [vmem:[%s3390 + $0x168] sm:$0xff]
        %v3422 = vld [vmem:[%s3390 + $0x170] sm:$0xff]
        %s3423 = scalar_lea.vmem [#allocation3], 768
        %v3424 = vld [vmem:[%s3423] sm:$0xff]
        %v3425 = vld [vmem:[%s3423 + $0x8] sm:$0xff]
        %v3426 = vld [vmem:[%s3423 + $0x10] sm:$0xff]
        %v3427 = vld [vmem:[%s3423 + $0x18] sm:$0xff]
        %v3428 = vld [vmem:[%s3423 + $0x20] sm:$0xff]
        %v3429 = vld [vmem:[%s3423 + $0x28] sm:$0xff]
        %v3430 = vld [vmem:[%s3423 + $0x30] sm:$0xff]
        %v3431 = vld [vmem:[%s3423 + $0x38] sm:$0xff]
        %v3432 = vld [vmem:[%s3423 + $0x40] sm:$0xff]
        %v3433 = vld [vmem:[%s3423 + $0x48] sm:$0xff]
        %v3434 = vld [vmem:[%s3423 + $0x50] sm:$0xff]
        %v3435 = vld [vmem:[%s3423 + $0x58] sm:$0xff]
        %v3436 = vld [vmem:[%s3423 + $0x60] sm:$0xff]
        %v3437 = vld [vmem:[%s3423 + $0x68] sm:$0xff]
        %v3438 = vld [vmem:[%s3423 + $0x70] sm:$0xff]
        %v3439 = vld [vmem:[%s3423 + $0x78] sm:$0xff]
        %3440 = vmatpush.msra.mxu0 %v3439
        %3441 = vmatpush.msra.mxu0 %v3438
        %3442 = vmatpush.msra.mxu0 %v3437
        %3443 = vmatpush.msra.mxu0 %v3436
        %3444 = vmatpush.msra.mxu0 %v3435
        %3445 = vmatpush.msra.mxu0 %v3434
        %3446 = vmatpush.msra.mxu0 %v3433
        %3447 = vmatpush.msra.mxu0 %v3432
        %3448 = vmatpush.msra.mxu0 %v3431
        %3449 = vmatpush.msra.mxu0 %v3430
        %3450 = vmatpush.msra.mxu0 %v3429
        %3451 = vmatpush.msra.mxu0 %v3428
        %3452 = vmatpush.msra.mxu0 %v3427
        %3453 = vmatpush.msra.mxu0 %v3426
        %3454 = vmatpush.msra.mxu0 %v3425
        %3455 = vmatpush.msra.mxu0 %v3424
        %3456 = vmatmul.f32.gmra.mxu0 %v3391
        %v3457 = vpop.f32.mrf.mxu0
        %v3458 = vadd.f32 0.0, %v3457
        %3459 = vmatmul.f32.gmra.mxu0 %v3392
        %v3460 = vpop.f32.mrf.mxu0
        %v3461 = vadd.f32 0.0, %v3460
        %3462 = vmatmul.f32.gmra.mxu0 %v3393
        %v3463 = vpop.f32.mrf.mxu0
        %v3464 = vadd.f32 0.0, %v3463
        %3465 = vmatmul.f32.gmra.mxu0 %v3394
        %v3466 = vpop.f32.mrf.mxu0
        %v3467 = vadd.f32 0.0, %v3466
        %3468 = vmatmul.f32.gmra.mxu0 %v3395
        %v3469 = vpop.f32.mrf.mxu0
        %v3470 = vadd.f32 0.0, %v3469
        %3471 = vmatmul.f32.gmra.mxu0 %v3396
        %v3472 = vpop.f32.mrf.mxu0
        %v3473 = vadd.f32 0.0, %v3472
        %3474 = vmatmul.f32.gmra.mxu0 %v3397
        %v3475 = vpop.f32.mrf.mxu0
        %v3476 = vadd.f32 0.0, %v3475
        %3477 = vmatmul.f32.gmra.mxu0 %v3398
        %v3478 = vpop.f32.mrf.mxu0
        %v3479 = vadd.f32 0.0, %v3478
        %3480 = vmatmul.f32.gmra.mxu0 %v3399
        %v3481 = vpop.f32.mrf.mxu0
        %v3482 = vadd.f32 0.0, %v3481
        %3483 = vmatmul.f32.gmra.mxu0 %v3400
        %v3484 = vpop.f32.mrf.mxu0
        %v3485 = vadd.f32 0.0, %v3484
        %3486 = vmatmul.f32.gmra.mxu0 %v3401
        %v3487 = vpop.f32.mrf.mxu0
        %v3488 = vadd.f32 0.0, %v3487
        %3489 = vmatmul.f32.gmra.mxu0 %v3402
        %v3490 = vpop.f32.mrf.mxu0
        %v3491 = vadd.f32 0.0, %v3490
        %3492 = vmatmul.f32.gmra.mxu0 %v3403
        %v3493 = vpop.f32.mrf.mxu0
        %v3494 = vadd.f32 0.0, %v3493
        %3495 = vmatmul.f32.gmra.mxu0 %v3404
        %v3496 = vpop.f32.mrf.mxu0
        %v3497 = vadd.f32 0.0, %v3496
        %3498 = vmatmul.f32.gmra.mxu0 %v3405
        %v3499 = vpop.f32.mrf.mxu0
        %v3500 = vadd.f32 0.0, %v3499
        %3501 = vmatmul.f32.gmra.mxu0 %v3406
        %v3502 = vpop.f32.mrf.mxu0
        %v3503 = vadd.f32 0.0, %v3502
        %3504 = vmatmul.f32.gmra.mxu0 %v3407
        %v3505 = vpop.f32.mrf.mxu0
        %v3506 = vadd.f32 0.0, %v3505
        %3507 = vmatmul.f32.gmra.mxu0 %v3408
        %v3508 = vpop.f32.mrf.mxu0
        %v3509 = vadd.f32 0.0, %v3508
        %3510 = vmatmul.f32.gmra.mxu0 %v3409
        %v3511 = vpop.f32.mrf.mxu0
        %v3512 = vadd.f32 0.0, %v3511
        %3513 = vmatmul.f32.gmra.mxu0 %v3410
        %v3514 = vpop.f32.mrf.mxu0
        %v3515 = vadd.f32 0.0, %v3514
        %3516 = vmatmul.f32.gmra.mxu0 %v3411
        %v3517 = vpop.f32.mrf.mxu0
        %v3518 = vadd.f32 0.0, %v3517
        %3519 = vmatmul.f32.gmra.mxu0 %v3412
        %v3520 = vpop.f32.mrf.mxu0
        %v3521 = vadd.f32 0.0, %v3520
        %3522 = vmatmul.f32.gmra.mxu0 %v3413
        %v3523 = vpop.f32.mrf.mxu0
        %v3524 = vadd.f32 0.0, %v3523
        %3525 = vmatmul.f32.gmra.mxu0 %v3414
        %v3526 = vpop.f32.mrf.mxu0
        %v3527 = vadd.f32 0.0, %v3526
        %3528 = vmatmul.f32.gmra.mxu0 %v3415
        %v3529 = vpop.f32.mrf.mxu0
        %v3530 = vadd.f32 0.0, %v3529
        %3531 = vmatmul.f32.gmra.mxu0 %v3416
        %v3532 = vpop.f32.mrf.mxu0
        %v3533 = vadd.f32 0.0, %v3532
        %3534 = vmatmul.f32.gmra.mxu0 %v3417
        %v3535 = vpop.f32.mrf.mxu0
        %v3536 = vadd.f32 0.0, %v3535
        %3537 = vmatmul.f32.gmra.mxu0 %v3418
        %v3538 = vpop.f32.mrf.mxu0
        %v3539 = vadd.f32 0.0, %v3538
        %3540 = vmatmul.f32.gmra.mxu0 %v3419
        %v3541 = vpop.f32.mrf.mxu0
        %v3542 = vadd.f32 0.0, %v3541
        %3543 = vmatmul.f32.gmra.mxu0 %v3420
        %v3544 = vpop.f32.mrf.mxu0
        %v3545 = vadd.f32 0.0, %v3544
        %3546 = vmatmul.f32.gmra.mxu0 %v3421
        %v3547 = vpop.f32.mrf.mxu0
        %v3548 = vadd.f32 0.0, %v3547
        %3549 = vmatmul.f32.gmra.mxu0 %v3422
        %v3550 = vpop.f32.mrf.mxu0
        %v3551 = vadd.f32 0.0, %v3550
        %3552 = vdwg.mxu0
        %v3553 = vadd.f32 %v3358, %v3458
        %v3554 = vadd.f32 %v3359, %v3461
        %v3555 = vadd.f32 %v3360, %v3464
        %v3556 = vadd.f32 %v3361, %v3467
        %v3557 = vadd.f32 %v3362, %v3470
        %v3558 = vadd.f32 %v3363, %v3473
        %v3559 = vadd.f32 %v3364, %v3476
        %v3560 = vadd.f32 %v3365, %v3479
        %v3561 = vadd.f32 %v3366, %v3482
        %v3562 = vadd.f32 %v3367, %v3485
        %v3563 = vadd.f32 %v3368, %v3488
        %v3564 = vadd.f32 %v3369, %v3491
        %v3565 = vadd.f32 %v3370, %v3494
        %v3566 = vadd.f32 %v3371, %v3497
        %v3567 = vadd.f32 %v3372, %v3500
        %v3568 = vadd.f32 %v3373, %v3503
        %v3569 = vadd.f32 %v3374, %v3506
        %v3570 = vadd.f32 %v3375, %v3509
        %v3571 = vadd.f32 %v3376, %v3512
        %v3572 = vadd.f32 %v3377, %v3515
        %v3573 = vadd.f32 %v3378, %v3518
        %v3574 = vadd.f32 %v3379, %v3521
        %v3575 = vadd.f32 %v3380, %v3524
        %v3576 = vadd.f32 %v3381, %v3527
        %v3577 = vadd.f32 %v3382, %v3530
        %v3578 = vadd.f32 %v3383, %v3533
        %v3579 = vadd.f32 %v3384, %v3536
        %v3580 = vadd.f32 %v3385, %v3539
        %v3581 = vadd.f32 %v3386, %v3542
        %v3582 = vadd.f32 %v3387, %v3545
        %v3583 = vadd.f32 %v3388, %v3548
        %v3584 = vadd.f32 %v3389, %v3551
        %v3585 = vld [vmem:[%s3390 + $0x1] sm:$0xff]
        %v3586 = vld [vmem:[%s3390 + $0x9] sm:$0xff]
        %v3587 = vld [vmem:[%s3390 + $0x19] sm:$0xff]
        %v3588 = vld [vmem:[%s3390 + $0x21] sm:$0xff]
        %v3589 = vld [vmem:[%s3390 + $0x31] sm:$0xff]
        %v3590 = vld [vmem:[%s3390 + $0x39] sm:$0xff]
        %v3591 = vld [vmem:[%s3390 + $0x49] sm:$0xff]
        %v3592 = vld [vmem:[%s3390 + $0x51] sm:$0xff]
        %v3593 = vld [vmem:[%s3390 + $0x61] sm:$0xff]
        %v3594 = vld [vmem:[%s3390 + $0x69] sm:$0xff]
        %v3595 = vld [vmem:[%s3390 + $0x79] sm:$0xff]
        %v3596 = vld [vmem:[%s3390 + $0x81] sm:$0xff]
        %v3597 = vld [vmem:[%s3390 + $0x91] sm:$0xff]
        %v3598 = vld [vmem:[%s3390 + $0x99] sm:$0xff]
        %v3599 = vld [vmem:[%s3390 + $0xa9] sm:$0xff]
        %v3600 = vld [vmem:[%s3390 + $0xb1] sm:$0xff]
        %v3601 = vld [vmem:[%s3390 + $0xc1] sm:$0xff]
        %v3602 = vld [vmem:[%s3390 + $0xc9] sm:$0xff]
        %v3603 = vld [vmem:[%s3390 + $0xd9] sm:$0xff]
        %v3604 = vld [vmem:[%s3390 + $0xe1] sm:$0xff]
        %v3605 = vld [vmem:[%s3390 + $0xf1] sm:$0xff]
        %v3606 = vld [vmem:[%s3390 + $0xf9] sm:$0xff]
        %v3607 = vld [vmem:[%s3390 + $0x109] sm:$0xff]
        %v3608 = vld [vmem:[%s3390 + $0x111] sm:$0xff]
        %v3609 = vld [vmem:[%s3390 + $0x121] sm:$0xff]
        %v3610 = vld [vmem:[%s3390 + $0x129] sm:$0xff]
        %v3611 = vld [vmem:[%s3390 + $0x139] sm:$0xff]
        %v3612 = vld [vmem:[%s3390 + $0x141] sm:$0xff]
        %v3613 = vld [vmem:[%s3390 + $0x151] sm:$0xff]
        %v3614 = vld [vmem:[%s3390 + $0x159] sm:$0xff]
        %v3615 = vld [vmem:[%s3390 + $0x169] sm:$0xff]
        %v3616 = vld [vmem:[%s3390 + $0x171] sm:$0xff]
        %s3617 = scalar_lea.vmem [#allocation3], 896
        %v3618 = vld [vmem:[%s3617] sm:$0xff]
        %v3619 = vld [vmem:[%s3617 + $0x8] sm:$0xff]
        %v3620 = vld [vmem:[%s3617 + $0x10] sm:$0xff]
        %v3621 = vld [vmem:[%s3617 + $0x18] sm:$0xff]
        %v3622 = vld [vmem:[%s3617 + $0x20] sm:$0xff]
        %v3623 = vld [vmem:[%s3617 + $0x28] sm:$0xff]
        %v3624 = vld [vmem:[%s3617 + $0x30] sm:$0xff]
        %v3625 = vld [vmem:[%s3617 + $0x38] sm:$0xff]
        %v3626 = vld [vmem:[%s3617 + $0x40] sm:$0xff]
        %v3627 = vld [vmem:[%s3617 + $0x48] sm:$0xff]
        %v3628 = vld [vmem:[%s3617 + $0x50] sm:$0xff]
        %v3629 = vld [vmem:[%s3617 + $0x58] sm:$0xff]
        %v3630 = vld [vmem:[%s3617 + $0x60] sm:$0xff]
        %v3631 = vld [vmem:[%s3617 + $0x68] sm:$0xff]
        %v3632 = vld [vmem:[%s3617 + $0x70] sm:$0xff]
        %v3633 = vld [vmem:[%s3617 + $0x78] sm:$0xff]
        %3634 = vmatpush.msra.mxu0 %v3633
        %3635 = vmatpush.msra.mxu0 %v3632
        %3636 = vmatpush.msra.mxu0 %v3631
        %3637 = vmatpush.msra.mxu0 %v3630
        %3638 = vmatpush.msra.mxu0 %v3629
        %3639 = vmatpush.msra.mxu0 %v3628
        %3640 = vmatpush.msra.mxu0 %v3627
        %3641 = vmatpush.msra.mxu0 %v3626
        %3642 = vmatpush.msra.mxu0 %v3625
        %3643 = vmatpush.msra.mxu0 %v3624
        %3644 = vmatpush.msra.mxu0 %v3623
        %3645 = vmatpush.msra.mxu0 %v3622
        %3646 = vmatpush.msra.mxu0 %v3621
        %3647 = vmatpush.msra.mxu0 %v3620
        %3648 = vmatpush.msra.mxu0 %v3619
        %3649 = vmatpush.msra.mxu0 %v3618
        %3650 = vmatmul.f32.gmra.mxu0 %v3585
        %v3651 = vpop.f32.mrf.mxu0
        %v3652 = vadd.f32 0.0, %v3651
        %3653 = vmatmul.f32.gmra.mxu0 %v3586
        %v3654 = vpop.f32.mrf.mxu0
        %v3655 = vadd.f32 0.0, %v3654
        %3656 = vmatmul.f32.gmra.mxu0 %v3587
        %v3657 = vpop.f32.mrf.mxu0
        %v3658 = vadd.f32 0.0, %v3657
        %3659 = vmatmul.f32.gmra.mxu0 %v3588
        %v3660 = vpop.f32.mrf.mxu0
        %v3661 = vadd.f32 0.0, %v3660
        %3662 = vmatmul.f32.gmra.mxu0 %v3589
        %v3663 = vpop.f32.mrf.mxu0
        %v3664 = vadd.f32 0.0, %v3663
        %3665 = vmatmul.f32.gmra.mxu0 %v3590
        %v3666 = vpop.f32.mrf.mxu0
        %v3667 = vadd.f32 0.0, %v3666
        %3668 = vmatmul.f32.gmra.mxu0 %v3591
        %v3669 = vpop.f32.mrf.mxu0
        %v3670 = vadd.f32 0.0, %v3669
        %3671 = vmatmul.f32.gmra.mxu0 %v3592
        %v3672 = vpop.f32.mrf.mxu0
        %v3673 = vadd.f32 0.0, %v3672
        %3674 = vmatmul.f32.gmra.mxu0 %v3593
        %v3675 = vpop.f32.mrf.mxu0
        %v3676 = vadd.f32 0.0, %v3675
        %3677 = vmatmul.f32.gmra.mxu0 %v3594
        %v3678 = vpop.f32.mrf.mxu0
        %v3679 = vadd.f32 0.0, %v3678
        %3680 = vmatmul.f32.gmra.mxu0 %v3595
        %v3681 = vpop.f32.mrf.mxu0
        %v3682 = vadd.f32 0.0, %v3681
        %3683 = vmatmul.f32.gmra.mxu0 %v3596
        %v3684 = vpop.f32.mrf.mxu0
        %v3685 = vadd.f32 0.0, %v3684
        %3686 = vmatmul.f32.gmra.mxu0 %v3597
        %v3687 = vpop.f32.mrf.mxu0
        %v3688 = vadd.f32 0.0, %v3687
        %3689 = vmatmul.f32.gmra.mxu0 %v3598
        %v3690 = vpop.f32.mrf.mxu0
        %v3691 = vadd.f32 0.0, %v3690
        %3692 = vmatmul.f32.gmra.mxu0 %v3599
        %v3693 = vpop.f32.mrf.mxu0
        %v3694 = vadd.f32 0.0, %v3693
        %3695 = vmatmul.f32.gmra.mxu0 %v3600
        %v3696 = vpop.f32.mrf.mxu0
        %v3697 = vadd.f32 0.0, %v3696
        %3698 = vmatmul.f32.gmra.mxu0 %v3601
        %v3699 = vpop.f32.mrf.mxu0
        %v3700 = vadd.f32 0.0, %v3699
        %3701 = vmatmul.f32.gmra.mxu0 %v3602
        %v3702 = vpop.f32.mrf.mxu0
        %v3703 = vadd.f32 0.0, %v3702
        %3704 = vmatmul.f32.gmra.mxu0 %v3603
        %v3705 = vpop.f32.mrf.mxu0
        %v3706 = vadd.f32 0.0, %v3705
        %3707 = vmatmul.f32.gmra.mxu0 %v3604
        %v3708 = vpop.f32.mrf.mxu0
        %v3709 = vadd.f32 0.0, %v3708
        %3710 = vmatmul.f32.gmra.mxu0 %v3605
        %v3711 = vpop.f32.mrf.mxu0
        %v3712 = vadd.f32 0.0, %v3711
        %3713 = vmatmul.f32.gmra.mxu0 %v3606
        %v3714 = vpop.f32.mrf.mxu0
        %v3715 = vadd.f32 0.0, %v3714
        %3716 = vmatmul.f32.gmra.mxu0 %v3607
        %v3717 = vpop.f32.mrf.mxu0
        %v3718 = vadd.f32 0.0, %v3717
        %3719 = vmatmul.f32.gmra.mxu0 %v3608
        %v3720 = vpop.f32.mrf.mxu0
        %v3721 = vadd.f32 0.0, %v3720
        %3722 = vmatmul.f32.gmra.mxu0 %v3609
        %v3723 = vpop.f32.mrf.mxu0
        %v3724 = vadd.f32 0.0, %v3723
        %3725 = vmatmul.f32.gmra.mxu0 %v3610
        %v3726 = vpop.f32.mrf.mxu0
        %v3727 = vadd.f32 0.0, %v3726
        %3728 = vmatmul.f32.gmra.mxu0 %v3611
        %v3729 = vpop.f32.mrf.mxu0
        %v3730 = vadd.f32 0.0, %v3729
        %3731 = vmatmul.f32.gmra.mxu0 %v3612
        %v3732 = vpop.f32.mrf.mxu0
        %v3733 = vadd.f32 0.0, %v3732
        %3734 = vmatmul.f32.gmra.mxu0 %v3613
        %v3735 = vpop.f32.mrf.mxu0
        %v3736 = vadd.f32 0.0, %v3735
        %3737 = vmatmul.f32.gmra.mxu0 %v3614
        %v3738 = vpop.f32.mrf.mxu0
        %v3739 = vadd.f32 0.0, %v3738
        %3740 = vmatmul.f32.gmra.mxu0 %v3615
        %v3741 = vpop.f32.mrf.mxu0
        %v3742 = vadd.f32 0.0, %v3741
        %3743 = vmatmul.f32.gmra.mxu0 %v3616
        %v3744 = vpop.f32.mrf.mxu0
        %v3745 = vadd.f32 0.0, %v3744
        %3746 = vdwg.mxu0
        %v3747 = vadd.f32 %v3553, %v3652
        %v3748 = vadd.f32 %v3554, %v3655
        %v3749 = vadd.f32 %v3555, %v3658
        %v3750 = vadd.f32 %v3556, %v3661
        %v3751 = vadd.f32 %v3557, %v3664
        %v3752 = vadd.f32 %v3558, %v3667
        %v3753 = vadd.f32 %v3559, %v3670
        %v3754 = vadd.f32 %v3560, %v3673
        %v3755 = vadd.f32 %v3561, %v3676
        %v3756 = vadd.f32 %v3562, %v3679
        %v3757 = vadd.f32 %v3563, %v3682
        %v3758 = vadd.f32 %v3564, %v3685
        %v3759 = vadd.f32 %v3565, %v3688
        %v3760 = vadd.f32 %v3566, %v3691
        %v3761 = vadd.f32 %v3567, %v3694
        %v3762 = vadd.f32 %v3568, %v3697
        %v3763 = vadd.f32 %v3569, %v3700
        %v3764 = vadd.f32 %v3570, %v3703
        %v3765 = vadd.f32 %v3571, %v3706
        %v3766 = vadd.f32 %v3572, %v3709
        %v3767 = vadd.f32 %v3573, %v3712
        %v3768 = vadd.f32 %v3574, %v3715
        %v3769 = vadd.f32 %v3575, %v3718
        %v3770 = vadd.f32 %v3576, %v3721
        %v3771 = vadd.f32 %v3577, %v3724
        %v3772 = vadd.f32 %v3578, %v3727
        %v3773 = vadd.f32 %v3579, %v3730
        %v3774 = vadd.f32 %v3580, %v3733
        %v3775 = vadd.f32 %v3581, %v3736
        %v3776 = vadd.f32 %v3582, %v3739
        %v3777 = vadd.f32 %v3583, %v3742
        %v3778 = vadd.f32 %v3584, %v3745
        %v3779 = vld [vmem:[%s3390 + $0x2] sm:$0xff]
        %v3780 = vld [vmem:[%s3390 + $0xa] sm:$0xff]
        %v3781 = vld [vmem:[%s3390 + $0x1a] sm:$0xff]
        %v3782 = vld [vmem:[%s3390 + $0x22] sm:$0xff]
        %v3783 = vld [vmem:[%s3390 + $0x32] sm:$0xff]
        %v3784 = vld [vmem:[%s3390 + $0x3a] sm:$0xff]
        %v3785 = vld [vmem:[%s3390 + $0x4a] sm:$0xff]
        %v3786 = vld [vmem:[%s3390 + $0x52] sm:$0xff]
        %v3787 = vld [vmem:[%s3390 + $0x62] sm:$0xff]
        %v3788 = vld [vmem:[%s3390 + $0x6a] sm:$0xff]
        %v3789 = vld [vmem:[%s3390 + $0x7a] sm:$0xff]
        %v3790 = vld [vmem:[%s3390 + $0x82] sm:$0xff]
        %v3791 = vld [vmem:[%s3390 + $0x92] sm:$0xff]
        %v3792 = vld [vmem:[%s3390 + $0x9a] sm:$0xff]
        %v3793 = vld [vmem:[%s3390 + $0xaa] sm:$0xff]
        %v3794 = vld [vmem:[%s3390 + $0xb2] sm:$0xff]
        %v3795 = vld [vmem:[%s3390 + $0xc2] sm:$0xff]
        %v3796 = vld [vmem:[%s3390 + $0xca] sm:$0xff]
        %v3797 = vld [vmem:[%s3390 + $0xda] sm:$0xff]
        %v3798 = vld [vmem:[%s3390 + $0xe2] sm:$0xff]
        %v3799 = vld [vmem:[%s3390 + $0xf2] sm:$0xff]
        %v3800 = vld [vmem:[%s3390 + $0xfa] sm:$0xff]
        %v3801 = vld [vmem:[%s3390 + $0x10a] sm:$0xff]
        %v3802 = vld [vmem:[%s3390 + $0x112] sm:$0xff]
        %v3803 = vld [vmem:[%s3390 + $0x122] sm:$0xff]
        %v3804 = vld [vmem:[%s3390 + $0x12a] sm:$0xff]
        %v3805 = vld [vmem:[%s3390 + $0x13a] sm:$0xff]
        %v3806 = vld [vmem:[%s3390 + $0x142] sm:$0xff]
        %v3807 = vld [vmem:[%s3390 + $0x152] sm:$0xff]
        %v3808 = vld [vmem:[%s3390 + $0x15a] sm:$0xff]
        %v3809 = vld [vmem:[%s3390 + $0x16a] sm:$0xff]
        %v3810 = vld [vmem:[%s3390 + $0x172] sm:$0xff]
        %s3811 = scalar_lea.vmem [#allocation3], 1024
        %v3812 = vld [vmem:[%s3811] sm:$0xff]
        %v3813 = vld [vmem:[%s3811 + $0x8] sm:$0xff]
        %v3814 = vld [vmem:[%s3811 + $0x10] sm:$0xff]
        %v3815 = vld [vmem:[%s3811 + $0x18] sm:$0xff]
        %v3816 = vld [vmem:[%s3811 + $0x20] sm:$0xff]
        %v3817 = vld [vmem:[%s3811 + $0x28] sm:$0xff]
        %v3818 = vld [vmem:[%s3811 + $0x30] sm:$0xff]
        %v3819 = vld [vmem:[%s3811 + $0x38] sm:$0xff]
        %v3820 = vld [vmem:[%s3811 + $0x40] sm:$0xff]
        %v3821 = vld [vmem:[%s3811 + $0x48] sm:$0xff]
        %v3822 = vld [vmem:[%s3811 + $0x50] sm:$0xff]
        %v3823 = vld [vmem:[%s3811 + $0x58] sm:$0xff]
        %v3824 = vld [vmem:[%s3811 + $0x60] sm:$0xff]
        %v3825 = vld [vmem:[%s3811 + $0x68] sm:$0xff]
        %v3826 = vld [vmem:[%s3811 + $0x70] sm:$0xff]
        %v3827 = vld [vmem:[%s3811 + $0x78] sm:$0xff]
        %3828 = vmatpush.msra.mxu0 %v3827
        %3829 = vmatpush.msra.mxu0 %v3826
        %3830 = vmatpush.msra.mxu0 %v3825
        %3831 = vmatpush.msra.mxu0 %v3824
        %3832 = vmatpush.msra.mxu0 %v3823
        %3833 = vmatpush.msra.mxu0 %v3822
        %3834 = vmatpush.msra.mxu0 %v3821
        %3835 = vmatpush.msra.mxu0 %v3820
        %3836 = vmatpush.msra.mxu0 %v3819
        %3837 = vmatpush.msra.mxu0 %v3818
        %3838 = vmatpush.msra.mxu0 %v3817
        %3839 = vmatpush.msra.mxu0 %v3816
        %3840 = vmatpush.msra.mxu0 %v3815
        %3841 = vmatpush.msra.mxu0 %v3814
        %3842 = vmatpush.msra.mxu0 %v3813
        %3843 = vmatpush.msra.mxu0 %v3812
        %3844 = vmatmul.f32.gmra.mxu0 %v3779
        %v3845 = vpop.f32.mrf.mxu0
        %v3846 = vadd.f32 0.0, %v3845
        %3847 = vmatmul.f32.gmra.mxu0 %v3780
        %v3848 = vpop.f32.mrf.mxu0
        %v3849 = vadd.f32 0.0, %v3848
        %3850 = vmatmul.f32.gmra.mxu0 %v3781
        %v3851 = vpop.f32.mrf.mxu0
        %v3852 = vadd.f32 0.0, %v3851
        %3853 = vmatmul.f32.gmra.mxu0 %v3782
        %v3854 = vpop.f32.mrf.mxu0
        %v3855 = vadd.f32 0.0, %v3854
        %3856 = vmatmul.f32.gmra.mxu0 %v3783
        %v3857 = vpop.f32.mrf.mxu0
        %v3858 = vadd.f32 0.0, %v3857
        %3859 = vmatmul.f32.gmra.mxu0 %v3784
        %v3860 = vpop.f32.mrf.mxu0
        %v3861 = vadd.f32 0.0, %v3860
        %3862 = vmatmul.f32.gmra.mxu0 %v3785
        %v3863 = vpop.f32.mrf.mxu0
        %v3864 = vadd.f32 0.0, %v3863
        %3865 = vmatmul.f32.gmra.mxu0 %v3786
        %v3866 = vpop.f32.mrf.mxu0
        %v3867 = vadd.f32 0.0, %v3866
        %3868 = vmatmul.f32.gmra.mxu0 %v3787
        %v3869 = vpop.f32.mrf.mxu0
        %v3870 = vadd.f32 0.0, %v3869
        %3871 = vmatmul.f32.gmra.mxu0 %v3788
        %v3872 = vpop.f32.mrf.mxu0
        %v3873 = vadd.f32 0.0, %v3872
        %3874 = vmatmul.f32.gmra.mxu0 %v3789
        %v3875 = vpop.f32.mrf.mxu0
        %v3876 = vadd.f32 0.0, %v3875
        %3877 = vmatmul.f32.gmra.mxu0 %v3790
        %v3878 = vpop.f32.mrf.mxu0
        %v3879 = vadd.f32 0.0, %v3878
        %3880 = vmatmul.f32.gmra.mxu0 %v3791
        %v3881 = vpop.f32.mrf.mxu0
        %v3882 = vadd.f32 0.0, %v3881
        %3883 = vmatmul.f32.gmra.mxu0 %v3792
        %v3884 = vpop.f32.mrf.mxu0
        %v3885 = vadd.f32 0.0, %v3884
        %3886 = vmatmul.f32.gmra.mxu0 %v3793
        %v3887 = vpop.f32.mrf.mxu0
        %v3888 = vadd.f32 0.0, %v3887
        %3889 = vmatmul.f32.gmra.mxu0 %v3794
        %v3890 = vpop.f32.mrf.mxu0
        %v3891 = vadd.f32 0.0, %v3890
        %3892 = vmatmul.f32.gmra.mxu0 %v3795
        %v3893 = vpop.f32.mrf.mxu0
        %v3894 = vadd.f32 0.0, %v3893
        %3895 = vmatmul.f32.gmra.mxu0 %v3796
        %v3896 = vpop.f32.mrf.mxu0
        %v3897 = vadd.f32 0.0, %v3896
        %3898 = vmatmul.f32.gmra.mxu0 %v3797
        %v3899 = vpop.f32.mrf.mxu0
        %v3900 = vadd.f32 0.0, %v3899
        %3901 = vmatmul.f32.gmra.mxu0 %v3798
        %v3902 = vpop.f32.mrf.mxu0
        %v3903 = vadd.f32 0.0, %v3902
        %3904 = vmatmul.f32.gmra.mxu0 %v3799
        %v3905 = vpop.f32.mrf.mxu0
        %v3906 = vadd.f32 0.0, %v3905
        %3907 = vmatmul.f32.gmra.mxu0 %v3800
        %v3908 = vpop.f32.mrf.mxu0
        %v3909 = vadd.f32 0.0, %v3908
        %3910 = vmatmul.f32.gmra.mxu0 %v3801
        %v3911 = vpop.f32.mrf.mxu0
        %v3912 = vadd.f32 0.0, %v3911
        %3913 = vmatmul.f32.gmra.mxu0 %v3802
        %v3914 = vpop.f32.mrf.mxu0
        %v3915 = vadd.f32 0.0, %v3914
        %3916 = vmatmul.f32.gmra.mxu0 %v3803
        %v3917 = vpop.f32.mrf.mxu0
        %v3918 = vadd.f32 0.0, %v3917
        %3919 = vmatmul.f32.gmra.mxu0 %v3804
        %v3920 = vpop.f32.mrf.mxu0
        %v3921 = vadd.f32 0.0, %v3920
        %3922 = vmatmul.f32.gmra.mxu0 %v3805
        %v3923 = vpop.f32.mrf.mxu0
        %v3924 = vadd.f32 0.0, %v3923
        %3925 = vmatmul.f32.gmra.mxu0 %v3806
        %v3926 = vpop.f32.mrf.mxu0
        %v3927 = vadd.f32 0.0, %v3926
        %3928 = vmatmul.f32.gmra.mxu0 %v3807
        %v3929 = vpop.f32.mrf.mxu0
        %v3930 = vadd.f32 0.0, %v3929
        %3931 = vmatmul.f32.gmra.mxu0 %v3808
        %v3932 = vpop.f32.mrf.mxu0
        %v3933 = vadd.f32 0.0, %v3932
        %3934 = vmatmul.f32.gmra.mxu0 %v3809
        %v3935 = vpop.f32.mrf.mxu0
        %v3936 = vadd.f32 0.0, %v3935
        %3937 = vmatmul.f32.gmra.mxu0 %v3810
        %v3938 = vpop.f32.mrf.mxu0
        %v3939 = vadd.f32 0.0, %v3938
        %3940 = vdwg.mxu0
        %v3941 = vadd.f32 %v3747, %v3846
        %v3942 = vadd.f32 %v3748, %v3849
        %v3943 = vadd.f32 %v3749, %v3852
        %v3944 = vadd.f32 %v3750, %v3855
        %v3945 = vadd.f32 %v3751, %v3858
        %v3946 = vadd.f32 %v3752, %v3861
        %v3947 = vadd.f32 %v3753, %v3864
        %v3948 = vadd.f32 %v3754, %v3867
        %v3949 = vadd.f32 %v3755, %v3870
        %v3950 = vadd.f32 %v3756, %v3873
        %v3951 = vadd.f32 %v3757, %v3876
        %v3952 = vadd.f32 %v3758, %v3879
        %v3953 = vadd.f32 %v3759, %v3882
        %v3954 = vadd.f32 %v3760, %v3885
        %v3955 = vadd.f32 %v3761, %v3888
        %v3956 = vadd.f32 %v3762, %v3891
        %v3957 = vadd.f32 %v3763, %v3894
        %v3958 = vadd.f32 %v3764, %v3897
        %v3959 = vadd.f32 %v3765, %v3900
        %v3960 = vadd.f32 %v3766, %v3903
        %v3961 = vadd.f32 %v3767, %v3906
        %v3962 = vadd.f32 %v3768, %v3909
        %v3963 = vadd.f32 %v3769, %v3912
        %v3964 = vadd.f32 %v3770, %v3915
        %v3965 = vadd.f32 %v3771, %v3918
        %v3966 = vadd.f32 %v3772, %v3921
        %v3967 = vadd.f32 %v3773, %v3924
        %v3968 = vadd.f32 %v3774, %v3927
        %v3969 = vadd.f32 %v3775, %v3930
        %v3970 = vadd.f32 %v3776, %v3933
        %v3971 = vadd.f32 %v3777, %v3936
        %v3972 = vadd.f32 %v3778, %v3939
        %v3973 = vld [vmem:[%s4] sm:$0x1]
        %v3975 = vperm.slane %v3973, 0
        %v3977 = vadd.f32 %v3941, %v3975
        %v3978 = vadd.f32 %v3942, %v3975
        %v3979 = vadd.f32 %v3943, %v3975
        %v3980 = vadd.f32 %v3944, %v3975
        %v3981 = vadd.f32 %v3945, %v3975
        %v3982 = vadd.f32 %v3946, %v3975
        %v3983 = vadd.f32 %v3947, %v3975
        %v3984 = vadd.f32 %v3948, %v3975
        %v3985 = vadd.f32 %v3949, %v3975
        %v3986 = vadd.f32 %v3950, %v3975
        %v3987 = vadd.f32 %v3951, %v3975
        %v3988 = vadd.f32 %v3952, %v3975
        %v3989 = vadd.f32 %v3953, %v3975
        %v3990 = vadd.f32 %v3954, %v3975
        %v3991 = vadd.f32 %v3955, %v3975
        %v3992 = vadd.f32 %v3956, %v3975
        %v3993 = vadd.f32 %v3957, %v3975
        %v3994 = vadd.f32 %v3958, %v3975
        %v3995 = vadd.f32 %v3959, %v3975
        %v3996 = vadd.f32 %v3960, %v3975
        %v3997 = vadd.f32 %v3961, %v3975
        %v3998 = vadd.f32 %v3962, %v3975
        %v3999 = vadd.f32 %v3963, %v3975
        %v4000 = vadd.f32 %v3964, %v3975
        %v4001 = vadd.f32 %v3965, %v3975
        %v4002 = vadd.f32 %v3966, %v3975
        %v4003 = vadd.f32 %v3967, %v3975
        %v4004 = vadd.f32 %v3968, %v3975
        %v4005 = vadd.f32 %v3969, %v3975
        %v4006 = vadd.f32 %v3970, %v3975
        %v4007 = vadd.f32 %v3971, %v3975
        %v4008 = vadd.f32 %v3972, %v3975
        %v4009 = vadd.f32 %v3977, %v3978
        %v4010 = vadd.f32 %v4009, %v3979
        %v4011 = vadd.f32 %v4010, %v3980
        %v4012 = vadd.f32 %v4011, %v3981
        %v4013 = vadd.f32 %v4012, %v3982
        %v4014 = vadd.f32 %v4013, %v3983
        %v4015 = vadd.f32 %v4014, %v3984
        %v4016 = vadd.f32 %v4015, %v3985
        %v4017 = vadd.f32 %v4016, %v3986
        %v4018 = vadd.f32 %v4017, %v3987
        %v4019 = vadd.f32 %v4018, %v3988
        %v4020 = vadd.f32 %v4019, %v3989
        %v4021 = vadd.f32 %v4020, %v3990
        %v4022 = vadd.f32 %v4021, %v3991
        %v4023 = vadd.f32 %v4022, %v3992
        %v4024 = vadd.f32 %v4023, %v3993
        %v4025 = vadd.f32 %v4024, %v3994
        %v4026 = vadd.f32 %v4025, %v3995
        %v4027 = vadd.f32 %v4026, %v3996
        %v4028 = vadd.f32 %v4027, %v3997
        %v4029 = vadd.f32 %v4028, %v3998
        %v4030 = vadd.f32 %v4029, %v3999
        %v4031 = vadd.f32 %v4030, %v4000
        %v4032 = vadd.f32 %v4031, %v4001
        %v4033 = vadd.f32 %v4032, %v4002
        %v4034 = vadd.f32 %v4033, %v4003
        %v4035 = vadd.f32 %v4034, %v4004
        %v4036 = vadd.f32 %v4035, %v4005
        %v4037 = vadd.f32 %v4036, %v4006
        %v4038 = vadd.f32 %v4037, %v4007
        %v4039 = vadd.f32 %v4038, %v4008
        %v4040 = vrot.slane %v4039, 4
        %v4041 = vadd.f32 %v4039, %v4040
        %v4042 = vrot.slane %v4041, 2
        %v4043 = vadd.f32 %v4041, %v4042
        %v4044 = vrot.slane %v4043, 1
        %v4045 = vadd.f32 %v4043, %v4044
        %v4046 = vmul.f32 %v4045, %v2002
        %v4047 = vsub.f32 %v3977, %v4046
        %v4048 = vsub.f32 %v3978, %v4046
        %v4049 = vsub.f32 %v3979, %v4046
        %v4050 = vsub.f32 %v3980, %v4046
        %v4051 = vsub.f32 %v3981, %v4046
        %v4052 = vsub.f32 %v3982, %v4046
        %v4053 = vsub.f32 %v3983, %v4046
        %v4054 = vsub.f32 %v3984, %v4046
        %v4055 = vsub.f32 %v3985, %v4046
        %v4056 = vsub.f32 %v3986, %v4046
        %v4057 = vsub.f32 %v3987, %v4046
        %v4058 = vsub.f32 %v3988, %v4046
        %v4059 = vsub.f32 %v3989, %v4046
        %v4060 = vsub.f32 %v3990, %v4046
        %v4061 = vsub.f32 %v3991, %v4046
        %v4062 = vsub.f32 %v3992, %v4046
        %v4063 = vsub.f32 %v3993, %v4046
        %v4064 = vsub.f32 %v3994, %v4046
        %v4065 = vsub.f32 %v3995, %v4046
        %v4066 = vsub.f32 %v3996, %v4046
        %v4067 = vsub.f32 %v3997, %v4046
        %v4068 = vsub.f32 %v3998, %v4046
        %v4069 = vsub.f32 %v3999, %v4046
        %v4070 = vsub.f32 %v4000, %v4046
        %v4071 = vsub.f32 %v4001, %v4046
        %v4072 = vsub.f32 %v4002, %v4046
        %v4073 = vsub.f32 %v4003, %v4046
        %v4074 = vsub.f32 %v4004, %v4046
        %v4075 = vsub.f32 %v4005, %v4046
        %v4076 = vsub.f32 %v4006, %v4046
        %v4077 = vsub.f32 %v4007, %v4046
        %v4078 = vsub.f32 %v4008, %v4046
        %v4079 = vmul.f32 %v4047, %v4047
        %v4080 = vmul.f32 %v4048, %v4048
        %v4081 = vmul.f32 %v4049, %v4049
        %v4082 = vmul.f32 %v4050, %v4050
        %v4083 = vmul.f32 %v4051, %v4051
        %v4084 = vmul.f32 %v4052, %v4052
        %v4085 = vmul.f32 %v4053, %v4053
        %v4086 = vmul.f32 %v4054, %v4054
        %v4087 = vmul.f32 %v4055, %v4055
        %v4088 = vmul.f32 %v4056, %v4056
        %v4089 = vmul.f32 %v4057, %v4057
        %v4090 = vmul.f32 %v4058, %v4058
        %v4091 = vmul.f32 %v4059, %v4059
        %v4092 = vmul.f32 %v4060, %v4060
        %v4093 = vmul.f32 %v4061, %v4061
        %v4094 = vmul.f32 %v4062, %v4062
        %v4095 = vmul.f32 %v4063, %v4063
        %v4096 = vmul.f32 %v4064, %v4064
        %v4097 = vmul.f32 %v4065, %v4065
        %v4098 = vmul.f32 %v4066, %v4066
        %v4099 = vmul.f32 %v4067, %v4067
        %v4100 = vmul.f32 %v4068, %v4068
        %v4101 = vmul.f32 %v4069, %v4069
        %v4102 = vmul.f32 %v4070, %v4070
        %v4103 = vmul.f32 %v4071, %v4071
        %v4104 = vmul.f32 %v4072, %v4072
        %v4105 = vmul.f32 %v4073, %v4073
        %v4106 = vmul.f32 %v4074, %v4074
        %v4107 = vmul.f32 %v4075, %v4075
        %v4108 = vmul.f32 %v4076, %v4076
        %v4109 = vmul.f32 %v4077, %v4077
        %v4110 = vmul.f32 %v4078, %v4078
        %v4111 = vadd.f32 %v4079, %v4080
        %v4112 = vadd.f32 %v4111, %v4081
        %v4113 = vadd.f32 %v4112, %v4082
        %v4114 = vadd.f32 %v4113, %v4083
        %v4115 = vadd.f32 %v4114, %v4084
        %v4116 = vadd.f32 %v4115, %v4085
        %v4117 = vadd.f32 %v4116, %v4086
        %v4118 = vadd.f32 %v4117, %v4087
        %v4119 = vadd.f32 %v4118, %v4088
        %v4120 = vadd.f32 %v4119, %v4089
        %v4121 = vadd.f32 %v4120, %v4090
        %v4122 = vadd.f32 %v4121, %v4091
        %v4123 = vadd.f32 %v4122, %v4092
        %v4124 = vadd.f32 %v4123, %v4093
        %v4125 = vadd.f32 %v4124, %v4094
        %v4126 = vadd.f32 %v4125, %v4095
        %v4127 = vadd.f32 %v4126, %v4096
        %v4128 = vadd.f32 %v4127, %v4097
        %v4129 = vadd.f32 %v4128, %v4098
        %v4130 = vadd.f32 %v4129, %v4099
        %v4131 = vadd.f32 %v4130, %v4100
        %v4132 = vadd.f32 %v4131, %v4101
        %v4133 = vadd.f32 %v4132, %v4102
        %v4134 = vadd.f32 %v4133, %v4103
        %v4135 = vadd.f32 %v4134, %v4104
        %v4136 = vadd.f32 %v4135, %v4105
        %v4137 = vadd.f32 %v4136, %v4106
        %v4138 = vadd.f32 %v4137, %v4107
        %v4139 = vadd.f32 %v4138, %v4108
        %v4140 = vadd.f32 %v4139, %v4109
        %v4141 = vadd.f32 %v4140, %v4110
        %v4142 = vrot.slane %v4141, 4
        %v4143 = vadd.f32 %v4141, %v4142
        %v4144 = vrot.slane %v4143, 2
        %v4145 = vadd.f32 %v4143, %v4144
        %v4146 = vrot.slane %v4145, 1
        %v4147 = vadd.f32 %v4145, %v4146
        %v4148 = vmul.f32 %v4147, %v2002
        %v4149 = vadd.f32 %v4148, 1e-05
        %v4150 = vrsqrt.pop %v4149
        %v4151 = vmul.f32 %v4150, %v4149
        %v4152 = vmul.f32 %v4151, %v4150
        %v4153 = vmul.f32 0.5, %v4152
        %v4154 = vsub.f32 1.5, %v4153
        %v4155 = vmul.f32 %v4150, %v4154
        %vm4156 = vweird.f32 %v4149
        %vm4157 = vweird.f32 %v4150
        %vm4158 = vmor %vm4156, %vm4157
        %v4159 = vsel %vm4158, %v4150, %v4155
        %v4160 = vmul.f32 %v4047, %v4159
        %v4161 = vmul.f32 %v4048, %v4159
        %v4162 = vmul.f32 %v4049, %v4159
        %v4163 = vmul.f32 %v4050, %v4159
        %v4164 = vmul.f32 %v4051, %v4159
        %v4165 = vmul.f32 %v4052, %v4159
        %v4166 = vmul.f32 %v4053, %v4159
        %v4167 = vmul.f32 %v4054, %v4159
        %v4168 = vmul.f32 %v4055, %v4159
        %v4169 = vmul.f32 %v4056, %v4159
        %v4170 = vmul.f32 %v4057, %v4159
        %v4171 = vmul.f32 %v4058, %v4159
        %v4172 = vmul.f32 %v4059, %v4159
        %v4173 = vmul.f32 %v4060, %v4159
        %v4174 = vmul.f32 %v4061, %v4159
        %v4175 = vmul.f32 %v4062, %v4159
        %v4176 = vmul.f32 %v4063, %v4159
        %v4177 = vmul.f32 %v4064, %v4159
        %v4178 = vmul.f32 %v4065, %v4159
        %v4179 = vmul.f32 %v4066, %v4159
        %v4180 = vmul.f32 %v4067, %v4159
        %v4181 = vmul.f32 %v4068, %v4159
        %v4182 = vmul.f32 %v4069, %v4159
        %v4183 = vmul.f32 %v4070, %v4159
        %v4184 = vmul.f32 %v4071, %v4159
        %v4185 = vmul.f32 %v4072, %v4159
        %v4186 = vmul.f32 %v4073, %v4159
        %v4187 = vmul.f32 %v4074, %v4159
        %v4188 = vmul.f32 %v4075, %v4159
        %v4189 = vmul.f32 %v4076, %v4159
        %v4190 = vmul.f32 %v4077, %v4159
        %v4191 = vmul.f32 %v4078, %v4159
        %v4192 = vld [vmem:[%s757 + $0x1] sm:$0xff]
        %v4193 = vld [vmem:[%s757 + $0x9] sm:$0xff]
        %v4194 = vld [vmem:[%s757 + $0x19] sm:$0xff]
        %v4195 = vld [vmem:[%s757 + $0x21] sm:$0xff]
        %v4196 = vld [vmem:[%s757 + $0x31] sm:$0xff]
        %v4197 = vld [vmem:[%s757 + $0x39] sm:$0xff]
        %v4198 = vld [vmem:[%s757 + $0x49] sm:$0xff]
        %v4199 = vld [vmem:[%s757 + $0x51] sm:$0xff]
        %v4200 = vld [vmem:[%s757 + $0x61] sm:$0xff]
        %v4201 = vld [vmem:[%s757 + $0x69] sm:$0xff]
        %v4202 = vld [vmem:[%s757 + $0x79] sm:$0xff]
        %v4203 = vld [vmem:[%s757 + $0x81] sm:$0xff]
        %v4204 = vld [vmem:[%s757 + $0x91] sm:$0xff]
        %v4205 = vld [vmem:[%s757 + $0x99] sm:$0xff]
        %v4206 = vld [vmem:[%s757 + $0xa9] sm:$0xff]
        %v4207 = vld [vmem:[%s757 + $0xb1] sm:$0xff]
        %v4208 = vld [vmem:[%s757 + $0xc1] sm:$0xff]
        %v4209 = vld [vmem:[%s757 + $0xc9] sm:$0xff]
        %v4210 = vld [vmem:[%s757 + $0xd9] sm:$0xff]
        %v4211 = vld [vmem:[%s757 + $0xe1] sm:$0xff]
        %v4212 = vld [vmem:[%s757 + $0xf1] sm:$0xff]
        %v4213 = vld [vmem:[%s757 + $0xf9] sm:$0xff]
        %v4214 = vld [vmem:[%s757 + $0x109] sm:$0xff]
        %v4215 = vld [vmem:[%s757 + $0x111] sm:$0xff]
        %v4216 = vld [vmem:[%s757 + $0x121] sm:$0xff]
        %v4217 = vld [vmem:[%s757 + $0x129] sm:$0xff]
        %v4218 = vld [vmem:[%s757 + $0x139] sm:$0xff]
        %v4219 = vld [vmem:[%s757 + $0x141] sm:$0xff]
        %v4220 = vld [vmem:[%s757 + $0x151] sm:$0xff]
        %v4221 = vld [vmem:[%s757 + $0x159] sm:$0xff]
        %v4222 = vld [vmem:[%s757 + $0x169] sm:$0xff]
        %v4223 = vld [vmem:[%s757 + $0x171] sm:$0xff]
        %v4224 = vadd.f32 %v4160, %v4192
        %v4225 = vadd.f32 %v4161, %v4193
        %v4226 = vadd.f32 %v4162, %v4194
        %v4227 = vadd.f32 %v4163, %v4195
        %v4228 = vadd.f32 %v4164, %v4196
        %v4229 = vadd.f32 %v4165, %v4197
        %v4230 = vadd.f32 %v4166, %v4198
        %v4231 = vadd.f32 %v4167, %v4199
        %v4232 = vadd.f32 %v4168, %v4200
        %v4233 = vadd.f32 %v4169, %v4201
        %v4234 = vadd.f32 %v4170, %v4202
        %v4235 = vadd.f32 %v4171, %v4203
        %v4236 = vadd.f32 %v4172, %v4204
        %v4237 = vadd.f32 %v4173, %v4205
        %v4238 = vadd.f32 %v4174, %v4206
        %v4239 = vadd.f32 %v4175, %v4207
        %v4240 = vadd.f32 %v4176, %v4208
        %v4241 = vadd.f32 %v4177, %v4209
        %v4242 = vadd.f32 %v4178, %v4210
        %v4243 = vadd.f32 %v4179, %v4211
        %v4244 = vadd.f32 %v4180, %v4212
        %v4245 = vadd.f32 %v4181, %v4213
        %v4246 = vadd.f32 %v4182, %v4214
        %v4247 = vadd.f32 %v4183, %v4215
        %v4248 = vadd.f32 %v4184, %v4216
        %v4249 = vadd.f32 %v4185, %v4217
        %v4250 = vadd.f32 %v4186, %v4218
        %v4251 = vadd.f32 %v4187, %v4219
        %v4252 = vadd.f32 %v4188, %v4220
        %v4253 = vadd.f32 %v4189, %v4221
        %v4254 = vadd.f32 %v4190, %v4222
        %v4255 = vadd.f32 %v4191, %v4223
        %4256 = vst [vmem:[%s234] sm:$0xff] %v4224
        %4257 = vst [vmem:[%s234 + $0x8] sm:$0xff] %v4225
        %4258 = vst [vmem:[%s234 + $0x10] sm:$0xff] %v4226
        %4259 = vst [vmem:[%s234 + $0x18] sm:$0xff] %v4227
        %4260 = vst [vmem:[%s234 + $0x20] sm:$0xff] %v4228
        %4261 = vst [vmem:[%s234 + $0x28] sm:$0xff] %v4229
        %4262 = vst [vmem:[%s234 + $0x30] sm:$0xff] %v4230
        %4263 = vst [vmem:[%s234 + $0x38] sm:$0xff] %v4231
        %4264 = vst [vmem:[%s234 + $0x40] sm:$0xff] %v4232
        %4265 = vst [vmem:[%s234 + $0x48] sm:$0xff] %v4233
        %4266 = vst [vmem:[%s234 + $0x50] sm:$0xff] %v4234
        %4267 = vst [vmem:[%s234 + $0x58] sm:$0xff] %v4235
        %4268 = vst [vmem:[%s234 + $0x60] sm:$0xff] %v4236
        %4269 = vst [vmem:[%s234 + $0x68] sm:$0xff] %v4237
        %4270 = vst [vmem:[%s234 + $0x70] sm:$0xff] %v4238
        %4271 = vst [vmem:[%s234 + $0x78] sm:$0xff] %v4239
        %4272 = vst [vmem:[%s234 + $0x80] sm:$0xff] %v4240
        %4273 = vst [vmem:[%s234 + $0x88] sm:$0xff] %v4241
        %4274 = vst [vmem:[%s234 + $0x90] sm:$0xff] %v4242
        %4275 = vst [vmem:[%s234 + $0x98] sm:$0xff] %v4243
        %4276 = vst [vmem:[%s234 + $0xa0] sm:$0xff] %v4244
        %4277 = vst [vmem:[%s234 + $0xa8] sm:$0xff] %v4245
        %4278 = vst [vmem:[%s234 + $0xb0] sm:$0xff] %v4246
        %4279 = vst [vmem:[%s234 + $0xb8] sm:$0xff] %v4247
        %4280 = vst [vmem:[%s234 + $0xc0] sm:$0xff] %v4248
        %4281 = vst [vmem:[%s234 + $0xc8] sm:$0xff] %v4249
        %4282 = vst [vmem:[%s234 + $0xd0] sm:$0xff] %v4250
        %4283 = vst [vmem:[%s234 + $0xd8] sm:$0xff] %v4251
        %4284 = vst [vmem:[%s234 + $0xe0] sm:$0xff] %v4252
        %4285 = vst [vmem:[%s234 + $0xe8] sm:$0xff] %v4253
        %4286 = vst [vmem:[%s234 + $0xf0] sm:$0xff] %v4254
        %4287 = vst [vmem:[%s234 + $0xf8] sm:$0xff] %v4255
        %s4288 = sand.u32 %s138, 1
        %s4289 = scalar_lea.sflag [#allocation5], %s4288
        %s4290 = sand.u32 %s138, 1
        %s4291 = smul.addr %s4290, 256
        %s4292 = scalar_lea.vmem [#allocation6], %s4291
        // Predicated region
        $region45: #{tpu_custom_call.1} parent=39 // pred_check
          %p4293 = pneg %p148
        $region46: #{tpu_custom_call.1} parent=39 // pred_check_branch
          %4295 = sbr.rel (%p4293) target = $region48
        $region47: #{tpu_custom_call.1} parent=39 // pred_region
          %4297 = vsyncadd %s4289, 0
          %s4298 = smul.addr %s20, 32
          %s4299 = smul.addr %s4298, 8
          %s4300 = scalar_lea.hbm %s5, %s4299
          %s4301 = sshll.u32 %s4292, 4
          %s4302 = int_to_ptr.vmem [resolvable:$true] %s4301
          %s4303 = sshll.u32 %s4300, 4
          %s4304 = int_to_ptr.hbm [resolvable:$true] %s4303
          %4309 = dma.vmem_to_hbm [thread:$0]  %s4302, 4096, %s4304, %s4289, 128, 128, 8
        $region48: #{tpu_custom_call.1} parent=39 // pred_fallthru
          _
      $region40: #{tpu_custom_call.1} parent=5 // pred_fallthru
        _
      %p4310 = scmp.le.s32.totalorder 2, %s15
      // Predicated region
      $region49: #{tpu_custom_call.1} parent=5 // pred_check
        %p4311 = pneg %p4310
      $region50: #{tpu_custom_call.1} parent=5 // pred_check_branch
        %4313 = sbr.rel (%p4311) target = $region52
      $region51: #{tpu_custom_call.1} parent=5 // pred_region
        %s4314 = ssub.s32 %s15, 2
        // Predicated region
        $region53: #{tpu_custom_call.1} parent=51 // pred_check
          %p4315 = pneg %p154
        $region54: #{tpu_custom_call.1} parent=51 // pred_check_branch
          %4317 = sbr.rel (%p4315) target = $region56
        $region55: #{tpu_custom_call.1} parent=51 // pred_region
          %s4318 = sand.u32 %s139, 1
          %s4319 = scalar_lea.sflag [#allocation5], %s4318
          %s4320 = sand.u32 %s139, 1
          %s4321 = smul.addr %s4320, 256
          %s4322 = scalar_lea.vmem [#allocation6], %s4321
          %4324 = dma.done %s4319, 4096
        $region56: #{tpu_custom_call.1} parent=51 // pred_fallthru
          _
      $region52: #{tpu_custom_call.1} parent=5 // pred_fallthru
        _
    $region6: #{tpu_custom_call.1} parent=1 // loop_footer
      %s19 = sadd.s32 1, %s15
    $region7: #{tpu_custom_call.1} parent=1 // loop_footer_branch
      %14 = sbr.rel target = $region3
    $region8: #{tpu_custom_call.1} parent=1 // loop_exit
      _
    %4325 = vsyncpa [#allocation4], 1
    %s4326 = scalar_lea.sflag [#allocation4], 1
    %4327 = vsyncpa %s4326, 1
    %4328 = vsyncpa [#allocation5], 1
    %s4329 = scalar_lea.sflag [#allocation5], 1
    %4330 = vsyncpa %s4329, 1

</llo_original>
